<compile_context>
chip_gen: v7x
topology: tpu7x:2x2x1
jax: 0.10.0
libtpu: 0.0.40
codegen_flags: <defaults>
</compile_context>

<pallas_src>
import functools

import jax
import jax.numpy as jnp
from jax.experimental import pallas as pl
from jax.experimental.pallas import tpu as pltpu

EPS = 1e-5  # PyTorch nn.InstanceNorm2d default eps


# ------------------------------ Pallas kernel -------------------------------

def _res_layer_kernel(xp_ref, res_ref, w1_ref, w2_ref,
                      g1_ref, b1_ref, g2_ref, b2_ref,
                      o_ref, hp_ref, *, H, W, k):
    """Fused: conv1 -> IN1 -> ReLU -> reflect-pad -> conv2 -> IN2 -> +residual.

    xp_ref : (1, Hp, Wp, C) bf16   reflection-padded input image
    res_ref: (1, H*W,  C)   f32    residual (original x, flattened)
    w*_ref : (k*k, C, C)    bf16   per-tap conv matrices, tap = di*k + dj
    g*/b*  : (1, C)         f32    InstanceNorm affine params
    o_ref  : (1, H*W, C)    f32    output
    hp_ref : (Hp, Wp, C)    f32    VMEM scratch holding reflection-padded h
    """
    C = o_ref.shape[-1]
    HW = H * W
    p = k // 2
    inv_hw = 1.0 / float(HW)

    # ---------------- stage 1: conv (9 shifted matmuls, bf16 -> f32 acc) ----
    acc = jnp.zeros((HW, C), jnp.float32)
    for di in range(k):
        for dj in range(k):
            tap = di * k + dj
            patch = xp_ref[0, di:di + H, dj:dj + W, :]          # (H, W, C) bf16
            acc = acc + jnp.dot(patch.reshape(HW, C), w1_ref[tap],
                                preferred_element_type=jnp.float32)
    # NOTE: conv bias omitted — InstanceNorm's mean subtraction cancels it exactly.

    # ---------------- InstanceNorm1 (+ReLU), folded affine -------------------
    mean = jnp.sum(acc, axis=0, keepdims=True) * inv_hw          # (1, C)
    ex2 = jnp.sum(acc * acc, axis=0, keepdims=True) * inv_hw
    var = ex2 - mean * mean
    scale = g1_ref[...] * jax.lax.rsqrt(var + EPS)
    shift = b1_ref[...] - mean * scale
    h = jnp.maximum(acc * scale + shift, 0.0)                    # (HW, C) f32

    # ---------------- in-kernel reflection pad of h into VMEM scratch --------
    h3 = h.reshape(H, W, C)
    hp_ref[p:p + H, p:p + W, :] = h3                             # interior
    for r in range(p):
        hp_ref[r:r + 1, p:p + W, :] = h3[p - r:p - r + 1]        # top rows
        hp_ref[p + H + r:p + H + r + 1, p:p + W, :] = h3[H - 2 - r:H - 1 - r]
    for c in range(p):                                           # cols (+corners)
        hp_ref[:, c:c + 1, :] = hp_ref[:, 2 * p - c:2 * p - c + 1, :]
        hp_ref[:, p + W + c:p + W + c + 1, :] = hp_ref[:, p + W - 2 - c:p + W - 1 - c, :]

    # ---------------- stage 2: conv from VMEM scratch -------------------------
    acc2 = jnp.zeros((HW, C), jnp.float32)
    for di in range(k):
        for dj in range(k):
            tap = di * k + dj
            patch = hp_ref[di:di + H, dj:dj + W, :].astype(jnp.bfloat16)
            acc2 = acc2 + jnp.dot(patch.reshape(HW, C), w2_ref[tap],
                                  preferred_element_type=jnp.float32)

    # ---------------- InstanceNorm2 + residual --------------------------------
    mean2 = jnp.sum(acc2, axis=0, keepdims=True) * inv_hw
    ex22 = jnp.sum(acc2 * acc2, axis=0, keepdims=True) * inv_hw
    var2 = ex22 - mean2 * mean2
    scale2 = g2_ref[...] * jax.lax.rsqrt(var2 + EPS)
    shift2 = b2_ref[...] - mean2 * scale2
    o_ref[0] = acc2 * scale2 + shift2 + res_ref[0]


# ------------------------------- JAX wrapper --------------------------------

@functools.partial(jax.jit, static_argnames=("kernel", "stride"))
def res_layer_forward(x_nchw, weights1, bias1, weights2, bias2,
                      gamma1, beta1, gamma2, beta2, *, kernel, stride):
    """Pallas implementation of ResLayer.forward (NCHW in / NCHW out)."""
    del bias1, bias2  # exactly cancelled by InstanceNorm mean subtraction
    N, C, H, W = x_nchw.shape
    assert stride == 1, "residual add requires stride == 1"
    assert kernel % 2 == 1, "reflection pad requires an odd kernel"
    pad = kernel // 2
    assert H > pad and W > pad, "reflection pad requires H, W > kernel // 2"
    Hp, Wp = H + 2 * pad, W + 2 * pad
    HW = H * W

    x = jnp.transpose(x_nchw, (0, 2, 3, 1)).astype(jnp.float32)     # NHWC
    residual = x.reshape(N, HW, C)
    xp = jnp.pad(x, ((0, 0), (pad, pad), (pad, pad), (0, 0)),
                 mode="reflect").astype(jnp.bfloat16)               # (N,Hp,Wp,C)

    def to_taps(wflat):
        # torch conv weight (Cout, Cin, kh, kw) -> (k*k, Cin, Cout), tap=kh*k+kw
        w = wflat.reshape(C, C, kernel, kernel)
        return jnp.transpose(w, (2, 3, 1, 0)).reshape(
            kernel * kernel, C, C).astype(jnp.bfloat16)

    w1t = to_taps(weights1)
    w2t = to_taps(weights2)

    kern = functools.partial(_res_layer_kernel, H=H, W=W, k=kernel)
    out = pl.pallas_call(
        kern,
        out_shape=jax.ShapeDtypeStruct((N, HW, C), jnp.float32),
        grid=(N,),
        in_specs=[
            pl.BlockSpec((1, Hp, Wp, C), lambda n: (n, 0, 0, 0)),   # padded x (bf16)
            pl.BlockSpec((1, HW, C), lambda n: (n, 0, 0)),          # residual (f32)
            pl.BlockSpec((kernel * kernel, C, C), lambda n: (0, 0, 0)),  # W1 taps
            pl.BlockSpec((kernel * kernel, C, C), lambda n: (0, 0, 0)),  # W2 taps
            pl.BlockSpec((1, C), lambda n: (0, 0)),                 # gamma1
            pl.BlockSpec((1, C), lambda n: (0, 0)),                 # beta1
            pl.BlockSpec((1, C), lambda n: (0, 0)),                 # gamma2
            pl.BlockSpec((1, C), lambda n: (0, 0)),                 # beta2
        ],
        out_specs=pl.BlockSpec((1, HW, C), lambda n: (n, 0, 0)),
        scratch_shapes=[pltpu.VMEM((Hp, Wp, C), jnp.float32)],
        compiler_params=pltpu.CompilerParams(
            dimension_semantics=("parallel",)),
    )(xp, residual, w1t, w2t,
      gamma1.reshape(1, C).astype(jnp.float32),
      beta1.reshape(1, C).astype(jnp.float32),
      gamma2.reshape(1, C).astype(jnp.float32),
      beta2.reshape(1, C).astype(jnp.float32))

    out = out.reshape(N, H, W, C)
    return jnp.transpose(out, (0, 3, 1, 2))                         # back to NCHW


# --------------------------- pure-JAX reference -----------------------------

def _reference(x, w1, b1, w2, b2, g1, bt1, g2, bt2, kernel, stride):
    pad = kernel // 2
    C = x.shape[1]

    def conv(h, wflat, b):
        w = wflat.reshape(C, C, kernel, kernel)
        hp = jnp.pad(h, ((0, 0), (0, 0), (pad, pad), (pad, pad)), mode="reflect")
        y = jax.lax.conv_general_dilated(
            hp, w, (stride, stride), "VALID",
            dimension_numbers=("NCHW", "OIHW", "NCHW"),
            precision=jax.lax.Precision.HIGHEST)
        return y + b.reshape(1, -1, 1, 1)

    def inorm(y, g, bt):
        mean = jnp.mean(y, axis=(2, 3), keepdims=True)
        var = jnp.mean(jnp.square(y - mean), axis=(2, 3), keepdims=True)
        return ((y - mean) * jax.lax.rsqrt(var + EPS)
                * g.reshape(1, -1, 1, 1) + bt.reshape(1, -1, 1, 1))

    h = jnp.maximum(inorm(conv(x, w1, b1), g1, bt1), 0.0)
    return inorm(conv(h, w2, b2), g2, bt2) + x


# ----------------------------------- main ------------------------------------

if __name__ == "__main__":
    # The torch module hard-codes 128 channels via weights.reshape(128,128,k,k).
    N, C, H, W = 2, 128, 8, 8
    KERNEL, STRIDE = 3, 1

    key = jax.random.PRNGKey(0)
    kx, kw1, kb1, kw2, kb2 = jax.random.split(key, 5)

    x = jax.random.normal(kx, (N, C, H, W), dtype=jnp.float32)
    weights1 = 0.05 * jax.random.normal(kw1, (C * C * KERNEL * KERNEL,), jnp.float32)
    bias1 = 0.05 * jax.random.normal(kb1, (C,), jnp.float32)
    weights2 = 0.05 * jax.random.normal(kw2, (C * C * KERNEL * KERNEL,), jnp.float32)
    bias2 = 0.05 * jax.random.normal(kb2, (C,), jnp.float32)
    # InstanceNorm2d(affine=True) defaults: weight=1, bias=0.
    gamma1 = jnp.ones((C,), jnp.float32)
    beta1 = jnp.zeros((C,), jnp.float32)
    gamma2 = jnp.ones((C,), jnp.float32)
    beta2 = jnp.zeros((C,), jnp.float32)

    out = res_layer_forward(x, weights1, bias1, weights2, bias2,
                            gamma1, beta1, gamma2, beta2,
                            kernel=KERNEL, stride=STRIDE)
    jax.block_until_ready(out)
    assert out.shape == (N, C, H, W), out.shape

    # sanity check vs. f32 reference (generous tolerance: bf16 MXU inputs)
    ref = _reference(x, weights1, bias1, weights2, bias2,
                     gamma1, beta1, gamma2, beta2, KERNEL, STRIDE)
    max_diff = float(jnp.max(jnp.abs(out - ref)))
    assert max_diff < 0.25, f"max |diff| vs reference = {max_diff}"

    print("KERNEL_OK")
</pallas_src>

<mosaic_0001>
module attributes {stable_mosaic.version = 11 : i64} {
  func.func @_res_layer_kernel(%arg0: i32, %arg1: memref<1x10x10x128xbf16, #tpu.memory_space<vmem>>, %arg2: memref<1x64x128xf32, #tpu.memory_space<vmem>>, %arg3: memref<9x128x128xbf16, #tpu.memory_space<vmem>>, %arg4: memref<9x128x128xbf16, #tpu.memory_space<vmem>>, %arg5: memref<1x128xf32, #tpu.memory_space<vmem>>, %arg6: memref<1x128xf32, #tpu.memory_space<vmem>>, %arg7: memref<1x128xf32, #tpu.memory_space<vmem>>, %arg8: memref<1x128xf32, #tpu.memory_space<vmem>>, %arg9: memref<1x64x128xf32, #tpu.memory_space<vmem>>, %arg10: memref<10x10x128xf32, #tpu.memory_space<vmem>>) attributes {dimension_semantics = [#tpu.dimension_semantics<parallel>], iteration_bounds = array<i64: 2>, scalar_prefetch = 0 : i64, scratch_operands = 1 : i64, tpu.core_type = #tpu.core_type<tc>, window_params = [{transform_indices = @transform_0, window_bounds = array<i64: 1, 10, 10, 128>}, {transform_indices = @transform_1, window_bounds = array<i64: 1, 64, 128>}, {pipeline_mode = #tpu.pipeline_mode<synchronous>, transform_indices = @transform_2, window_bounds = array<i64: 9, 128, 128>}, {pipeline_mode = #tpu.pipeline_mode<synchronous>, transform_indices = @transform_3, window_bounds = array<i64: 9, 128, 128>}, {pipeline_mode = #tpu.pipeline_mode<synchronous>, transform_indices = @transform_4, window_bounds = array<i64: 1, 128>}, {pipeline_mode = #tpu.pipeline_mode<synchronous>, transform_indices = @transform_5, window_bounds = array<i64: 1, 128>}, {pipeline_mode = #tpu.pipeline_mode<synchronous>, transform_indices = @transform_6, window_bounds = array<i64: 1, 128>}, {pipeline_mode = #tpu.pipeline_mode<synchronous>, transform_indices = @transform_7, window_bounds = array<i64: 1, 128>}, {transform_indices = @transform_8, window_bounds = array<i64: 1, 64, 128>}]} {
    %cst = arith.constant 0.000000e+00 : f32
    %0 = vector.broadcast %cst : f32 to vector<64x128xf32>
    %c0 = arith.constant 0 : index
    %c0_0 = arith.constant 0 : index
    %c0_1 = arith.constant 0 : index
    %c0_2 = arith.constant 0 : index
    %1 = vector.load %arg1[%c0, %c0_0, %c0_1, %c0_2] : memref<1x10x10x128xbf16, #tpu.memory_space<vmem>>, vector<1x8x8x128xbf16>
    %2 = vector.shape_cast %1 : vector<1x8x8x128xbf16> to vector<8x8x128xbf16>
    %3 = vector.shape_cast %2 : vector<8x8x128xbf16> to vector<64x128xbf16>
    %c0_3 = arith.constant 0 : index
    %c0_4 = arith.constant 0 : index
    %c0_5 = arith.constant 0 : index
    %4 = vector.load %arg3[%c0_3, %c0_4, %c0_5] : memref<9x128x128xbf16, #tpu.memory_space<vmem>>, vector<1x128x128xbf16>
    %5 = vector.shape_cast %4 : vector<1x128x128xbf16> to vector<128x128xbf16>
    %cst_6 = arith.constant dense<0.000000e+00> : vector<64x128xf32>
    %6 = tpu.matmul %3, %5, %cst_6 {dimension_numbers = #tpu.dot_dimension_numbers<[1], [0], [0], [1], [0, 0, 1, 1], [], []>} : vector<64x128xbf16>, vector<128x128xbf16>, vector<64x128xf32> -> vector<64x128xf32>
    %7 = arith.addf %0, %6 : vector<64x128xf32>
    %c0_7 = arith.constant 0 : index
    %c0_8 = arith.constant 0 : index
    %c1 = arith.constant 1 : index
    %c0_9 = arith.constant 0 : index
    %8 = vector.load %arg1[%c0_7, %c0_8, %c1, %c0_9] : memref<1x10x10x128xbf16, #tpu.memory_space<vmem>>, vector<1x8x8x128xbf16>
    %9 = vector.shape_cast %8 : vector<1x8x8x128xbf16> to vector<8x8x128xbf16>
    %10 = vector.shape_cast %9 : vector<8x8x128xbf16> to vector<64x128xbf16>
    %c1_10 = arith.constant 1 : index
    %c0_11 = arith.constant 0 : index
    %c0_12 = arith.constant 0 : index
    %11 = vector.load %arg3[%c1_10, %c0_11, %c0_12] : memref<9x128x128xbf16, #tpu.memory_space<vmem>>, vector<1x128x128xbf16>
    %12 = vector.shape_cast %11 : vector<1x128x128xbf16> to vector<128x128xbf16>
    %cst_13 = arith.constant dense<0.000000e+00> : vector<64x128xf32>
    %13 = tpu.matmul %10, %12, %cst_13 {dimension_numbers = #tpu.dot_dimension_numbers<[1], [0], [0], [1], [0, 0, 1, 1], [], []>} : vector<64x128xbf16>, vector<128x128xbf16>, vector<64x128xf32> -> vector<64x128xf32>
    %14 = arith.addf %7, %13 : vector<64x128xf32>
    %c0_14 = arith.constant 0 : index
    %c0_15 = arith.constant 0 : index
    %c2 = arith.constant 2 : index
    %c0_16 = arith.constant 0 : index
    %15 = vector.load %arg1[%c0_14, %c0_15, %c2, %c0_16] : memref<1x10x10x128xbf16, #tpu.memory_space<vmem>>, vector<1x8x8x128xbf16>
    %16 = vector.shape_cast %15 : vector<1x8x8x128xbf16> to vector<8x8x128xbf16>
    %17 = vector.shape_cast %16 : vector<8x8x128xbf16> to vector<64x128xbf16>
    %c2_17 = arith.constant 2 : index
    %c0_18 = arith.constant 0 : index
    %c0_19 = arith.constant 0 : index
    %18 = vector.load %arg3[%c2_17, %c0_18, %c0_19] : memref<9x128x128xbf16, #tpu.memory_space<vmem>>, vector<1x128x128xbf16>
    %19 = vector.shape_cast %18 : vector<1x128x128xbf16> to vector<128x128xbf16>
    %cst_20 = arith.constant dense<0.000000e+00> : vector<64x128xf32>
    %20 = tpu.matmul %17, %19, %cst_20 {dimension_numbers = #tpu.dot_dimension_numbers<[1], [0], [0], [1], [0, 0, 1, 1], [], []>} : vector<64x128xbf16>, vector<128x128xbf16>, vector<64x128xf32> -> vector<64x128xf32>
    %21 = arith.addf %14, %20 : vector<64x128xf32>
    %c0_21 = arith.constant 0 : index
    %c1_22 = arith.constant 1 : index
    %c0_23 = arith.constant 0 : index
    %c0_24 = arith.constant 0 : index
    %22 = vector.load %arg1[%c0_21, %c1_22, %c0_23, %c0_24] : memref<1x10x10x128xbf16, #tpu.memory_space<vmem>>, vector<1x8x8x128xbf16>
    %23 = vector.shape_cast %22 : vector<1x8x8x128xbf16> to vector<8x8x128xbf16>
    %24 = vector.shape_cast %23 : vector<8x8x128xbf16> to vector<64x128xbf16>
    %c3 = arith.constant 3 : index
    %c0_25 = arith.constant 0 : index
    %c0_26 = arith.constant 0 : index
    %25 = vector.load %arg3[%c3, %c0_25, %c0_26] : memref<9x128x128xbf16, #tpu.memory_space<vmem>>, vector<1x128x128xbf16>
    %26 = vector.shape_cast %25 : vector<1x128x128xbf16> to vector<128x128xbf16>
    %cst_27 = arith.constant dense<0.000000e+00> : vector<64x128xf32>
    %27 = tpu.matmul %24, %26, %cst_27 {dimension_numbers = #tpu.dot_dimension_numbers<[1], [0], [0], [1], [0, 0, 1, 1], [], []>} : vector<64x128xbf16>, vector<128x128xbf16>, vector<64x128xf32> -> vector<64x128xf32>
    %28 = arith.addf %21, %27 : vector<64x128xf32>
    %c0_28 = arith.constant 0 : index
    %c1_29 = arith.constant 1 : index
    %c1_30 = arith.constant 1 : index
    %c0_31 = arith.constant 0 : index
    %29 = vector.load %arg1[%c0_28, %c1_29, %c1_30, %c0_31] : memref<1x10x10x128xbf16, #tpu.memory_space<vmem>>, vector<1x8x8x128xbf16>
    %30 = vector.shape_cast %29 : vector<1x8x8x128xbf16> to vector<8x8x128xbf16>
    %31 = vector.shape_cast %30 : vector<8x8x128xbf16> to vector<64x128xbf16>
    %c4 = arith.constant 4 : index
    %c0_32 = arith.constant 0 : index
    %c0_33 = arith.constant 0 : index
    %32 = vector.load %arg3[%c4, %c0_32, %c0_33] : memref<9x128x128xbf16, #tpu.memory_space<vmem>>, vector<1x128x128xbf16>
    %33 = vector.shape_cast %32 : vector<1x128x128xbf16> to vector<128x128xbf16>
    %cst_34 = arith.constant dense<0.000000e+00> : vector<64x128xf32>
    %34 = tpu.matmul %31, %33, %cst_34 {dimension_numbers = #tpu.dot_dimension_numbers<[1], [0], [0], [1], [0, 0, 1, 1], [], []>} : vector<64x128xbf16>, vector<128x128xbf16>, vector<64x128xf32> -> vector<64x128xf32>
    %35 = arith.addf %28, %34 : vector<64x128xf32>
    %c0_35 = arith.constant 0 : index
    %c1_36 = arith.constant 1 : index
    %c2_37 = arith.constant 2 : index
    %c0_38 = arith.constant 0 : index
    %36 = vector.load %arg1[%c0_35, %c1_36, %c2_37, %c0_38] : memref<1x10x10x128xbf16, #tpu.memory_space<vmem>>, vector<1x8x8x128xbf16>
    %37 = vector.shape_cast %36 : vector<1x8x8x128xbf16> to vector<8x8x128xbf16>
    %38 = vector.shape_cast %37 : vector<8x8x128xbf16> to vector<64x128xbf16>
    %c5 = arith.constant 5 : index
    %c0_39 = arith.constant 0 : index
    %c0_40 = arith.constant 0 : index
    %39 = vector.load %arg3[%c5, %c0_39, %c0_40] : memref<9x128x128xbf16, #tpu.memory_space<vmem>>, vector<1x128x128xbf16>
    %40 = vector.shape_cast %39 : vector<1x128x128xbf16> to vector<128x128xbf16>
    %cst_41 = arith.constant dense<0.000000e+00> : vector<64x128xf32>
    %41 = tpu.matmul %38, %40, %cst_41 {dimension_numbers = #tpu.dot_dimension_numbers<[1], [0], [0], [1], [0, 0, 1, 1], [], []>} : vector<64x128xbf16>, vector<128x128xbf16>, vector<64x128xf32> -> vector<64x128xf32>
    %42 = arith.addf %35, %41 : vector<64x128xf32>
    %c0_42 = arith.constant 0 : index
    %c2_43 = arith.constant 2 : index
    %c0_44 = arith.constant 0 : index
    %c0_45 = arith.constant 0 : index
    %43 = vector.load %arg1[%c0_42, %c2_43, %c0_44, %c0_45] : memref<1x10x10x128xbf16, #tpu.memory_space<vmem>>, vector<1x8x8x128xbf16>
    %44 = vector.shape_cast %43 : vector<1x8x8x128xbf16> to vector<8x8x128xbf16>
    %45 = vector.shape_cast %44 : vector<8x8x128xbf16> to vector<64x128xbf16>
    %c6 = arith.constant 6 : index
    %c0_46 = arith.constant 0 : index
    %c0_47 = arith.constant 0 : index
    %46 = vector.load %arg3[%c6, %c0_46, %c0_47] : memref<9x128x128xbf16, #tpu.memory_space<vmem>>, vector<1x128x128xbf16>
    %47 = vector.shape_cast %46 : vector<1x128x128xbf16> to vector<128x128xbf16>
    %cst_48 = arith.constant dense<0.000000e+00> : vector<64x128xf32>
    %48 = tpu.matmul %45, %47, %cst_48 {dimension_numbers = #tpu.dot_dimension_numbers<[1], [0], [0], [1], [0, 0, 1, 1], [], []>} : vector<64x128xbf16>, vector<128x128xbf16>, vector<64x128xf32> -> vector<64x128xf32>
    %49 = arith.addf %42, %48 : vector<64x128xf32>
    %c0_49 = arith.constant 0 : index
    %c2_50 = arith.constant 2 : index
    %c1_51 = arith.constant 1 : index
    %c0_52 = arith.constant 0 : index
    %50 = vector.load %arg1[%c0_49, %c2_50, %c1_51, %c0_52] : memref<1x10x10x128xbf16, #tpu.memory_space<vmem>>, vector<1x8x8x128xbf16>
    %51 = vector.shape_cast %50 : vector<1x8x8x128xbf16> to vector<8x8x128xbf16>
    %52 = vector.shape_cast %51 : vector<8x8x128xbf16> to vector<64x128xbf16>
    %c7 = arith.constant 7 : index
    %c0_53 = arith.constant 0 : index
    %c0_54 = arith.constant 0 : index
    %53 = vector.load %arg3[%c7, %c0_53, %c0_54] : memref<9x128x128xbf16, #tpu.memory_space<vmem>>, vector<1x128x128xbf16>
    %54 = vector.shape_cast %53 : vector<1x128x128xbf16> to vector<128x128xbf16>
    %cst_55 = arith.constant dense<0.000000e+00> : vector<64x128xf32>
    %55 = tpu.matmul %52, %54, %cst_55 {dimension_numbers = #tpu.dot_dimension_numbers<[1], [0], [0], [1], [0, 0, 1, 1], [], []>} : vector<64x128xbf16>, vector<128x128xbf16>, vector<64x128xf32> -> vector<64x128xf32>
    %56 = arith.addf %49, %55 : vector<64x128xf32>
    %c0_56 = arith.constant 0 : index
    %c2_57 = arith.constant 2 : index
    %c2_58 = arith.constant 2 : index
    %c0_59 = arith.constant 0 : index
    %57 = vector.load %arg1[%c0_56, %c2_57, %c2_58, %c0_59] : memref<1x10x10x128xbf16, #tpu.memory_space<vmem>>, vector<1x8x8x128xbf16>
    %58 = vector.shape_cast %57 : vector<1x8x8x128xbf16> to vector<8x8x128xbf16>
    %59 = vector.shape_cast %58 : vector<8x8x128xbf16> to vector<64x128xbf16>
    %c8 = arith.constant 8 : index
    %c0_60 = arith.constant 0 : index
    %c0_61 = arith.constant 0 : index
    %60 = vector.load %arg3[%c8, %c0_60, %c0_61] : memref<9x128x128xbf16, #tpu.memory_space<vmem>>, vector<1x128x128xbf16>
    %61 = vector.shape_cast %60 : vector<1x128x128xbf16> to vector<128x128xbf16>
    %cst_62 = arith.constant dense<0.000000e+00> : vector<64x128xf32>
    %62 = tpu.matmul %59, %61, %cst_62 {dimension_numbers = #tpu.dot_dimension_numbers<[1], [0], [0], [1], [0, 0, 1, 1], [], []>} : vector<64x128xbf16>, vector<128x128xbf16>, vector<64x128xf32> -> vector<64x128xf32>
    %63 = arith.addf %56, %62 : vector<64x128xf32>
    %cst_63 = arith.constant dense<0.000000e+00> : vector<128xf32>
    %64 = vector.multi_reduction <add>, %63, %cst_63 [0] : vector<64x128xf32> to vector<128xf32>
    %65 = vector.shape_cast %64 : vector<128xf32> to vector<1x128xf32>
    %cst_64 = arith.constant 1.562500e-02 : f32
    %66 = vector.broadcast %cst_64 : f32 to vector<1x128xf32>
    %67 = arith.mulf %65, %66 : vector<1x128xf32>
    %68 = arith.mulf %63, %63 : vector<64x128xf32>
    %cst_65 = arith.constant dense<0.000000e+00> : vector<128xf32>
    %69 = vector.multi_reduction <add>, %68, %cst_65 [0] : vector<64x128xf32> to vector<128xf32>
    %70 = vector.shape_cast %69 : vector<128xf32> to vector<1x128xf32>
    %cst_66 = arith.constant 1.562500e-02 : f32
    %71 = vector.broadcast %cst_66 : f32 to vector<1x128xf32>
    %72 = arith.mulf %70, %71 : vector<1x128xf32>
    %73 = arith.mulf %67, %67 : vector<1x128xf32>
    %74 = arith.subf %72, %73 : vector<1x128xf32>
    %c0_67 = arith.constant 0 : index
    %c0_68 = arith.constant 0 : index
    %75 = vector.load %arg5[%c0_67, %c0_68] : memref<1x128xf32, #tpu.memory_space<vmem>>, vector<1x128xf32>
    %cst_69 = arith.constant 9.99999974E-6 : f32
    %76 = vector.broadcast %cst_69 : f32 to vector<1x128xf32>
    %77 = arith.addf %74, %76 : vector<1x128xf32>
    %78 = math.rsqrt %77 : vector<1x128xf32>
    %79 = arith.mulf %75, %78 : vector<1x128xf32>
    %c0_70 = arith.constant 0 : index
    %c0_71 = arith.constant 0 : index
    %80 = vector.load %arg6[%c0_70, %c0_71] : memref<1x128xf32, #tpu.memory_space<vmem>>, vector<1x128xf32>
    %81 = arith.mulf %67, %79 : vector<1x128xf32>
    %82 = arith.subf %80, %81 : vector<1x128xf32>
    %83 = vector.broadcast %79 : vector<1x128xf32> to vector<64x128xf32>
    %84 = arith.mulf %63, %83 : vector<64x128xf32>
    %85 = vector.broadcast %82 : vector<1x128xf32> to vector<64x128xf32>
    %86 = arith.addf %84, %85 : vector<64x128xf32>
    %cst_72 = arith.constant 0.000000e+00 : f32
    %87 = vector.broadcast %cst_72 : f32 to vector<64x128xf32>
    %88 = arith.maximumf %86, %87 : vector<64x128xf32>
    %89 = vector.shape_cast %88 : vector<64x128xf32> to vector<8x8x128xf32>
    %c1_73 = arith.constant 1 : index
    %c1_74 = arith.constant 1 : index
    %c0_75 = arith.constant 0 : index
    %90 = vector.load %arg10[%c1_73, %c1_74, %c0_75] : memref<10x10x128xf32, #tpu.memory_space<vmem>>, vector<8x8x128xf32>
    tpu.vector_store %arg10[%c1_73, %c1_74, %c0_75], %89 {strides = array<i32>} : memref<10x10x128xf32, #tpu.memory_space<vmem>>, vector<8x8x128xf32>,
    %91 = vector.extract_strided_slice %89 {offsets = [1, 0, 0], sizes = [1, 8, 128], strides = [1, 1, 1]} : vector<8x8x128xf32> to vector<1x8x128xf32>
    %c0_76 = arith.constant 0 : index
    %c1_77 = arith.constant 1 : index
    %c0_78 = arith.constant 0 : index
    %92 = vector.load %arg10[%c0_76, %c1_77, %c0_78] : memref<10x10x128xf32, #tpu.memory_space<vmem>>, vector<1x8x128xf32>
    tpu.vector_store %arg10[%c0_76, %c1_77, %c0_78], %91 {strides = array<i32>} : memref<10x10x128xf32, #tpu.memory_space<vmem>>, vector<1x8x128xf32>,
    %93 = vector.extract_strided_slice %89 {offsets = [6, 0, 0], sizes = [1, 8, 128], strides = [1, 1, 1]} : vector<8x8x128xf32> to vector<1x8x128xf32>
    %c9 = arith.constant 9 : index
    %c1_79 = arith.constant 1 : index
    %c0_80 = arith.constant 0 : index
    %94 = vector.load %arg10[%c9, %c1_79, %c0_80] : memref<10x10x128xf32, #tpu.memory_space<vmem>>, vector<1x8x128xf32>
    tpu.vector_store %arg10[%c9, %c1_79, %c0_80], %93 {strides = array<i32>} : memref<10x10x128xf32, #tpu.memory_space<vmem>>, vector<1x8x128xf32>,
    %c0_81 = arith.constant 0 : index
    %c2_82 = arith.constant 2 : index
    %c0_83 = arith.constant 0 : index
    %95 = vector.load %arg10[%c0_81, %c2_82, %c0_83] : memref<10x10x128xf32, #tpu.memory_space<vmem>>, vector<10x1x128xf32>
    %c0_84 = arith.constant 0 : index
    %c0_85 = arith.constant 0 : index
    %c0_86 = arith.constant 0 : index
    %96 = vector.load %arg10[%c0_84, %c0_85, %c0_86] : memref<10x10x128xf32, #tpu.memory_space<vmem>>, vector<10x1x128xf32>
    tpu.vector_store %arg10[%c0_84, %c0_85, %c0_86], %95 {strides = array<i32>} : memref<10x10x128xf32, #tpu.memory_space<vmem>>, vector<10x1x128xf32>,
    %c0_87 = arith.constant 0 : index
    %c7_88 = arith.constant 7 : index
    %c0_89 = arith.constant 0 : index
    %97 = vector.load %arg10[%c0_87, %c7_88, %c0_89] : memref<10x10x128xf32, #tpu.memory_space<vmem>>, vector<10x1x128xf32>
    %c0_90 = arith.constant 0 : index
    %c9_91 = arith.constant 9 : index
    %c0_92 = arith.constant 0 : index
    %98 = vector.load %arg10[%c0_90, %c9_91, %c0_92] : memref<10x10x128xf32, #tpu.memory_space<vmem>>, vector<10x1x128xf32>
    tpu.vector_store %arg10[%c0_90, %c9_91, %c0_92], %97 {strides = array<i32>} : memref<10x10x128xf32, #tpu.memory_space<vmem>>, vector<10x1x128xf32>,
    %cst_93 = arith.constant 0.000000e+00 : f32
    %99 = vector.broadcast %cst_93 : f32 to vector<64x128xf32>
    %c0_94 = arith.constant 0 : index
    %c0_95 = arith.constant 0 : index
    %c0_96 = arith.constant 0 : index
    %100 = vector.load %arg10[%c0_94, %c0_95, %c0_96] : memref<10x10x128xf32, #tpu.memory_space<vmem>>, vector<8x8x128xf32>
    %101 = arith.truncf %100 : vector<8x8x128xf32> to vector<8x8x128xbf16>
    %102 = vector.shape_cast %101 : vector<8x8x128xbf16> to vector<64x128xbf16>
    %c0_97 = arith.constant 0 : index
    %c0_98 = arith.constant 0 : index
    %c0_99 = arith.constant 0 : index
    %103 = vector.load %arg4[%c0_97, %c0_98, %c0_99] : memref<9x128x128xbf16, #tpu.memory_space<vmem>>, vector<1x128x128xbf16>
    %104 = vector.shape_cast %103 : vector<1x128x128xbf16> to vector<128x128xbf16>
    %cst_100 = arith.constant dense<0.000000e+00> : vector<64x128xf32>
    %105 = tpu.matmul %102, %104, %cst_100 {dimension_numbers = #tpu.dot_dimension_numbers<[1], [0], [0], [1], [0, 0, 1, 1], [], []>} : vector<64x128xbf16>, vector<128x128xbf16>, vector<64x128xf32> -> vector<64x128xf32>
    %106 = arith.addf %99, %105 : vector<64x128xf32>
    %c0_101 = arith.constant 0 : index
    %c1_102 = arith.constant 1 : index
    %c0_103 = arith.constant 0 : index
    %107 = vector.load %arg10[%c0_101, %c1_102, %c0_103] : memref<10x10x128xf32, #tpu.memory_space<vmem>>, vector<8x8x128xf32>
    %108 = arith.truncf %107 : vector<8x8x128xf32> to vector<8x8x128xbf16>
    %109 = vector.shape_cast %108 : vector<8x8x128xbf16> to vector<64x128xbf16>
    %c1_104 = arith.constant 1 : index
    %c0_105 = arith.constant 0 : index
    %c0_106 = arith.constant 0 : index
    %110 = vector.load %arg4[%c1_104, %c0_105, %c0_106] : memref<9x128x128xbf16, #tpu.memory_space<vmem>>, vector<1x128x128xbf16>
    %111 = vector.shape_cast %110 : vector<1x128x128xbf16> to vector<128x128xbf16>
    %cst_107 = arith.constant dense<0.000000e+00> : vector<64x128xf32>
    %112 = tpu.matmul %109, %111, %cst_107 {dimension_numbers = #tpu.dot_dimension_numbers<[1], [0], [0], [1], [0, 0, 1, 1], [], []>} : vector<64x128xbf16>, vector<128x128xbf16>, vector<64x128xf32> -> vector<64x128xf32>
    %113 = arith.addf %106, %112 : vector<64x128xf32>
    %c0_108 = arith.constant 0 : index
    %c2_109 = arith.constant 2 : index
    %c0_110 = arith.constant 0 : index
    %114 = vector.load %arg10[%c0_108, %c2_109, %c0_110] : memref<10x10x128xf32, #tpu.memory_space<vmem>>, vector<8x8x128xf32>
    %115 = arith.truncf %114 : vector<8x8x128xf32> to vector<8x8x128xbf16>
    %116 = vector.shape_cast %115 : vector<8x8x128xbf16> to vector<64x128xbf16>
    %c2_111 = arith.constant 2 : index
    %c0_112 = arith.constant 0 : index
    %c0_113 = arith.constant 0 : index
    %117 = vector.load %arg4[%c2_111, %c0_112, %c0_113] : memref<9x128x128xbf16, #tpu.memory_space<vmem>>, vector<1x128x128xbf16>
    %118 = vector.shape_cast %117 : vector<1x128x128xbf16> to vector<128x128xbf16>
    %cst_114 = arith.constant dense<0.000000e+00> : vector<64x128xf32>
    %119 = tpu.matmul %116, %118, %cst_114 {dimension_numbers = #tpu.dot_dimension_numbers<[1], [0], [0], [1], [0, 0, 1, 1], [], []>} : vector<64x128xbf16>, vector<128x128xbf16>, vector<64x128xf32> -> vector<64x128xf32>
    %120 = arith.addf %113, %119 : vector<64x128xf32>
    %c1_115 = arith.constant 1 : index
    %c0_116 = arith.constant 0 : index
    %c0_117 = arith.constant 0 : index
    %121 = vector.load %arg10[%c1_115, %c0_116, %c0_117] : memref<10x10x128xf32, #tpu.memory_space<vmem>>, vector<8x8x128xf32>
    %122 = arith.truncf %121 : vector<8x8x128xf32> to vector<8x8x128xbf16>
    %123 = vector.shape_cast %122 : vector<8x8x128xbf16> to vector<64x128xbf16>
    %c3_118 = arith.constant 3 : index
    %c0_119 = arith.constant 0 : index
    %c0_120 = arith.constant 0 : index
    %124 = vector.load %arg4[%c3_118, %c0_119, %c0_120] : memref<9x128x128xbf16, #tpu.memory_space<vmem>>, vector<1x128x128xbf16>
    %125 = vector.shape_cast %124 : vector<1x128x128xbf16> to vector<128x128xbf16>
    %cst_121 = arith.constant dense<0.000000e+00> : vector<64x128xf32>
    %126 = tpu.matmul %123, %125, %cst_121 {dimension_numbers = #tpu.dot_dimension_numbers<[1], [0], [0], [1], [0, 0, 1, 1], [], []>} : vector<64x128xbf16>, vector<128x128xbf16>, vector<64x128xf32> -> vector<64x128xf32>
    %127 = arith.addf %120, %126 : vector<64x128xf32>
    %c1_122 = arith.constant 1 : index
    %c1_123 = arith.constant 1 : index
    %c0_124 = arith.constant 0 : index
    %128 = vector.load %arg10[%c1_122, %c1_123, %c0_124] : memref<10x10x128xf32, #tpu.memory_space<vmem>>, vector<8x8x128xf32>
    %129 = arith.truncf %128 : vector<8x8x128xf32> to vector<8x8x128xbf16>
    %130 = vector.shape_cast %129 : vector<8x8x128xbf16> to vector<64x128xbf16>
    %c4_125 = arith.constant 4 : index
    %c0_126 = arith.constant 0 : index
    %c0_127 = arith.constant 0 : index
    %131 = vector.load %arg4[%c4_125, %c0_126, %c0_127] : memref<9x128x128xbf16, #tpu.memory_space<vmem>>, vector<1x128x128xbf16>
    %132 = vector.shape_cast %131 : vector<1x128x128xbf16> to vector<128x128xbf16>
    %cst_128 = arith.constant dense<0.000000e+00> : vector<64x128xf32>
    %133 = tpu.matmul %130, %132, %cst_128 {dimension_numbers = #tpu.dot_dimension_numbers<[1], [0], [0], [1], [0, 0, 1, 1], [], []>} : vector<64x128xbf16>, vector<128x128xbf16>, vector<64x128xf32> -> vector<64x128xf32>
    %134 = arith.addf %127, %133 : vector<64x128xf32>
    %c1_129 = arith.constant 1 : index
    %c2_130 = arith.constant 2 : index
    %c0_131 = arith.constant 0 : index
    %135 = vector.load %arg10[%c1_129, %c2_130, %c0_131] : memref<10x10x128xf32, #tpu.memory_space<vmem>>, vector<8x8x128xf32>
    %136 = arith.truncf %135 : vector<8x8x128xf32> to vector<8x8x128xbf16>
    %137 = vector.shape_cast %136 : vector<8x8x128xbf16> to vector<64x128xbf16>
    %c5_132 = arith.constant 5 : index
    %c0_133 = arith.constant 0 : index
    %c0_134 = arith.constant 0 : index
    %138 = vector.load %arg4[%c5_132, %c0_133, %c0_134] : memref<9x128x128xbf16, #tpu.memory_space<vmem>>, vector<1x128x128xbf16>
    %139 = vector.shape_cast %138 : vector<1x128x128xbf16> to vector<128x128xbf16>
    %cst_135 = arith.constant dense<0.000000e+00> : vector<64x128xf32>
    %140 = tpu.matmul %137, %139, %cst_135 {dimension_numbers = #tpu.dot_dimension_numbers<[1], [0], [0], [1], [0, 0, 1, 1], [], []>} : vector<64x128xbf16>, vector<128x128xbf16>, vector<64x128xf32> -> vector<64x128xf32>
    %141 = arith.addf %134, %140 : vector<64x128xf32>
    %c2_136 = arith.constant 2 : index
    %c0_137 = arith.constant 0 : index
    %c0_138 = arith.constant 0 : index
    %142 = vector.load %arg10[%c2_136, %c0_137, %c0_138] : memref<10x10x128xf32, #tpu.memory_space<vmem>>, vector<8x8x128xf32>
    %143 = arith.truncf %142 : vector<8x8x128xf32> to vector<8x8x128xbf16>
    %144 = vector.shape_cast %143 : vector<8x8x128xbf16> to vector<64x128xbf16>
    %c6_139 = arith.constant 6 : index
    %c0_140 = arith.constant 0 : index
    %c0_141 = arith.constant 0 : index
    %145 = vector.load %arg4[%c6_139, %c0_140, %c0_141] : memref<9x128x128xbf16, #tpu.memory_space<vmem>>, vector<1x128x128xbf16>
    %146 = vector.shape_cast %145 : vector<1x128x128xbf16> to vector<128x128xbf16>
    %cst_142 = arith.constant dense<0.000000e+00> : vector<64x128xf32>
    %147 = tpu.matmul %144, %146, %cst_142 {dimension_numbers = #tpu.dot_dimension_numbers<[1], [0], [0], [1], [0, 0, 1, 1], [], []>} : vector<64x128xbf16>, vector<128x128xbf16>, vector<64x128xf32> -> vector<64x128xf32>
    %148 = arith.addf %141, %147 : vector<64x128xf32>
    %c2_143 = arith.constant 2 : index
    %c1_144 = arith.constant 1 : index
    %c0_145 = arith.constant 0 : index
    %149 = vector.load %arg10[%c2_143, %c1_144, %c0_145] : memref<10x10x128xf32, #tpu.memory_space<vmem>>, vector<8x8x128xf32>
    %150 = arith.truncf %149 : vector<8x8x128xf32> to vector<8x8x128xbf16>
    %151 = vector.shape_cast %150 : vector<8x8x128xbf16> to vector<64x128xbf16>
    %c7_146 = arith.constant 7 : index
    %c0_147 = arith.constant 0 : index
    %c0_148 = arith.constant 0 : index
    %152 = vector.load %arg4[%c7_146, %c0_147, %c0_148] : memref<9x128x128xbf16, #tpu.memory_space<vmem>>, vector<1x128x128xbf16>
    %153 = vector.shape_cast %152 : vector<1x128x128xbf16> to vector<128x128xbf16>
    %cst_149 = arith.constant dense<0.000000e+00> : vector<64x128xf32>
    %154 = tpu.matmul %151, %153, %cst_149 {dimension_numbers = #tpu.dot_dimension_numbers<[1], [0], [0], [1], [0, 0, 1, 1], [], []>} : vector<64x128xbf16>, vector<128x128xbf16>, vector<64x128xf32> -> vector<64x128xf32>
    %155 = arith.addf %148, %154 : vector<64x128xf32>
    %c2_150 = arith.constant 2 : index
    %c2_151 = arith.constant 2 : index
    %c0_152 = arith.constant 0 : index
    %156 = vector.load %arg10[%c2_150, %c2_151, %c0_152] : memref<10x10x128xf32, #tpu.memory_space<vmem>>, vector<8x8x128xf32>
    %157 = arith.truncf %156 : vector<8x8x128xf32> to vector<8x8x128xbf16>
    %158 = vector.shape_cast %157 : vector<8x8x128xbf16> to vector<64x128xbf16>
    %c8_153 = arith.constant 8 : index
    %c0_154 = arith.constant 0 : index
    %c0_155 = arith.constant 0 : index
    %159 = vector.load %arg4[%c8_153, %c0_154, %c0_155] : memref<9x128x128xbf16, #tpu.memory_space<vmem>>, vector<1x128x128xbf16>
    %160 = vector.shape_cast %159 : vector<1x128x128xbf16> to vector<128x128xbf16>
    %cst_156 = arith.constant dense<0.000000e+00> : vector<64x128xf32>
    %161 = tpu.matmul %158, %160, %cst_156 {dimension_numbers = #tpu.dot_dimension_numbers<[1], [0], [0], [1], [0, 0, 1, 1], [], []>} : vector<64x128xbf16>, vector<128x128xbf16>, vector<64x128xf32> -> vector<64x128xf32>
    %162 = arith.addf %155, %161 : vector<64x128xf32>
    %cst_157 = arith.constant dense<0.000000e+00> : vector<128xf32>
    %163 = vector.multi_reduction <add>, %162, %cst_157 [0] : vector<64x128xf32> to vector<128xf32>
    %164 = vector.shape_cast %163 : vector<128xf32> to vector<1x128xf32>
    %cst_158 = arith.constant 1.562500e-02 : f32
    %165 = vector.broadcast %cst_158 : f32 to vector<1x128xf32>
    %166 = arith.mulf %164, %165 : vector<1x128xf32>
    %167 = arith.mulf %162, %162 : vector<64x128xf32>
    %cst_159 = arith.constant dense<0.000000e+00> : vector<128xf32>
    %168 = vector.multi_reduction <add>, %167, %cst_159 [0] : vector<64x128xf32> to vector<128xf32>
    %169 = vector.shape_cast %168 : vector<128xf32> to vector<1x128xf32>
    %cst_160 = arith.constant 1.562500e-02 : f32
    %170 = vector.broadcast %cst_160 : f32 to vector<1x128xf32>
    %171 = arith.mulf %169, %170 : vector<1x128xf32>
    %172 = arith.mulf %166, %166 : vector<1x128xf32>
    %173 = arith.subf %171, %172 : vector<1x128xf32>
    %c0_161 = arith.constant 0 : index
    %c0_162 = arith.constant 0 : index
    %174 = vector.load %arg7[%c0_161, %c0_162] : memref<1x128xf32, #tpu.memory_space<vmem>>, vector<1x128xf32>
    %cst_163 = arith.constant 9.99999974E-6 : f32
    %175 = vector.broadcast %cst_163 : f32 to vector<1x128xf32>
    %176 = arith.addf %173, %175 : vector<1x128xf32>
    %177 = math.rsqrt %176 : vector<1x128xf32>
    %178 = arith.mulf %174, %177 : vector<1x128xf32>
    %c0_164 = arith.constant 0 : index
    %c0_165 = arith.constant 0 : index
    %179 = vector.load %arg8[%c0_164, %c0_165] : memref<1x128xf32, #tpu.memory_space<vmem>>, vector<1x128xf32>
    %180 = arith.mulf %166, %178 : vector<1x128xf32>
    %181 = arith.subf %179, %180 : vector<1x128xf32>
    %182 = vector.broadcast %178 : vector<1x128xf32> to vector<64x128xf32>
    %183 = arith.mulf %162, %182 : vector<64x128xf32>
    %184 = vector.broadcast %181 : vector<1x128xf32> to vector<64x128xf32>
    %185 = arith.addf %183, %184 : vector<64x128xf32>
    %c0_166 = arith.constant 0 : index
    %c0_167 = arith.constant 0 : index
    %c0_168 = arith.constant 0 : index
    %186 = vector.load %arg2[%c0_166, %c0_167, %c0_168] : memref<1x64x128xf32, #tpu.memory_space<vmem>>, vector<1x64x128xf32>
    %187 = vector.shape_cast %186 : vector<1x64x128xf32> to vector<64x128xf32>
    %188 = arith.addf %185, %187 : vector<64x128xf32>
    %c0_169 = arith.constant 0 : index
    %c0_170 = arith.constant 0 : index
    %c0_171 = arith.constant 0 : index
    %189 = vector.load %arg9[%c0_169, %c0_170, %c0_171] : memref<1x64x128xf32, #tpu.memory_space<vmem>>, vector<1x64x128xf32>
    %190 = vector.shape_cast %189 : vector<1x64x128xf32> to vector<64x128xf32>
    %191 = vector.shape_cast %188 : vector<64x128xf32> to vector<1x64x128xf32>
    tpu.vector_store %arg9[%c0_169, %c0_170, %c0_171], %191 {strides = array<i32>} : memref<1x64x128xf32, #tpu.memory_space<vmem>>, vector<1x64x128xf32>,
    return
  }
  func.func @transform_0(%arg0: i32) -> (i32, i32, i32, i32) {
    %c0_i32 = arith.constant 0 : i32
    %c0_i32_0 = arith.constant 0 : i32
    %c0_i32_1 = arith.constant 0 : i32
    %c0_i32_2 = arith.constant 0 : i32
    return %arg0, %c0_i32, %c0_i32_0, %c0_i32_1 : i32, i32, i32, i32
  }
  func.func @transform_1(%arg0: i32) -> (i32, i32, i32) {
    %c0_i32 = arith.constant 0 : i32
    %c0_i32_0 = arith.constant 0 : i32
    %c0_i32_1 = arith.constant 0 : i32
    return %arg0, %c0_i32, %c0_i32_0 : i32, i32, i32
  }
  func.func @transform_2(%arg0: i32) -> (i32, i32, i32) {
    %c0_i32 = arith.constant 0 : i32
    %c0_i32_0 = arith.constant 0 : i32
    %c0_i32_1 = arith.constant 0 : i32
    %c0_i32_2 = arith.constant 0 : i32
    return %c0_i32, %c0_i32_0, %c0_i32_1 : i32, i32, i32
  }
  func.func @transform_3(%arg0: i32) -> (i32, i32, i32) {
    %c0_i32 = arith.constant 0 : i32
    %c0_i32_0 = arith.constant 0 : i32
    %c0_i32_1 = arith.constant 0 : i32
    %c0_i32_2 = arith.constant 0 : i32
    return %c0_i32, %c0_i32_0, %c0_i32_1 : i32, i32, i32
  }
  func.func @transform_4(%arg0: i32) -> (i32, i32) {
    %c0_i32 = arith.constant 0 : i32
    %c0_i32_0 = arith.constant 0 : i32
    %c0_i32_1 = arith.constant 0 : i32
    return %c0_i32, %c0_i32_0 : i32, i32
  }
  func.func @transform_5(%arg0: i32) -> (i32, i32) {
    %c0_i32 = arith.constant 0 : i32
    %c0_i32_0 = arith.constant 0 : i32
    %c0_i32_1 = arith.constant 0 : i32
    return %c0_i32, %c0_i32_0 : i32, i32
  }
  func.func @transform_6(%arg0: i32) -> (i32, i32) {
    %c0_i32 = arith.constant 0 : i32
    %c0_i32_0 = arith.constant 0 : i32
    %c0_i32_1 = arith.constant 0 : i32
    return %c0_i32, %c0_i32_0 : i32, i32
  }
  func.func @transform_7(%arg0: i32) -> (i32, i32) {
    %c0_i32 = arith.constant 0 : i32
    %c0_i32_0 = arith.constant 0 : i32
    %c0_i32_1 = arith.constant 0 : i32
    return %c0_i32, %c0_i32_0 : i32, i32
  }
  func.func @transform_8(%arg0: i32) -> (i32, i32, i32) {
    %c0_i32 = arith.constant 0 : i32
    %c0_i32_0 = arith.constant 0 : i32
    %c0_i32_1 = arith.constant 0 : i32
    return %arg0, %c0_i32, %c0_i32_0 : i32, i32, i32
  }
}

</mosaic_0001>

<llo_original>
// kernel: res_layer_forward.1
$region0: #{res_layer_forward.1}
  #allocation0 [shape = 'u32[]', space=smem, size = 0x4, offset = 0x4, fixed_abs, tag = 'smem constant byte address 0x4 - core index']
  #allocation1 [shape = 'u32[144,128]{1,0:T(1,128)}', space=vmem, size = 0x12000, scoped, tag = 'internal scratch']
  #allocation2 [shape = 'f32[10,10,128]{2,1,0:T(8,128)}', space=vmem, size = 0x14000, scoped, tag = 'scratch operand']
  %s0 = inlined_call_operand.vmem [shape: bf16[2,10,10,128], index: 0, kind: input, shape index: {}]
  %s1 = inlined_call_operand.vmem [shape: f32[2,64,128], index: 1, kind: input, shape index: {}]
  %s2 = inlined_call_operand.vmem [shape: bf16[9,128,128], index: 2, kind: input, shape index: {}]
  %s3 = inlined_call_operand.vmem [shape: bf16[9,128,128], index: 3, kind: input, shape index: {}]
  %s4 = inlined_call_operand.vmem [shape: f32[1,128], index: 4, kind: input, shape index: {}]
  %s5 = inlined_call_operand.vmem [shape: f32[1,128], index: 5, kind: input, shape index: {}]
  %s6 = inlined_call_operand.vmem [shape: f32[1,128], index: 6, kind: input, shape index: {}]
  %s7 = inlined_call_operand.vmem [shape: f32[1,128], index: 7, kind: input, shape index: {}]
  %s8 = inlined_call_operand.hbm [shape: f32[2,64,128], index: 8, kind: output, shape index: {}]
  %s9 = sld [smem:[#allocation0]]
  $region65: #{res_layer_forward.1} parent=0
    _
  %s11 = ssub.s32 1, %s9
  %s12 = scalar_select 0, %s11, %s9
  $region1: #{res_layer_forward.1} parent=0
    #allocation3 [shape = 'u8[65536]{0}', space=vmem, size = 0x10000, scoped, tag = 'output window, operand 0']
    #allocation4 [shape = 's32[2]{0}', space=sflag, size = 0x8, scoped, tag = 'scoped memory for res_layer_forward.1']
    %13 = vsyncpa [#allocation4], 0
    %s14 = scalar_lea.sflag [#allocation4], 1
    %15 = vsyncpa %s14, 0
    loop: start=0, step=1, limit=4
    $region2: #{res_layer_forward.1} parent=1 // loop_pre_header
      _
    $region3: #{res_layer_forward.1} parent=1 // loop_header
      %s17 = sphi 0, %s21
      %p18 = scmp.ge.s32.totalorder %s17, 4
      %s27 = sphi 0, %s29
      %s30 = sphi 0, %s27
      %s31 = sphi 0, %s30
      %s47 = sphi 0, %s31
      %s53 = sphi 0, %s55
      %s56 = sphi 0, %s53
      %s57 = sphi 0, %s56
      %s73 = sphi 0, %s57
      %s77 = sphi 0, %s77
      %s79 = sphi 0, %s77
      %s80 = sphi 0, %s79
      %s94 = sphi 0, %s80
      %s98 = sphi 0, %s98
      %s100 = sphi 0, %s98
      %s101 = sphi 0, %s100
      %s115 = sphi 0, %s101
      %s119 = sphi 0, %s119
      %s121 = sphi 0, %s119
      %s122 = sphi 0, %s121
      %s136 = sphi 0, %s122
      %s140 = sphi 0, %s140
      %s142 = sphi 0, %s140
      %s143 = sphi 0, %s142
      %s157 = sphi 0, %s143
      %s161 = sphi 0, %s161
      %s163 = sphi 0, %s161
      %s164 = sphi 0, %s163
      %s178 = sphi 0, %s164
      %s182 = sphi 0, %s182
      %s184 = sphi 0, %s182
      %s185 = sphi 0, %s184
      %s199 = sphi 0, %s185
      %s205 = sphi 0, %s207
      %s208 = sphi 0, %s205
      %s209 = sphi 0, %s208
      %s225 = sphi 0, %s209
    $region4: #{res_layer_forward.1} parent=1 // loop_header_branch
      %20 = sbr.rel (%p18) target = $region8
    $region5: #{res_layer_forward.1} parent=1 // loop_body
      %s22 = ssub.s32 %s17, 1
      %s23 = ssub.s32 %s17, 2
      %s24 = sadd.s32 %s17, 1
      %s25 = ssub.s32 %s17, %s24
      %p26 = scmp.eq.s32.totalorder %s25, 0
      %s28 = sadd.s32 %s27, 1
      %s29 = scalar_select %p26, %s27, %s28
      %p32 = pneg %p26
      %p33 = scmp.eq.s32.totalorder %s17, 1
      %p34 = por %p32, %p33
      %p35 = scmp.ne.s32.totalorder %s27, %s30
      %p36 = scmp.eq.s32.totalorder %s17, 0
      %p37 = por %p35, %p36
      %p38 = scmp.ne.s32.totalorder %s27, %s30
      %p39 = scmp.eq.s32.totalorder %s22, 1
      %p40 = por %p38, %p39
      %p41 = scmp.ne.s32.totalorder %s30, %s31
      %p42 = scmp.eq.s32.totalorder %s22, 0
      %p43 = por %p41, %p42
      %p44 = scmp.ne.s32.totalorder %s30, %s31
      %p45 = scmp.eq.s32.totalorder %s23, 1
      %p46 = por %p44, %p45
      %p48 = scmp.ne.s32.totalorder %s31, %s47
      %p49 = scmp.eq.s32.totalorder %s23, 0
      %p50 = por %p48, %p49
      %s51 = ssub.s32 %s17, %s24
      %p52 = scmp.eq.s32.totalorder %s51, 0
      %s54 = sadd.s32 %s53, 1
      %s55 = scalar_select %p52, %s53, %s54
      %p58 = pneg %p52
      %p59 = scmp.eq.s32.totalorder %s17, 1
      %p60 = por %p58, %p59
      %p61 = scmp.ne.s32.totalorder %s53, %s56
      %p62 = scmp.eq.s32.totalorder %s17, 0
      %p63 = por %p61, %p62
      %p64 = scmp.ne.s32.totalorder %s53, %s56
      %p65 = scmp.eq.s32.totalorder %s22, 1
      %p66 = por %p64, %p65
      %p67 = scmp.ne.s32.totalorder %s56, %s57
      %p68 = scmp.eq.s32.totalorder %s22, 0
      %p69 = por %p67, %p68
      %p70 = scmp.ne.s32.totalorder %s56, %s57
      %p71 = scmp.eq.s32.totalorder %s23, 1
      %p72 = por %p70, %p71
      %p74 = scmp.ne.s32.totalorder %s57, %s73
      %p75 = scmp.eq.s32.totalorder %s23, 0
      %p76 = por %p74, %p75
      %s78 = sadd.s32 %s77, 1
      %p81 = scmp.eq.s32.totalorder %s17, 1
      %p82 = scmp.ne.s32.totalorder %s77, %s79
      %p83 = scmp.eq.s32.totalorder %s17, 0
      %p84 = por %p82, %p83
      %p85 = scmp.ne.s32.totalorder %s77, %s79
      %p86 = scmp.eq.s32.totalorder %s22, 1
      %p87 = por %p85, %p86
      %p88 = scmp.ne.s32.totalorder %s79, %s80
      %p89 = scmp.eq.s32.totalorder %s22, 0
      %p90 = por %p88, %p89
      %p91 = scmp.ne.s32.totalorder %s79, %s80
      %p92 = scmp.eq.s32.totalorder %s23, 1
      %p93 = por %p91, %p92
      %p95 = scmp.ne.s32.totalorder %s80, %s94
      %p96 = scmp.eq.s32.totalorder %s23, 0
      %p97 = por %p95, %p96
      %s99 = sadd.s32 %s98, 1
      %p102 = scmp.eq.s32.totalorder %s17, 1
      %p103 = scmp.ne.s32.totalorder %s98, %s100
      %p104 = scmp.eq.s32.totalorder %s17, 0
      %p105 = por %p103, %p104
      %p106 = scmp.ne.s32.totalorder %s98, %s100
      %p107 = scmp.eq.s32.totalorder %s22, 1
      %p108 = por %p106, %p107
      %p109 = scmp.ne.s32.totalorder %s100, %s101
      %p110 = scmp.eq.s32.totalorder %s22, 0
      %p111 = por %p109, %p110
      %p112 = scmp.ne.s32.totalorder %s100, %s101
      %p113 = scmp.eq.s32.totalorder %s23, 1
      %p114 = por %p112, %p113
      %p116 = scmp.ne.s32.totalorder %s101, %s115
      %p117 = scmp.eq.s32.totalorder %s23, 0
      %p118 = por %p116, %p117
      %s120 = sadd.s32 %s119, 1
      %p123 = scmp.eq.s32.totalorder %s17, 1
      %p124 = scmp.ne.s32.totalorder %s119, %s121
      %p125 = scmp.eq.s32.totalorder %s17, 0
      %p126 = por %p124, %p125
      %p127 = scmp.ne.s32.totalorder %s119, %s121
      %p128 = scmp.eq.s32.totalorder %s22, 1
      %p129 = por %p127, %p128
      %p130 = scmp.ne.s32.totalorder %s121, %s122
      %p131 = scmp.eq.s32.totalorder %s22, 0
      %p132 = por %p130, %p131
      %p133 = scmp.ne.s32.totalorder %s121, %s122
      %p134 = scmp.eq.s32.totalorder %s23, 1
      %p135 = por %p133, %p134
      %p137 = scmp.ne.s32.totalorder %s122, %s136
      %p138 = scmp.eq.s32.totalorder %s23, 0
      %p139 = por %p137, %p138
      %s141 = sadd.s32 %s140, 1
      %p144 = scmp.eq.s32.totalorder %s17, 1
      %p145 = scmp.ne.s32.totalorder %s140, %s142
      %p146 = scmp.eq.s32.totalorder %s17, 0
      %p147 = por %p145, %p146
      %p148 = scmp.ne.s32.totalorder %s140, %s142
      %p149 = scmp.eq.s32.totalorder %s22, 1
      %p150 = por %p148, %p149
      %p151 = scmp.ne.s32.totalorder %s142, %s143
      %p152 = scmp.eq.s32.totalorder %s22, 0
      %p153 = por %p151, %p152
      %p154 = scmp.ne.s32.totalorder %s142, %s143
      %p155 = scmp.eq.s32.totalorder %s23, 1
      %p156 = por %p154, %p155
      %p158 = scmp.ne.s32.totalorder %s143, %s157
      %p159 = scmp.eq.s32.totalorder %s23, 0
      %p160 = por %p158, %p159
      %s162 = sadd.s32 %s161, 1
      %p165 = scmp.eq.s32.totalorder %s17, 1
      %p166 = scmp.ne.s32.totalorder %s161, %s163
      %p167 = scmp.eq.s32.totalorder %s17, 0
      %p168 = por %p166, %p167
      %p169 = scmp.ne.s32.totalorder %s161, %s163
      %p170 = scmp.eq.s32.totalorder %s22, 1
      %p171 = por %p169, %p170
      %p172 = scmp.ne.s32.totalorder %s163, %s164
      %p173 = scmp.eq.s32.totalorder %s22, 0
      %p174 = por %p172, %p173
      %p175 = scmp.ne.s32.totalorder %s163, %s164
      %p176 = scmp.eq.s32.totalorder %s23, 1
      %p177 = por %p175, %p176
      %p179 = scmp.ne.s32.totalorder %s164, %s178
      %p180 = scmp.eq.s32.totalorder %s23, 0
      %p181 = por %p179, %p180
      %s183 = sadd.s32 %s182, 1
      %p186 = scmp.eq.s32.totalorder %s17, 1
      %p187 = scmp.ne.s32.totalorder %s182, %s184
      %p188 = scmp.eq.s32.totalorder %s17, 0
      %p189 = por %p187, %p188
      %p190 = scmp.ne.s32.totalorder %s182, %s184
      %p191 = scmp.eq.s32.totalorder %s22, 1
      %p192 = por %p190, %p191
      %p193 = scmp.ne.s32.totalorder %s184, %s185
      %p194 = scmp.eq.s32.totalorder %s22, 0
      %p195 = por %p193, %p194
      %p196 = scmp.ne.s32.totalorder %s184, %s185
      %p197 = scmp.eq.s32.totalorder %s23, 1
      %p198 = por %p196, %p197
      %p200 = scmp.ne.s32.totalorder %s185, %s199
      %p201 = scmp.eq.s32.totalorder %s23, 0
      %p202 = por %p200, %p201
      %s203 = ssub.s32 %s17, %s24
      %p204 = scmp.eq.s32.totalorder %s203, 0
      %s206 = sadd.s32 %s205, 1
      %s207 = scalar_select %p204, %s205, %s206
      %p210 = pneg %p204
      %p211 = scmp.eq.s32.totalorder %s17, 1
      %p212 = por %p210, %p211
      %p213 = scmp.ne.s32.totalorder %s205, %s208
      %p214 = scmp.eq.s32.totalorder %s17, 0
      %p215 = por %p213, %p214
      %p216 = scmp.ne.s32.totalorder %s205, %s208
      %p217 = scmp.eq.s32.totalorder %s22, 1
      %p218 = por %p216, %p217
      %p219 = scmp.ne.s32.totalorder %s208, %s209
      %p220 = scmp.eq.s32.totalorder %s22, 0
      %p221 = por %p219, %p220
      %p222 = scmp.ne.s32.totalorder %s208, %s209
      %p223 = scmp.eq.s32.totalorder %s23, 1
      %p224 = por %p222, %p223
      %p226 = scmp.ne.s32.totalorder %s209, %s225
      %p227 = scmp.eq.s32.totalorder %s23, 0
      %p228 = por %p226, %p227
      %p229 = scmp.le.s32.totalorder 1, %s17
      %p230 = scmp.lt.s32.totalorder %s17, 3
      %p231 = pnand %p229, %p230
      %p232 = pneg %p231
      // Predicated region
      $region9: #{res_layer_forward.1} parent=5 // pred_check
        _
      $region10: #{res_layer_forward.1} parent=5 // pred_check_branch
        %234 = sbr.rel (%p231) target = $region12
      $region11: #{res_layer_forward.1} parent=5 // pred_region
        %s235 = ssub.s32 %s17, 1
        // Predicated region
        $region13: #{res_layer_forward.1} parent=11 // pred_check
          %p236 = pneg %p90
        $region14: #{res_layer_forward.1} parent=11 // pred_check_branch
          %238 = sbr.rel (%p236) target = $region16
        $region15: #{res_layer_forward.1} parent=11 // pred_region
          _
        $region16: #{res_layer_forward.1} parent=11 // pred_fallthru
          _
        // Predicated region
        $region17: #{res_layer_forward.1} parent=11 // pred_check
          %p239 = pneg %p111
        $region18: #{res_layer_forward.1} parent=11 // pred_check_branch
          %241 = sbr.rel (%p239) target = $region20
        $region19: #{res_layer_forward.1} parent=11 // pred_region
          _
        $region20: #{res_layer_forward.1} parent=11 // pred_fallthru
          _
        // Predicated region
        $region21: #{res_layer_forward.1} parent=11 // pred_check
          %p242 = pneg %p132
        $region22: #{res_layer_forward.1} parent=11 // pred_check_branch
          %244 = sbr.rel (%p242) target = $region24
        $region23: #{res_layer_forward.1} parent=11 // pred_region
          _
        $region24: #{res_layer_forward.1} parent=11 // pred_fallthru
          _
        // Predicated region
        $region25: #{res_layer_forward.1} parent=11 // pred_check
          %p245 = pneg %p153
        $region26: #{res_layer_forward.1} parent=11 // pred_check_branch
          %247 = sbr.rel (%p245) target = $region28
        $region27: #{res_layer_forward.1} parent=11 // pred_region
          _
        $region28: #{res_layer_forward.1} parent=11 // pred_fallthru
          _
        // Predicated region
        $region29: #{res_layer_forward.1} parent=11 // pred_check
          %p248 = pneg %p174
        $region30: #{res_layer_forward.1} parent=11 // pred_check_branch
          %250 = sbr.rel (%p248) target = $region32
        $region31: #{res_layer_forward.1} parent=11 // pred_region
          _
        $region32: #{res_layer_forward.1} parent=11 // pred_fallthru
          _
        // Predicated region
        $region33: #{res_layer_forward.1} parent=11 // pred_check
          %p251 = pneg %p195
        $region34: #{res_layer_forward.1} parent=11 // pred_check_branch
          %253 = sbr.rel (%p251) target = $region36
        $region35: #{res_layer_forward.1} parent=11 // pred_region
          _
        $region36: #{res_layer_forward.1} parent=11 // pred_fallthru
          _
      $region12: #{res_layer_forward.1} parent=5 // pred_fallthru
        _
      %p254 = scmp.lt.s32.totalorder %s17, 2
      // Predicated region
      $region37: #{res_layer_forward.1} parent=5 // pred_check
        %p255 = pneg %p254
      $region38: #{res_layer_forward.1} parent=5 // pred_check_branch
        %257 = sbr.rel (%p255) target = $region40
      $region39: #{res_layer_forward.1} parent=5 // pred_region
        // Predicated region
        $region41: #{res_layer_forward.1} parent=39 // pred_check
          %p258 = pneg %p37
        $region42: #{res_layer_forward.1} parent=39 // pred_check_branch
          %260 = sbr.rel (%p258) target = $region44
        $region43: #{res_layer_forward.1} parent=39 // pred_region
          %p261 = scmp.lt.s32.totalorder %s17, 1
          %s262 = scalar_select %p261, %s17, 1
          %s263 = smul.addr %s262, 20
          %s264 = smul.addr %s263, 4
          %s265 = scalar_lea.vmem %s0, %s264
        $region44: #{res_layer_forward.1} parent=39 // pred_fallthru
          _
        // Predicated region
        $region45: #{res_layer_forward.1} parent=39 // pred_check
          %p266 = pneg %p63
        $region46: #{res_layer_forward.1} parent=39 // pred_check_branch
          %268 = sbr.rel (%p266) target = $region48
        $region47: #{res_layer_forward.1} parent=39 // pred_region
          %p269 = scmp.lt.s32.totalorder %s17, 1
          %s270 = scalar_select %p269, %s17, 1
          %s271 = smul.addr %s270, 8
          %s272 = smul.addr %s271, 8
          %s273 = scalar_lea.vmem %s1, %s272
        $region48: #{res_layer_forward.1} parent=39 // pred_fallthru
          _
      $region40: #{res_layer_forward.1} parent=5 // pred_fallthru
        _
      %p274 = scmp.le.s32.totalorder 1, %s17
      %p275 = scmp.lt.s32.totalorder %s17, 3
      %p276 = pnand %p274, %p275
      %p277 = pneg %p276
      // Predicated region
      $region49: #{res_layer_forward.1} parent=5 // pred_check
        _
      $region50: #{res_layer_forward.1} parent=5 // pred_check_branch
        %279 = sbr.rel (%p276) target = $region52
      $region51: #{res_layer_forward.1} parent=5 // pred_region
        %s280 = ssub.s32 %s17, 1
        %p281 = scmp.lt.s32.totalorder %s22, 1
        %s282 = scalar_select %p281, %s22, 1
        %s283 = smul.addr %s282, 20
        %s284 = smul.addr %s283, 4
        %s285 = scalar_lea.vmem %s0, %s284
        %p286 = pneg %p43
        %p287 = pneg %p40
        %p288 = scmp.lt.s32.totalorder %s22, 1
        %s289 = scalar_select %p288, %s22, 1
        %s290 = smul.addr %s289, 8
        %s291 = smul.addr %s290, 8
        %s292 = scalar_lea.vmem %s1, %s291
        %p293 = pneg %p69
        %p294 = pneg %p66
        %p295 = pneg %p90
        %p296 = pneg %p87
        %p297 = pneg %p111
        %p298 = pneg %p108
        %p299 = pneg %p132
        %p300 = pneg %p129
        %p301 = pneg %p153
        %p302 = pneg %p150
        %p303 = pneg %p174
        %p304 = pneg %p171
        %p305 = pneg %p195
        %p306 = pneg %p192
        %p307 = pneg %p221
        %p308 = pneg %p218
        %s309 = sand.u32 %s208, 1
        %s310 = scalar_lea.sflag [#allocation4], %s309
        %s311 = sand.u32 %s208, 1
        %s312 = smul.addr %s311, 64
        %s313 = scalar_lea.vmem [#allocation3], %s312
        %p314 = scmp.lt.s32.totalorder %s22, 1
        %s315 = scalar_select %p314, %s22, 1
        %s316 = smul.addr %s315, 20
        %s317 = smul.addr %s316, 4
        %s318 = scalar_lea.vmem %s0, %s317
        %p319 = scmp.lt.s32.totalorder %s22, 1
        %s320 = scalar_select %p319, %s22, 1
        %s321 = smul.addr %s320, 8
        %s322 = smul.addr %s321, 8
        %s323 = scalar_lea.vmem %s1, %s322
        %v325 = vld [vmem:[%s318] sm:$0xf]
        %v326 = vld [vmem:[%s318 + $0x8] sm:$0xf]
        %v327 = vld [vmem:[%s318 + $0x10] sm:$0xf]
        %v328 = vld [vmem:[%s318 + $0x18] sm:$0xf]
        %v329 = vld [vmem:[%s318 + $0x20] sm:$0xf]
        %v330 = vld [vmem:[%s318 + $0x28] sm:$0xf]
        %v331 = vld [vmem:[%s318 + $0x30] sm:$0xf]
        %v332 = vld [vmem:[%s318 + $0x38] sm:$0xf]
        %v333 = vld [vmem:[%s2] sm:$0xf]
        %v334 = vld [vmem:[%s2 + $0x4] sm:$0xf]
        %v335 = vld [vmem:[%s2 + $0x8] sm:$0xf]
        %v336 = vld [vmem:[%s2 + $0xc] sm:$0xf]
        %v337 = vld [vmem:[%s2 + $0x10] sm:$0xf]
        %v338 = vld [vmem:[%s2 + $0x14] sm:$0xf]
        %v339 = vld [vmem:[%s2 + $0x18] sm:$0xf]
        %v340 = vld [vmem:[%s2 + $0x1c] sm:$0xf]
        %v341 = vld [vmem:[%s2 + $0x20] sm:$0xf]
        %v342 = vld [vmem:[%s2 + $0x24] sm:$0xf]
        %v343 = vld [vmem:[%s2 + $0x28] sm:$0xf]
        %v344 = vld [vmem:[%s2 + $0x2c] sm:$0xf]
        %v345 = vld [vmem:[%s2 + $0x30] sm:$0xf]
        %v346 = vld [vmem:[%s2 + $0x34] sm:$0xf]
        %v347 = vld [vmem:[%s2 + $0x38] sm:$0xf]
        %v348 = vld [vmem:[%s2 + $0x3c] sm:$0xf]
        %v349 = vld [vmem:[%s318 + $0x4] sm:$0x1]
        %v350 = vld [vmem:[%s318 + $0xc] sm:$0x1]
        %v351 = vld [vmem:[%s318 + $0x14] sm:$0x1]
        %v352 = vld [vmem:[%s318 + $0x1c] sm:$0x1]
        %v353 = vld [vmem:[%s318 + $0x24] sm:$0x1]
        %v354 = vld [vmem:[%s318 + $0x2c] sm:$0x1]
        %v355 = vld [vmem:[%s318 + $0x34] sm:$0x1]
        %v356 = vld [vmem:[%s318 + $0x3c] sm:$0x1]
        %vm357 = vsmask.f32 3328
        %vm358 = vsmask.f32 7440
        %vm359 = vmor %vm357, %vm358
        %v361 = vshrl.u32 %v325, 16
        %v363 = vrot.slane %v361, 4
        %v364 = vshll.u32 %v325, 16
        %v366 = vrot.slane %v364, 5
        %v367 = vor.u32 %v363, %v366
        %v368 = vrot.slane %v367, 4
        %v370 = vshll.u32 %v349, 16
        %v372 = vrot.slane %v370, 5
        %v373 = vsel %vm359, %v368, %v372
        %v375 = vshrl.u32 %v326, 16
        %v377 = vrot.slane %v375, 4
        %v378 = vshll.u32 %v326, 16
        %v380 = vrot.slane %v378, 5
        %v381 = vor.u32 %v377, %v380
        %v382 = vrot.slane %v381, 4
        %v384 = vshll.u32 %v350, 16
        %v386 = vrot.slane %v384, 5
        %v387 = vsel %vm359, %v382, %v386
        %v389 = vshrl.u32 %v327, 16
        %v391 = vrot.slane %v389, 4
        %v392 = vshll.u32 %v327, 16
        %v394 = vrot.slane %v392, 5
        %v395 = vor.u32 %v391, %v394
        %v396 = vrot.slane %v395, 4
        %v398 = vshll.u32 %v351, 16
        %v400 = vrot.slane %v398, 5
        %v401 = vsel %vm359, %v396, %v400
        %v403 = vshrl.u32 %v328, 16
        %v405 = vrot.slane %v403, 4
        %v406 = vshll.u32 %v328, 16
        %v408 = vrot.slane %v406, 5
        %v409 = vor.u32 %v405, %v408
        %v410 = vrot.slane %v409, 4
        %v412 = vshll.u32 %v352, 16
        %v414 = vrot.slane %v412, 5
        %v415 = vsel %vm359, %v410, %v414
        %v417 = vshrl.u32 %v329, 16
        %v419 = vrot.slane %v417, 4
        %v420 = vshll.u32 %v329, 16
        %v422 = vrot.slane %v420, 5
        %v423 = vor.u32 %v419, %v422
        %v424 = vrot.slane %v423, 4
        %v426 = vshll.u32 %v353, 16
        %v428 = vrot.slane %v426, 5
        %v429 = vsel %vm359, %v424, %v428
        %v431 = vshrl.u32 %v330, 16
        %v433 = vrot.slane %v431, 4
        %v434 = vshll.u32 %v330, 16
        %v436 = vrot.slane %v434, 5
        %v437 = vor.u32 %v433, %v436
        %v438 = vrot.slane %v437, 4
        %v440 = vshll.u32 %v354, 16
        %v442 = vrot.slane %v440, 5
        %v443 = vsel %vm359, %v438, %v442
        %v445 = vshrl.u32 %v331, 16
        %v447 = vrot.slane %v445, 4
        %v448 = vshll.u32 %v331, 16
        %v450 = vrot.slane %v448, 5
        %v451 = vor.u32 %v447, %v450
        %v452 = vrot.slane %v451, 4
        %v454 = vshll.u32 %v355, 16
        %v456 = vrot.slane %v454, 5
        %v457 = vsel %vm359, %v452, %v456
        %v459 = vshrl.u32 %v332, 16
        %v461 = vrot.slane %v459, 4
        %v462 = vshll.u32 %v332, 16
        %v464 = vrot.slane %v462, 5
        %v465 = vor.u32 %v461, %v464
        %v466 = vrot.slane %v465, 4
        %v468 = vshll.u32 %v356, 16
        %v470 = vrot.slane %v468, 5
        %v471 = vsel %vm359, %v466, %v470
        %s472 = scalar_lea.vmem %s2, 64
        %v473 = vld [vmem:[%s472] sm:$0xf]
        %v474 = vld [vmem:[%s472 + $0x4] sm:$0xf]
        %v475 = vld [vmem:[%s472 + $0x8] sm:$0xf]
        %v476 = vld [vmem:[%s472 + $0xc] sm:$0xf]
        %v477 = vld [vmem:[%s472 + $0x10] sm:$0xf]
        %v478 = vld [vmem:[%s472 + $0x14] sm:$0xf]
        %v479 = vld [vmem:[%s472 + $0x18] sm:$0xf]
        %v480 = vld [vmem:[%s472 + $0x1c] sm:$0xf]
        %v481 = vld [vmem:[%s472 + $0x20] sm:$0xf]
        %v482 = vld [vmem:[%s472 + $0x24] sm:$0xf]
        %v483 = vld [vmem:[%s472 + $0x28] sm:$0xf]
        %v484 = vld [vmem:[%s472 + $0x2c] sm:$0xf]
        %v485 = vld [vmem:[%s472 + $0x30] sm:$0xf]
        %v486 = vld [vmem:[%s472 + $0x34] sm:$0xf]
        %v487 = vld [vmem:[%s472 + $0x38] sm:$0xf]
        %v488 = vld [vmem:[%s472 + $0x3c] sm:$0xf]
        %v489 = vunpack.c.l.b16 %v373
        %v490 = vunpack.c.l.b16 %v387
        %v491 = vunpack.c.l.b16 %v401
        %v492 = vunpack.c.l.b16 %v415
        %v493 = vunpack.c.l.b16 %v429
        %v494 = vunpack.c.l.b16 %v443
        %v495 = vunpack.c.l.b16 %v457
        %v496 = vunpack.c.l.b16 %v471
        %v497 = vpack.c.b16 %v490, %v489
        %v498 = vpack.c.b16 %v492, %v491
        %v499 = vpack.c.b16 %v494, %v493
        %v500 = vpack.c.b16 %v496, %v495
        %v521 = vunpack.c.l.b16 %v473
        %v522 = vunpack.c.l.b16 %v474
        %v523 = vunpack.c.l.b16 %v475
        %v524 = vunpack.c.l.b16 %v476
        %v525 = vunpack.c.l.b16 %v477
        %v526 = vunpack.c.l.b16 %v478
        %v527 = vunpack.c.l.b16 %v479
        %v528 = vunpack.c.l.b16 %v480
        %v529 = vunpack.c.l.b16 %v481
        %v530 = vunpack.c.l.b16 %v482
        %v531 = vunpack.c.l.b16 %v483
        %v532 = vunpack.c.l.b16 %v484
        %v533 = vunpack.c.l.b16 %v485
        %v534 = vunpack.c.l.b16 %v486
        %v535 = vunpack.c.l.b16 %v487
        %v536 = vunpack.c.l.b16 %v488
        %v537 = vpack.c.b16 %v522, %v521
        %v538 = vpack.c.b16 %v524, %v523
        %v539 = vpack.c.b16 %v526, %v525
        %v540 = vpack.c.b16 %v528, %v527
        %v541 = vpack.c.b16 %v530, %v529
        %v542 = vpack.c.b16 %v532, %v531
        %v543 = vpack.c.b16 %v534, %v533
        %v544 = vpack.c.b16 %v536, %v535
        %553 = vmatprep.subr.bf16.mxu0 0
        %554 = vmatpush1.bf16.msra.mxu0 %v537
        %555 = vmatprep.subr.bf16.mxu0 0
        %556 = vmatpush1.bf16.msra.mxu0 %v538
        %557 = vmatprep.subr.bf16.mxu0 0
        %558 = vmatpush1.bf16.msra.mxu0 %v539
        %559 = vmatprep.subr.bf16.mxu0 0
        %560 = vmatpush1.bf16.msra.mxu0 %v540
        %561 = vmatprep.subr.bf16.mxu0 0
        %562 = vmatpush1.bf16.msra.mxu0 %v541
        %563 = vmatprep.subr.bf16.mxu0 0
        %564 = vmatpush1.bf16.msra.mxu0 %v542
        %565 = vmatprep.subr.bf16.mxu0 0
        %566 = vmatpush1.bf16.msra.mxu0 %v543
        %567 = vmatprep.subr.bf16.mxu0 0
        %568 = vmatpush1.bf16.msra.mxu0 %v544
        %569 = vmatprep.subr.bf16.mxu0 0
        %570 = vmatpush1.bf16.msra.mxu0 0
        %571 = vmatprep.subr.bf16.mxu0 0
        %572 = vmatpush1.bf16.msra.mxu0 0
        %573 = vmatprep.subr.bf16.mxu0 0
        %574 = vmatpush1.bf16.msra.mxu0 0
        %575 = vmatprep.subr.bf16.mxu0 0
        %576 = vmatpush1.bf16.msra.mxu0 0
        %577 = vmatprep.subr.bf16.mxu0 0
        %578 = vmatpush1.bf16.msra.mxu0 0
        %579 = vmatprep.subr.bf16.mxu0 0
        %580 = vmatpush1.bf16.msra.mxu0 0
        %581 = vmatprep.subr.bf16.mxu0 0
        %582 = vmatpush1.bf16.msra.mxu0 0
        %583 = vmatprep.subr.bf16.mxu0 0
        %584 = vmatpush1.bf16.msra.mxu0 0
        %585 = vmatprep.mubr.bf16.mxu0 0
        %586 = vmatmul.mubr.bf16.gmra.mrb[0].mxu0 %v497
        %v587 = vpop.f32.mrb[0].mxu0
        %v588 = vadd.f32 0.0, %v587
        %v589 = vpop.f32.mrb[0].mxu0
        %v590 = vpop.f32.mrb[0].mxu0
        %v591 = vadd.f32 0.0, %v590
        %v592 = vpop.f32.mrb[0].mxu0
        %593 = vmatprep.mubr.bf16.mxu0 0
        %594 = vmatmul.mubr.bf16.gmra.mrb[0].mxu0 %v498
        %v595 = vpop.f32.mrb[0].mxu0
        %v596 = vadd.f32 0.0, %v595
        %v597 = vpop.f32.mrb[0].mxu0
        %v598 = vpop.f32.mrb[0].mxu0
        %v599 = vadd.f32 0.0, %v598
        %v600 = vpop.f32.mrb[0].mxu0
        %601 = vmatprep.mubr.bf16.mxu0 0
        %602 = vmatmul.mubr.bf16.gmra.mrb[0].mxu0 %v499
        %v603 = vpop.f32.mrb[0].mxu0
        %v604 = vadd.f32 0.0, %v603
        %v605 = vpop.f32.mrb[0].mxu0
        %v606 = vpop.f32.mrb[0].mxu0
        %v607 = vadd.f32 0.0, %v606
        %v608 = vpop.f32.mrb[0].mxu0
        %609 = vmatprep.mubr.bf16.mxu0 0
        %610 = vmatmul.mubr.bf16.gmra.mrb[0].mxu0 %v500
        %v611 = vpop.f32.mrb[0].mxu0
        %v612 = vadd.f32 0.0, %v611
        %v613 = vpop.f32.mrb[0].mxu0
        %v614 = vpop.f32.mrb[0].mxu0
        %v615 = vadd.f32 0.0, %v614
        %v616 = vpop.f32.mrb[0].mxu0
        %617 = vdwg.mxu0
        %v626 = vunpack.c.l.b16 %v325
        %v627 = vunpack.c.l.b16 %v326
        %v628 = vunpack.c.l.b16 %v327
        %v629 = vunpack.c.l.b16 %v328
        %v630 = vunpack.c.l.b16 %v329
        %v631 = vunpack.c.l.b16 %v330
        %v632 = vunpack.c.l.b16 %v331
        %v633 = vunpack.c.l.b16 %v332
        %v634 = vpack.c.b16 %v627, %v626
        %v635 = vpack.c.b16 %v629, %v628
        %v636 = vpack.c.b16 %v631, %v630
        %v637 = vpack.c.b16 %v633, %v632
        %v658 = vunpack.c.l.b16 %v333
        %v659 = vunpack.c.l.b16 %v334
        %v660 = vunpack.c.l.b16 %v335
        %v661 = vunpack.c.l.b16 %v336
        %v662 = vunpack.c.l.b16 %v337
        %v663 = vunpack.c.l.b16 %v338
        %v664 = vunpack.c.l.b16 %v339
        %v665 = vunpack.c.l.b16 %v340
        %v666 = vunpack.c.l.b16 %v341
        %v667 = vunpack.c.l.b16 %v342
        %v668 = vunpack.c.l.b16 %v343
        %v669 = vunpack.c.l.b16 %v344
        %v670 = vunpack.c.l.b16 %v345
        %v671 = vunpack.c.l.b16 %v346
        %v672 = vunpack.c.l.b16 %v347
        %v673 = vunpack.c.l.b16 %v348
        %v674 = vpack.c.b16 %v659, %v658
        %v675 = vpack.c.b16 %v661, %v660
        %v676 = vpack.c.b16 %v663, %v662
        %v677 = vpack.c.b16 %v665, %v664
        %v678 = vpack.c.b16 %v667, %v666
        %v679 = vpack.c.b16 %v669, %v668
        %v680 = vpack.c.b16 %v671, %v670
        %v681 = vpack.c.b16 %v673, %v672
        %690 = vmatprep.subr.bf16.mxu0 0
        %691 = vmatpush1.bf16.msra.mxu0 %v674
        %692 = vmatprep.subr.bf16.mxu0 0
        %693 = vmatpush1.bf16.msra.mxu0 %v675
        %694 = vmatprep.subr.bf16.mxu0 0
        %695 = vmatpush1.bf16.msra.mxu0 %v676
        %696 = vmatprep.subr.bf16.mxu0 0
        %697 = vmatpush1.bf16.msra.mxu0 %v677
        %698 = vmatprep.subr.bf16.mxu0 0
        %699 = vmatpush1.bf16.msra.mxu0 %v678
        %700 = vmatprep.subr.bf16.mxu0 0
        %701 = vmatpush1.bf16.msra.mxu0 %v679
        %702 = vmatprep.subr.bf16.mxu0 0
        %703 = vmatpush1.bf16.msra.mxu0 %v680
        %704 = vmatprep.subr.bf16.mxu0 0
        %705 = vmatpush1.bf16.msra.mxu0 %v681
        %706 = vmatprep.subr.bf16.mxu0 0
        %707 = vmatpush1.bf16.msra.mxu0 0
        %708 = vmatprep.subr.bf16.mxu0 0
        %709 = vmatpush1.bf16.msra.mxu0 0
        %710 = vmatprep.subr.bf16.mxu0 0
        %711 = vmatpush1.bf16.msra.mxu0 0
        %712 = vmatprep.subr.bf16.mxu0 0
        %713 = vmatpush1.bf16.msra.mxu0 0
        %714 = vmatprep.subr.bf16.mxu0 0
        %715 = vmatpush1.bf16.msra.mxu0 0
        %716 = vmatprep.subr.bf16.mxu0 0
        %717 = vmatpush1.bf16.msra.mxu0 0
        %718 = vmatprep.subr.bf16.mxu0 0
        %719 = vmatpush1.bf16.msra.mxu0 0
        %720 = vmatprep.subr.bf16.mxu0 0
        %721 = vmatpush1.bf16.msra.mxu0 0
        %722 = vmatprep.mubr.bf16.mxu0 0
        %723 = vmatmul.mubr.bf16.gmra.mrb[0].mxu0 %v634
        %v724 = vpop.f32.mrb[0].mxu0
        %v725 = vadd.f32 %v588, %v724
        %v726 = vpop.f32.mrb[0].mxu0
        %v727 = vpop.f32.mrb[0].mxu0
        %v728 = vadd.f32 %v591, %v727
        %v729 = vpop.f32.mrb[0].mxu0
        %730 = vmatprep.mubr.bf16.mxu0 0
        %731 = vmatmul.mubr.bf16.gmra.mrb[0].mxu0 %v635
        %v732 = vpop.f32.mrb[0].mxu0
        %v733 = vadd.f32 %v596, %v732
        %v734 = vpop.f32.mrb[0].mxu0
        %v735 = vpop.f32.mrb[0].mxu0
        %v736 = vadd.f32 %v599, %v735
        %v737 = vpop.f32.mrb[0].mxu0
        %738 = vmatprep.mubr.bf16.mxu0 0
        %739 = vmatmul.mubr.bf16.gmra.mrb[0].mxu0 %v636
        %v740 = vpop.f32.mrb[0].mxu0
        %v741 = vadd.f32 %v604, %v740
        %v742 = vpop.f32.mrb[0].mxu0
        %v743 = vpop.f32.mrb[0].mxu0
        %v744 = vadd.f32 %v607, %v743
        %v745 = vpop.f32.mrb[0].mxu0
        %746 = vmatprep.mubr.bf16.mxu0 0
        %747 = vmatmul.mubr.bf16.gmra.mrb[0].mxu0 %v637
        %v748 = vpop.f32.mrb[0].mxu0
        %v749 = vadd.f32 %v612, %v748
        %v750 = vpop.f32.mrb[0].mxu0
        %v751 = vpop.f32.mrb[0].mxu0
        %v752 = vadd.f32 %v615, %v751
        %v753 = vpop.f32.mrb[0].mxu0
        %754 = vdwg.mxu0
        %v755 = vld [vmem:[%s318] sm:$0xe]
        %v756 = vld [vmem:[%s318 + $0x8] sm:$0xe]
        %v757 = vld [vmem:[%s318 + $0x10] sm:$0xe]
        %v758 = vld [vmem:[%s318 + $0x18] sm:$0xe]
        %v759 = vld [vmem:[%s318 + $0x20] sm:$0xe]
        %v760 = vld [vmem:[%s318 + $0x28] sm:$0xe]
        %v761 = vld [vmem:[%s318 + $0x30] sm:$0xe]
        %v762 = vld [vmem:[%s318 + $0x38] sm:$0xe]
        %vm779 = vcmask 1042432
        %vm780 = vcmask 1046532
        %vm781 = vmor %vm779, %vm780
        %v782 = vrot.slane %v755, 5
        %v783 = vrot.slane %v782, 4
        %v784 = vrot.slane %v349, 5
        %v785 = vsel %vm781, %v783, %v784
        %v786 = vrot.slane %v756, 5
        %v787 = vrot.slane %v786, 4
        %v788 = vrot.slane %v350, 5
        %v789 = vsel %vm781, %v787, %v788
        %v790 = vrot.slane %v757, 5
        %v791 = vrot.slane %v790, 4
        %v792 = vrot.slane %v351, 5
        %v793 = vsel %vm781, %v791, %v792
        %v794 = vrot.slane %v758, 5
        %v795 = vrot.slane %v794, 4
        %v796 = vrot.slane %v352, 5
        %v797 = vsel %vm781, %v795, %v796
        %v798 = vrot.slane %v759, 5
        %v799 = vrot.slane %v798, 4
        %v800 = vrot.slane %v353, 5
        %v801 = vsel %vm781, %v799, %v800
        %v802 = vrot.slane %v760, 5
        %v803 = vrot.slane %v802, 4
        %v804 = vrot.slane %v354, 5
        %v805 = vsel %vm781, %v803, %v804
        %v806 = vrot.slane %v761, 5
        %v807 = vrot.slane %v806, 4
        %v808 = vrot.slane %v355, 5
        %v809 = vsel %vm781, %v807, %v808
        %v810 = vrot.slane %v762, 5
        %v811 = vrot.slane %v810, 4
        %v812 = vrot.slane %v356, 5
        %v813 = vsel %vm781, %v811, %v812
        %s814 = scalar_lea.vmem %s2, 128
        %v815 = vld [vmem:[%s814] sm:$0xf]
        %v816 = vld [vmem:[%s814 + $0x4] sm:$0xf]
        %v817 = vld [vmem:[%s814 + $0x8] sm:$0xf]
        %v818 = vld [vmem:[%s814 + $0xc] sm:$0xf]
        %v819 = vld [vmem:[%s814 + $0x10] sm:$0xf]
        %v820 = vld [vmem:[%s814 + $0x14] sm:$0xf]
        %v821 = vld [vmem:[%s814 + $0x18] sm:$0xf]
        %v822 = vld [vmem:[%s814 + $0x1c] sm:$0xf]
        %v823 = vld [vmem:[%s814 + $0x20] sm:$0xf]
        %v824 = vld [vmem:[%s814 + $0x24] sm:$0xf]
        %v825 = vld [vmem:[%s814 + $0x28] sm:$0xf]
        %v826 = vld [vmem:[%s814 + $0x2c] sm:$0xf]
        %v827 = vld [vmem:[%s814 + $0x30] sm:$0xf]
        %v828 = vld [vmem:[%s814 + $0x34] sm:$0xf]
        %v829 = vld [vmem:[%s814 + $0x38] sm:$0xf]
        %v830 = vld [vmem:[%s814 + $0x3c] sm:$0xf]
        %v831 = vunpack.c.l.b16 %v785
        %v832 = vunpack.c.l.b16 %v789
        %v833 = vunpack.c.l.b16 %v793
        %v834 = vunpack.c.l.b16 %v797
        %v835 = vunpack.c.l.b16 %v801
        %v836 = vunpack.c.l.b16 %v805
        %v837 = vunpack.c.l.b16 %v809
        %v838 = vunpack.c.l.b16 %v813
        %v839 = vpack.c.b16 %v832, %v831
        %v840 = vpack.c.b16 %v834, %v833
        %v841 = vpack.c.b16 %v836, %v835
        %v842 = vpack.c.b16 %v838, %v837
        %v863 = vunpack.c.l.b16 %v815
        %v864 = vunpack.c.l.b16 %v816
        %v865 = vunpack.c.l.b16 %v817
        %v866 = vunpack.c.l.b16 %v818
        %v867 = vunpack.c.l.b16 %v819
        %v868 = vunpack.c.l.b16 %v820
        %v869 = vunpack.c.l.b16 %v821
        %v870 = vunpack.c.l.b16 %v822
        %v871 = vunpack.c.l.b16 %v823
        %v872 = vunpack.c.l.b16 %v824
        %v873 = vunpack.c.l.b16 %v825
        %v874 = vunpack.c.l.b16 %v826
        %v875 = vunpack.c.l.b16 %v827
        %v876 = vunpack.c.l.b16 %v828
        %v877 = vunpack.c.l.b16 %v829
        %v878 = vunpack.c.l.b16 %v830
        %v879 = vpack.c.b16 %v864, %v863
        %v880 = vpack.c.b16 %v866, %v865
        %v881 = vpack.c.b16 %v868, %v867
        %v882 = vpack.c.b16 %v870, %v869
        %v883 = vpack.c.b16 %v872, %v871
        %v884 = vpack.c.b16 %v874, %v873
        %v885 = vpack.c.b16 %v876, %v875
        %v886 = vpack.c.b16 %v878, %v877
        %895 = vmatprep.subr.bf16.mxu0 0
        %896 = vmatpush1.bf16.msra.mxu0 %v879
        %897 = vmatprep.subr.bf16.mxu0 0
        %898 = vmatpush1.bf16.msra.mxu0 %v880
        %899 = vmatprep.subr.bf16.mxu0 0
        %900 = vmatpush1.bf16.msra.mxu0 %v881
        %901 = vmatprep.subr.bf16.mxu0 0
        %902 = vmatpush1.bf16.msra.mxu0 %v882
        %903 = vmatprep.subr.bf16.mxu0 0
        %904 = vmatpush1.bf16.msra.mxu0 %v883
        %905 = vmatprep.subr.bf16.mxu0 0
        %906 = vmatpush1.bf16.msra.mxu0 %v884
        %907 = vmatprep.subr.bf16.mxu0 0
        %908 = vmatpush1.bf16.msra.mxu0 %v885
        %909 = vmatprep.subr.bf16.mxu0 0
        %910 = vmatpush1.bf16.msra.mxu0 %v886
        %911 = vmatprep.subr.bf16.mxu0 0
        %912 = vmatpush1.bf16.msra.mxu0 0
        %913 = vmatprep.subr.bf16.mxu0 0
        %914 = vmatpush1.bf16.msra.mxu0 0
        %915 = vmatprep.subr.bf16.mxu0 0
        %916 = vmatpush1.bf16.msra.mxu0 0
        %917 = vmatprep.subr.bf16.mxu0 0
        %918 = vmatpush1.bf16.msra.mxu0 0
        %919 = vmatprep.subr.bf16.mxu0 0
        %920 = vmatpush1.bf16.msra.mxu0 0
        %921 = vmatprep.subr.bf16.mxu0 0
        %922 = vmatpush1.bf16.msra.mxu0 0
        %923 = vmatprep.subr.bf16.mxu0 0
        %924 = vmatpush1.bf16.msra.mxu0 0
        %925 = vmatprep.subr.bf16.mxu0 0
        %926 = vmatpush1.bf16.msra.mxu0 0
        %927 = vmatprep.mubr.bf16.mxu0 0
        %928 = vmatmul.mubr.bf16.gmra.mrb[0].mxu0 %v839
        %v929 = vpop.f32.mrb[0].mxu0
        %v930 = vadd.f32 0.0, %v929
        %v931 = vpop.f32.mrb[0].mxu0
        %v932 = vpop.f32.mrb[0].mxu0
        %v933 = vadd.f32 0.0, %v932
        %v934 = vpop.f32.mrb[0].mxu0
        %935 = vmatprep.mubr.bf16.mxu0 0
        %936 = vmatmul.mubr.bf16.gmra.mrb[0].mxu0 %v840
        %v937 = vpop.f32.mrb[0].mxu0
        %v938 = vadd.f32 0.0, %v937
        %v939 = vpop.f32.mrb[0].mxu0
        %v940 = vpop.f32.mrb[0].mxu0
        %v941 = vadd.f32 0.0, %v940
        %v942 = vpop.f32.mrb[0].mxu0
        %943 = vmatprep.mubr.bf16.mxu0 0
        %944 = vmatmul.mubr.bf16.gmra.mrb[0].mxu0 %v841
        %v945 = vpop.f32.mrb[0].mxu0
        %v946 = vadd.f32 0.0, %v945
        %v947 = vpop.f32.mrb[0].mxu0
        %v948 = vpop.f32.mrb[0].mxu0
        %v949 = vadd.f32 0.0, %v948
        %v950 = vpop.f32.mrb[0].mxu0
        %951 = vmatprep.mubr.bf16.mxu0 0
        %952 = vmatmul.mubr.bf16.gmra.mrb[0].mxu0 %v842
        %v953 = vpop.f32.mrb[0].mxu0
        %v954 = vadd.f32 0.0, %v953
        %v955 = vpop.f32.mrb[0].mxu0
        %v956 = vpop.f32.mrb[0].mxu0
        %v957 = vadd.f32 0.0, %v956
        %v958 = vpop.f32.mrb[0].mxu0
        %959 = vdwg.mxu0
        %v960 = vadd.f32 %v725, %v930
        %v961 = vadd.f32 %v728, %v933
        %v962 = vadd.f32 %v733, %v938
        %v963 = vadd.f32 %v736, %v941
        %v964 = vadd.f32 %v741, %v946
        %v965 = vadd.f32 %v744, %v949
        %v966 = vadd.f32 %v749, %v954
        %v967 = vadd.f32 %v752, %v957
        %s968 = scalar_lea.vmem %s318, 8
        %v969 = vld [vmem:[%s968] sm:$0xf]
        %v970 = vld [vmem:[%s968 + $0x8] sm:$0xf]
        %v971 = vld [vmem:[%s968 + $0x10] sm:$0xf]
        %v972 = vld [vmem:[%s968 + $0x18] sm:$0xf]
        %v973 = vld [vmem:[%s968 + $0x20] sm:$0xf]
        %v974 = vld [vmem:[%s968 + $0x28] sm:$0xf]
        %v975 = vld [vmem:[%s968 + $0x30] sm:$0xf]
        %v976 = vld [vmem:[%s968 + $0x38] sm:$0xf]
        %s977 = scalar_lea.vmem %s2, 192
        %v978 = vld [vmem:[%s977] sm:$0xf]
        %v979 = vld [vmem:[%s977 + $0x4] sm:$0xf]
        %v980 = vld [vmem:[%s977 + $0x8] sm:$0xf]
        %v981 = vld [vmem:[%s977 + $0xc] sm:$0xf]
        %v982 = vld [vmem:[%s977 + $0x10] sm:$0xf]
        %v983 = vld [vmem:[%s977 + $0x14] sm:$0xf]
        %v984 = vld [vmem:[%s977 + $0x18] sm:$0xf]
        %v985 = vld [vmem:[%s977 + $0x1c] sm:$0xf]
        %v986 = vld [vmem:[%s977 + $0x20] sm:$0xf]
        %v987 = vld [vmem:[%s977 + $0x24] sm:$0xf]
        %v988 = vld [vmem:[%s977 + $0x28] sm:$0xf]
        %v989 = vld [vmem:[%s977 + $0x2c] sm:$0xf]
        %v990 = vld [vmem:[%s977 + $0x30] sm:$0xf]
        %v991 = vld [vmem:[%s977 + $0x34] sm:$0xf]
        %v992 = vld [vmem:[%s977 + $0x38] sm:$0xf]
        %v993 = vld [vmem:[%s977 + $0x3c] sm:$0xf]
        %v1002 = vunpack.c.l.b16 %v969
        %v1003 = vunpack.c.l.b16 %v970
        %v1004 = vunpack.c.l.b16 %v971
        %v1005 = vunpack.c.l.b16 %v972
        %v1006 = vunpack.c.l.b16 %v973
        %v1007 = vunpack.c.l.b16 %v974
        %v1008 = vunpack.c.l.b16 %v975
        %v1009 = vunpack.c.l.b16 %v976
        %v1010 = vpack.c.b16 %v1003, %v1002
        %v1011 = vpack.c.b16 %v1005, %v1004
        %v1012 = vpack.c.b16 %v1007, %v1006
        %v1013 = vpack.c.b16 %v1009, %v1008
        %v1034 = vunpack.c.l.b16 %v978
        %v1035 = vunpack.c.l.b16 %v979
        %v1036 = vunpack.c.l.b16 %v980
        %v1037 = vunpack.c.l.b16 %v981
        %v1038 = vunpack.c.l.b16 %v982
        %v1039 = vunpack.c.l.b16 %v983
        %v1040 = vunpack.c.l.b16 %v984
        %v1041 = vunpack.c.l.b16 %v985
        %v1042 = vunpack.c.l.b16 %v986
        %v1043 = vunpack.c.l.b16 %v987
        %v1044 = vunpack.c.l.b16 %v988
        %v1045 = vunpack.c.l.b16 %v989
        %v1046 = vunpack.c.l.b16 %v990
        %v1047 = vunpack.c.l.b16 %v991
        %v1048 = vunpack.c.l.b16 %v992
        %v1049 = vunpack.c.l.b16 %v993
        %v1050 = vpack.c.b16 %v1035, %v1034
        %v1051 = vpack.c.b16 %v1037, %v1036
        %v1052 = vpack.c.b16 %v1039, %v1038
        %v1053 = vpack.c.b16 %v1041, %v1040
        %v1054 = vpack.c.b16 %v1043, %v1042
        %v1055 = vpack.c.b16 %v1045, %v1044
        %v1056 = vpack.c.b16 %v1047, %v1046
        %v1057 = vpack.c.b16 %v1049, %v1048
        %1066 = vmatprep.subr.bf16.mxu0 0
        %1067 = vmatpush1.bf16.msra.mxu0 %v1050
        %1068 = vmatprep.subr.bf16.mxu0 0
        %1069 = vmatpush1.bf16.msra.mxu0 %v1051
        %1070 = vmatprep.subr.bf16.mxu0 0
        %1071 = vmatpush1.bf16.msra.mxu0 %v1052
        %1072 = vmatprep.subr.bf16.mxu0 0
        %1073 = vmatpush1.bf16.msra.mxu0 %v1053
        %1074 = vmatprep.subr.bf16.mxu0 0
        %1075 = vmatpush1.bf16.msra.mxu0 %v1054
        %1076 = vmatprep.subr.bf16.mxu0 0
        %1077 = vmatpush1.bf16.msra.mxu0 %v1055
        %1078 = vmatprep.subr.bf16.mxu0 0
        %1079 = vmatpush1.bf16.msra.mxu0 %v1056
        %1080 = vmatprep.subr.bf16.mxu0 0
        %1081 = vmatpush1.bf16.msra.mxu0 %v1057
        %1082 = vmatprep.subr.bf16.mxu0 0
        %1083 = vmatpush1.bf16.msra.mxu0 0
        %1084 = vmatprep.subr.bf16.mxu0 0
        %1085 = vmatpush1.bf16.msra.mxu0 0
        %1086 = vmatprep.subr.bf16.mxu0 0
        %1087 = vmatpush1.bf16.msra.mxu0 0
        %1088 = vmatprep.subr.bf16.mxu0 0
        %1089 = vmatpush1.bf16.msra.mxu0 0
        %1090 = vmatprep.subr.bf16.mxu0 0
        %1091 = vmatpush1.bf16.msra.mxu0 0
        %1092 = vmatprep.subr.bf16.mxu0 0
        %1093 = vmatpush1.bf16.msra.mxu0 0
        %1094 = vmatprep.subr.bf16.mxu0 0
        %1095 = vmatpush1.bf16.msra.mxu0 0
        %1096 = vmatprep.subr.bf16.mxu0 0
        %1097 = vmatpush1.bf16.msra.mxu0 0
        %1098 = vmatprep.mubr.bf16.mxu0 0
        %1099 = vmatmul.mubr.bf16.gmra.mrb[0].mxu0 %v1010
        %v1100 = vpop.f32.mrb[0].mxu0
        %v1101 = vadd.f32 0.0, %v1100
        %v1102 = vpop.f32.mrb[0].mxu0
        %v1103 = vpop.f32.mrb[0].mxu0
        %v1104 = vadd.f32 0.0, %v1103
        %v1105 = vpop.f32.mrb[0].mxu0
        %1106 = vmatprep.mubr.bf16.mxu0 0
        %1107 = vmatmul.mubr.bf16.gmra.mrb[0].mxu0 %v1011
        %v1108 = vpop.f32.mrb[0].mxu0
        %v1109 = vadd.f32 0.0, %v1108
        %v1110 = vpop.f32.mrb[0].mxu0
        %v1111 = vpop.f32.mrb[0].mxu0
        %v1112 = vadd.f32 0.0, %v1111
        %v1113 = vpop.f32.mrb[0].mxu0
        %1114 = vmatprep.mubr.bf16.mxu0 0
        %1115 = vmatmul.mubr.bf16.gmra.mrb[0].mxu0 %v1012
        %v1116 = vpop.f32.mrb[0].mxu0
        %v1117 = vadd.f32 0.0, %v1116
        %v1118 = vpop.f32.mrb[0].mxu0
        %v1119 = vpop.f32.mrb[0].mxu0
        %v1120 = vadd.f32 0.0, %v1119
        %v1121 = vpop.f32.mrb[0].mxu0
        %1122 = vmatprep.mubr.bf16.mxu0 0
        %1123 = vmatmul.mubr.bf16.gmra.mrb[0].mxu0 %v1013
        %v1124 = vpop.f32.mrb[0].mxu0
        %v1125 = vadd.f32 0.0, %v1124
        %v1126 = vpop.f32.mrb[0].mxu0
        %v1127 = vpop.f32.mrb[0].mxu0
        %v1128 = vadd.f32 0.0, %v1127
        %v1129 = vpop.f32.mrb[0].mxu0
        %1130 = vdwg.mxu0
        %v1131 = vadd.f32 %v960, %v1101
        %v1132 = vadd.f32 %v961, %v1104
        %v1133 = vadd.f32 %v962, %v1109
        %v1134 = vadd.f32 %v963, %v1112
        %v1135 = vadd.f32 %v964, %v1117
        %v1136 = vadd.f32 %v965, %v1120
        %v1137 = vadd.f32 %v966, %v1125
        %v1138 = vadd.f32 %v967, %v1128
        %v1139 = vld [vmem:[%s968] sm:$0xf]
        %v1140 = vld [vmem:[%s968 + $0x4] sm:$0x1]
        %v1141 = vld [vmem:[%s968 + $0x8] sm:$0xf]
        %v1142 = vld [vmem:[%s968 + $0xc] sm:$0x1]
        %v1143 = vld [vmem:[%s968 + $0x10] sm:$0xf]
        %v1144 = vld [vmem:[%s968 + $0x14] sm:$0x1]
        %v1145 = vld [vmem:[%s968 + $0x18] sm:$0xf]
        %v1146 = vld [vmem:[%s968 + $0x1c] sm:$0x1]
        %v1147 = vld [vmem:[%s968 + $0x20] sm:$0xf]
        %v1148 = vld [vmem:[%s968 + $0x24] sm:$0x1]
        %v1149 = vld [vmem:[%s968 + $0x28] sm:$0xf]
        %v1150 = vld [vmem:[%s968 + $0x2c] sm:$0x1]
        %v1151 = vld [vmem:[%s968 + $0x30] sm:$0xf]
        %v1152 = vld [vmem:[%s968 + $0x34] sm:$0x1]
        %v1153 = vld [vmem:[%s968 + $0x38] sm:$0xf]
        %v1154 = vld [vmem:[%s968 + $0x3c] sm:$0x1]
        %v1156 = vshrl.u32 %v1139, 16
        %v1158 = vrot.slane %v1156, 4
        %v1159 = vshll.u32 %v1139, 16
        %v1161 = vrot.slane %v1159, 5
        %v1162 = vor.u32 %v1158, %v1161
        %v1163 = vrot.slane %v1162, 4
        %v1165 = vshll.u32 %v1140, 16
        %v1167 = vrot.slane %v1165, 5
        %v1168 = vsel %vm359, %v1163, %v1167
        %v1170 = vshrl.u32 %v1141, 16
        %v1172 = vrot.slane %v1170, 4
        %v1173 = vshll.u32 %v1141, 16
        %v1175 = vrot.slane %v1173, 5
        %v1176 = vor.u32 %v1172, %v1175
        %v1177 = vrot.slane %v1176, 4
        %v1179 = vshll.u32 %v1142, 16
        %v1181 = vrot.slane %v1179, 5
        %v1182 = vsel %vm359, %v1177, %v1181
        %v1184 = vshrl.u32 %v1143, 16
        %v1186 = vrot.slane %v1184, 4
        %v1187 = vshll.u32 %v1143, 16
        %v1189 = vrot.slane %v1187, 5
        %v1190 = vor.u32 %v1186, %v1189
        %v1191 = vrot.slane %v1190, 4
        %v1193 = vshll.u32 %v1144, 16
        %v1195 = vrot.slane %v1193, 5
        %v1196 = vsel %vm359, %v1191, %v1195
        %v1198 = vshrl.u32 %v1145, 16
        %v1200 = vrot.slane %v1198, 4
        %v1201 = vshll.u32 %v1145, 16
        %v1203 = vrot.slane %v1201, 5
        %v1204 = vor.u32 %v1200, %v1203
        %v1205 = vrot.slane %v1204, 4
        %v1207 = vshll.u32 %v1146, 16
        %v1209 = vrot.slane %v1207, 5
        %v1210 = vsel %vm359, %v1205, %v1209
        %v1212 = vshrl.u32 %v1147, 16
        %v1214 = vrot.slane %v1212, 4
        %v1215 = vshll.u32 %v1147, 16
        %v1217 = vrot.slane %v1215, 5
        %v1218 = vor.u32 %v1214, %v1217
        %v1219 = vrot.slane %v1218, 4
        %v1221 = vshll.u32 %v1148, 16
        %v1223 = vrot.slane %v1221, 5
        %v1224 = vsel %vm359, %v1219, %v1223
        %v1226 = vshrl.u32 %v1149, 16
        %v1228 = vrot.slane %v1226, 4
        %v1229 = vshll.u32 %v1149, 16
        %v1231 = vrot.slane %v1229, 5
        %v1232 = vor.u32 %v1228, %v1231
        %v1233 = vrot.slane %v1232, 4
        %v1235 = vshll.u32 %v1150, 16
        %v1237 = vrot.slane %v1235, 5
        %v1238 = vsel %vm359, %v1233, %v1237
        %v1240 = vshrl.u32 %v1151, 16
        %v1242 = vrot.slane %v1240, 4
        %v1243 = vshll.u32 %v1151, 16
        %v1245 = vrot.slane %v1243, 5
        %v1246 = vor.u32 %v1242, %v1245
        %v1247 = vrot.slane %v1246, 4
        %v1249 = vshll.u32 %v1152, 16
        %v1251 = vrot.slane %v1249, 5
        %v1252 = vsel %vm359, %v1247, %v1251
        %v1254 = vshrl.u32 %v1153, 16
        %v1256 = vrot.slane %v1254, 4
        %v1257 = vshll.u32 %v1153, 16
        %v1259 = vrot.slane %v1257, 5
        %v1260 = vor.u32 %v1256, %v1259
        %v1261 = vrot.slane %v1260, 4
        %v1263 = vshll.u32 %v1154, 16
        %v1265 = vrot.slane %v1263, 5
        %v1266 = vsel %vm359, %v1261, %v1265
        %s1267 = scalar_lea.vmem %s2, 256
        %v1268 = vld [vmem:[%s1267] sm:$0xf]
        %v1269 = vld [vmem:[%s1267 + $0x4] sm:$0xf]
        %v1270 = vld [vmem:[%s1267 + $0x8] sm:$0xf]
        %v1271 = vld [vmem:[%s1267 + $0xc] sm:$0xf]
        %v1272 = vld [vmem:[%s1267 + $0x10] sm:$0xf]
        %v1273 = vld [vmem:[%s1267 + $0x14] sm:$0xf]
        %v1274 = vld [vmem:[%s1267 + $0x18] sm:$0xf]
        %v1275 = vld [vmem:[%s1267 + $0x1c] sm:$0xf]
        %v1276 = vld [vmem:[%s1267 + $0x20] sm:$0xf]
        %v1277 = vld [vmem:[%s1267 + $0x24] sm:$0xf]
        %v1278 = vld [vmem:[%s1267 + $0x28] sm:$0xf]
        %v1279 = vld [vmem:[%s1267 + $0x2c] sm:$0xf]
        %v1280 = vld [vmem:[%s1267 + $0x30] sm:$0xf]
        %v1281 = vld [vmem:[%s1267 + $0x34] sm:$0xf]
        %v1282 = vld [vmem:[%s1267 + $0x38] sm:$0xf]
        %v1283 = vld [vmem:[%s1267 + $0x3c] sm:$0xf]
        %v1284 = vunpack.c.l.b16 %v1168
        %v1285 = vunpack.c.l.b16 %v1182
        %v1286 = vunpack.c.l.b16 %v1196
        %v1287 = vunpack.c.l.b16 %v1210
        %v1288 = vunpack.c.l.b16 %v1224
        %v1289 = vunpack.c.l.b16 %v1238
        %v1290 = vunpack.c.l.b16 %v1252
        %v1291 = vunpack.c.l.b16 %v1266
        %v1292 = vpack.c.b16 %v1285, %v1284
        %v1293 = vpack.c.b16 %v1287, %v1286
        %v1294 = vpack.c.b16 %v1289, %v1288
        %v1295 = vpack.c.b16 %v1291, %v1290
        %v1316 = vunpack.c.l.b16 %v1268
        %v1317 = vunpack.c.l.b16 %v1269
        %v1318 = vunpack.c.l.b16 %v1270
        %v1319 = vunpack.c.l.b16 %v1271
        %v1320 = vunpack.c.l.b16 %v1272
        %v1321 = vunpack.c.l.b16 %v1273
        %v1322 = vunpack.c.l.b16 %v1274
        %v1323 = vunpack.c.l.b16 %v1275
        %v1324 = vunpack.c.l.b16 %v1276
        %v1325 = vunpack.c.l.b16 %v1277
        %v1326 = vunpack.c.l.b16 %v1278
        %v1327 = vunpack.c.l.b16 %v1279
        %v1328 = vunpack.c.l.b16 %v1280
        %v1329 = vunpack.c.l.b16 %v1281
        %v1330 = vunpack.c.l.b16 %v1282
        %v1331 = vunpack.c.l.b16 %v1283
        %v1332 = vpack.c.b16 %v1317, %v1316
        %v1333 = vpack.c.b16 %v1319, %v1318
        %v1334 = vpack.c.b16 %v1321, %v1320
        %v1335 = vpack.c.b16 %v1323, %v1322
        %v1336 = vpack.c.b16 %v1325, %v1324
        %v1337 = vpack.c.b16 %v1327, %v1326
        %v1338 = vpack.c.b16 %v1329, %v1328
        %v1339 = vpack.c.b16 %v1331, %v1330
        %1348 = vmatprep.subr.bf16.mxu0 0
        %1349 = vmatpush1.bf16.msra.mxu0 %v1332
        %1350 = vmatprep.subr.bf16.mxu0 0
        %1351 = vmatpush1.bf16.msra.mxu0 %v1333
        %1352 = vmatprep.subr.bf16.mxu0 0
        %1353 = vmatpush1.bf16.msra.mxu0 %v1334
        %1354 = vmatprep.subr.bf16.mxu0 0
        %1355 = vmatpush1.bf16.msra.mxu0 %v1335
        %1356 = vmatprep.subr.bf16.mxu0 0
        %1357 = vmatpush1.bf16.msra.mxu0 %v1336
        %1358 = vmatprep.subr.bf16.mxu0 0
        %1359 = vmatpush1.bf16.msra.mxu0 %v1337
        %1360 = vmatprep.subr.bf16.mxu0 0
        %1361 = vmatpush1.bf16.msra.mxu0 %v1338
        %1362 = vmatprep.subr.bf16.mxu0 0
        %1363 = vmatpush1.bf16.msra.mxu0 %v1339
        %1364 = vmatprep.subr.bf16.mxu0 0
        %1365 = vmatpush1.bf16.msra.mxu0 0
        %1366 = vmatprep.subr.bf16.mxu0 0
        %1367 = vmatpush1.bf16.msra.mxu0 0
        %1368 = vmatprep.subr.bf16.mxu0 0
        %1369 = vmatpush1.bf16.msra.mxu0 0
        %1370 = vmatprep.subr.bf16.mxu0 0
        %1371 = vmatpush1.bf16.msra.mxu0 0
        %1372 = vmatprep.subr.bf16.mxu0 0
        %1373 = vmatpush1.bf16.msra.mxu0 0
        %1374 = vmatprep.subr.bf16.mxu0 0
        %1375 = vmatpush1.bf16.msra.mxu0 0
        %1376 = vmatprep.subr.bf16.mxu0 0
        %1377 = vmatpush1.bf16.msra.mxu0 0
        %1378 = vmatprep.subr.bf16.mxu0 0
        %1379 = vmatpush1.bf16.msra.mxu0 0
        %1380 = vmatprep.mubr.bf16.mxu0 0
        %1381 = vmatmul.mubr.bf16.gmra.mrb[0].mxu0 %v1292
        %v1382 = vpop.f32.mrb[0].mxu0
        %v1383 = vadd.f32 0.0, %v1382
        %v1384 = vpop.f32.mrb[0].mxu0
        %v1385 = vpop.f32.mrb[0].mxu0
        %v1386 = vadd.f32 0.0, %v1385
        %v1387 = vpop.f32.mrb[0].mxu0
        %1388 = vmatprep.mubr.bf16.mxu0 0
        %1389 = vmatmul.mubr.bf16.gmra.mrb[0].mxu0 %v1293
        %v1390 = vpop.f32.mrb[0].mxu0
        %v1391 = vadd.f32 0.0, %v1390
        %v1392 = vpop.f32.mrb[0].mxu0
        %v1393 = vpop.f32.mrb[0].mxu0
        %v1394 = vadd.f32 0.0, %v1393
        %v1395 = vpop.f32.mrb[0].mxu0
        %1396 = vmatprep.mubr.bf16.mxu0 0
        %1397 = vmatmul.mubr.bf16.gmra.mrb[0].mxu0 %v1294
        %v1398 = vpop.f32.mrb[0].mxu0
        %v1399 = vadd.f32 0.0, %v1398
        %v1400 = vpop.f32.mrb[0].mxu0
        %v1401 = vpop.f32.mrb[0].mxu0
        %v1402 = vadd.f32 0.0, %v1401
        %v1403 = vpop.f32.mrb[0].mxu0
        %1404 = vmatprep.mubr.bf16.mxu0 0
        %1405 = vmatmul.mubr.bf16.gmra.mrb[0].mxu0 %v1295
        %v1406 = vpop.f32.mrb[0].mxu0
        %v1407 = vadd.f32 0.0, %v1406
        %v1408 = vpop.f32.mrb[0].mxu0
        %v1409 = vpop.f32.mrb[0].mxu0
        %v1410 = vadd.f32 0.0, %v1409
        %v1411 = vpop.f32.mrb[0].mxu0
        %1412 = vdwg.mxu0
        %v1413 = vadd.f32 %v1131, %v1383
        %v1414 = vadd.f32 %v1132, %v1386
        %v1415 = vadd.f32 %v1133, %v1391
        %v1416 = vadd.f32 %v1134, %v1394
        %v1417 = vadd.f32 %v1135, %v1399
        %v1418 = vadd.f32 %v1136, %v1402
        %v1419 = vadd.f32 %v1137, %v1407
        %v1420 = vadd.f32 %v1138, %v1410
        %v1421 = vld [vmem:[%s968] sm:$0xe]
        %v1422 = vld [vmem:[%s968 + $0x8] sm:$0xe]
        %v1423 = vld [vmem:[%s968 + $0x10] sm:$0xe]
        %v1424 = vld [vmem:[%s968 + $0x18] sm:$0xe]
        %v1425 = vld [vmem:[%s968 + $0x20] sm:$0xe]
        %v1426 = vld [vmem:[%s968 + $0x28] sm:$0xe]
        %v1427 = vld [vmem:[%s968 + $0x30] sm:$0xe]
        %v1428 = vld [vmem:[%s968 + $0x38] sm:$0xe]
        %v1445 = vrot.slane %v1421, 5
        %v1446 = vrot.slane %v1445, 4
        %v1447 = vrot.slane %v1140, 5
        %v1448 = vsel %vm781, %v1446, %v1447
        %v1449 = vrot.slane %v1422, 5
        %v1450 = vrot.slane %v1449, 4
        %v1451 = vrot.slane %v1142, 5
        %v1452 = vsel %vm781, %v1450, %v1451
        %v1453 = vrot.slane %v1423, 5
        %v1454 = vrot.slane %v1453, 4
        %v1455 = vrot.slane %v1144, 5
        %v1456 = vsel %vm781, %v1454, %v1455
        %v1457 = vrot.slane %v1424, 5
        %v1458 = vrot.slane %v1457, 4
        %v1459 = vrot.slane %v1146, 5
        %v1460 = vsel %vm781, %v1458, %v1459
        %v1461 = vrot.slane %v1425, 5
        %v1462 = vrot.slane %v1461, 4
        %v1463 = vrot.slane %v1148, 5
        %v1464 = vsel %vm781, %v1462, %v1463
        %v1465 = vrot.slane %v1426, 5
        %v1466 = vrot.slane %v1465, 4
        %v1467 = vrot.slane %v1150, 5
        %v1468 = vsel %vm781, %v1466, %v1467
        %v1469 = vrot.slane %v1427, 5
        %v1470 = vrot.slane %v1469, 4
        %v1471 = vrot.slane %v1152, 5
        %v1472 = vsel %vm781, %v1470, %v1471
        %v1473 = vrot.slane %v1428, 5
        %v1474 = vrot.slane %v1473, 4
        %v1475 = vrot.slane %v1154, 5
        %v1476 = vsel %vm781, %v1474, %v1475
        %s1477 = scalar_lea.vmem %s2, 320
        %v1478 = vld [vmem:[%s1477] sm:$0xf]
        %v1479 = vld [vmem:[%s1477 + $0x4] sm:$0xf]
        %v1480 = vld [vmem:[%s1477 + $0x8] sm:$0xf]
        %v1481 = vld [vmem:[%s1477 + $0xc] sm:$0xf]
        %v1482 = vld [vmem:[%s1477 + $0x10] sm:$0xf]
        %v1483 = vld [vmem:[%s1477 + $0x14] sm:$0xf]
        %v1484 = vld [vmem:[%s1477 + $0x18] sm:$0xf]
        %v1485 = vld [vmem:[%s1477 + $0x1c] sm:$0xf]
        %v1486 = vld [vmem:[%s1477 + $0x20] sm:$0xf]
        %v1487 = vld [vmem:[%s1477 + $0x24] sm:$0xf]
        %v1488 = vld [vmem:[%s1477 + $0x28] sm:$0xf]
        %v1489 = vld [vmem:[%s1477 + $0x2c] sm:$0xf]
        %v1490 = vld [vmem:[%s1477 + $0x30] sm:$0xf]
        %v1491 = vld [vmem:[%s1477 + $0x34] sm:$0xf]
        %v1492 = vld [vmem:[%s1477 + $0x38] sm:$0xf]
        %v1493 = vld [vmem:[%s1477 + $0x3c] sm:$0xf]
        %v1494 = vunpack.c.l.b16 %v1448
        %v1495 = vunpack.c.l.b16 %v1452
        %v1496 = vunpack.c.l.b16 %v1456
        %v1497 = vunpack.c.l.b16 %v1460
        %v1498 = vunpack.c.l.b16 %v1464
        %v1499 = vunpack.c.l.b16 %v1468
        %v1500 = vunpack.c.l.b16 %v1472
        %v1501 = vunpack.c.l.b16 %v1476
        %v1502 = vpack.c.b16 %v1495, %v1494
        %v1503 = vpack.c.b16 %v1497, %v1496
        %v1504 = vpack.c.b16 %v1499, %v1498
        %v1505 = vpack.c.b16 %v1501, %v1500
        %v1526 = vunpack.c.l.b16 %v1478
        %v1527 = vunpack.c.l.b16 %v1479
        %v1528 = vunpack.c.l.b16 %v1480
        %v1529 = vunpack.c.l.b16 %v1481
        %v1530 = vunpack.c.l.b16 %v1482
        %v1531 = vunpack.c.l.b16 %v1483
        %v1532 = vunpack.c.l.b16 %v1484
        %v1533 = vunpack.c.l.b16 %v1485
        %v1534 = vunpack.c.l.b16 %v1486
        %v1535 = vunpack.c.l.b16 %v1487
        %v1536 = vunpack.c.l.b16 %v1488
        %v1537 = vunpack.c.l.b16 %v1489
        %v1538 = vunpack.c.l.b16 %v1490
        %v1539 = vunpack.c.l.b16 %v1491
        %v1540 = vunpack.c.l.b16 %v1492
        %v1541 = vunpack.c.l.b16 %v1493
        %v1542 = vpack.c.b16 %v1527, %v1526
        %v1543 = vpack.c.b16 %v1529, %v1528
        %v1544 = vpack.c.b16 %v1531, %v1530
        %v1545 = vpack.c.b16 %v1533, %v1532
        %v1546 = vpack.c.b16 %v1535, %v1534
        %v1547 = vpack.c.b16 %v1537, %v1536
        %v1548 = vpack.c.b16 %v1539, %v1538
        %v1549 = vpack.c.b16 %v1541, %v1540
        %1558 = vmatprep.subr.bf16.mxu0 0
        %1559 = vmatpush1.bf16.msra.mxu0 %v1542
        %1560 = vmatprep.subr.bf16.mxu0 0
        %1561 = vmatpush1.bf16.msra.mxu0 %v1543
        %1562 = vmatprep.subr.bf16.mxu0 0
        %1563 = vmatpush1.bf16.msra.mxu0 %v1544
        %1564 = vmatprep.subr.bf16.mxu0 0
        %1565 = vmatpush1.bf16.msra.mxu0 %v1545
        %1566 = vmatprep.subr.bf16.mxu0 0
        %1567 = vmatpush1.bf16.msra.mxu0 %v1546
        %1568 = vmatprep.subr.bf16.mxu0 0
        %1569 = vmatpush1.bf16.msra.mxu0 %v1547
        %1570 = vmatprep.subr.bf16.mxu0 0
        %1571 = vmatpush1.bf16.msra.mxu0 %v1548
        %1572 = vmatprep.subr.bf16.mxu0 0
        %1573 = vmatpush1.bf16.msra.mxu0 %v1549
        %1574 = vmatprep.subr.bf16.mxu0 0
        %1575 = vmatpush1.bf16.msra.mxu0 0
        %1576 = vmatprep.subr.bf16.mxu0 0
        %1577 = vmatpush1.bf16.msra.mxu0 0
        %1578 = vmatprep.subr.bf16.mxu0 0
        %1579 = vmatpush1.bf16.msra.mxu0 0
        %1580 = vmatprep.subr.bf16.mxu0 0
        %1581 = vmatpush1.bf16.msra.mxu0 0
        %1582 = vmatprep.subr.bf16.mxu0 0
        %1583 = vmatpush1.bf16.msra.mxu0 0
        %1584 = vmatprep.subr.bf16.mxu0 0
        %1585 = vmatpush1.bf16.msra.mxu0 0
        %1586 = vmatprep.subr.bf16.mxu0 0
        %1587 = vmatpush1.bf16.msra.mxu0 0
        %1588 = vmatprep.subr.bf16.mxu0 0
        %1589 = vmatpush1.bf16.msra.mxu0 0
        %1590 = vmatprep.mubr.bf16.mxu0 0
        %1591 = vmatmul.mubr.bf16.gmra.mrb[0].mxu0 %v1502
        %v1592 = vpop.f32.mrb[0].mxu0
        %v1593 = vadd.f32 0.0, %v1592
        %v1594 = vpop.f32.mrb[0].mxu0
        %v1595 = vpop.f32.mrb[0].mxu0
        %v1596 = vadd.f32 0.0, %v1595
        %v1597 = vpop.f32.mrb[0].mxu0
        %1598 = vmatprep.mubr.bf16.mxu0 0
        %1599 = vmatmul.mubr.bf16.gmra.mrb[0].mxu0 %v1503
        %v1600 = vpop.f32.mrb[0].mxu0
        %v1601 = vadd.f32 0.0, %v1600
        %v1602 = vpop.f32.mrb[0].mxu0
        %v1603 = vpop.f32.mrb[0].mxu0
        %v1604 = vadd.f32 0.0, %v1603
        %v1605 = vpop.f32.mrb[0].mxu0
        %1606 = vmatprep.mubr.bf16.mxu0 0
        %1607 = vmatmul.mubr.bf16.gmra.mrb[0].mxu0 %v1504
        %v1608 = vpop.f32.mrb[0].mxu0
        %v1609 = vadd.f32 0.0, %v1608
        %v1610 = vpop.f32.mrb[0].mxu0
        %v1611 = vpop.f32.mrb[0].mxu0
        %v1612 = vadd.f32 0.0, %v1611
        %v1613 = vpop.f32.mrb[0].mxu0
        %1614 = vmatprep.mubr.bf16.mxu0 0
        %1615 = vmatmul.mubr.bf16.gmra.mrb[0].mxu0 %v1505
        %v1616 = vpop.f32.mrb[0].mxu0
        %v1617 = vadd.f32 0.0, %v1616
        %v1618 = vpop.f32.mrb[0].mxu0
        %v1619 = vpop.f32.mrb[0].mxu0
        %v1620 = vadd.f32 0.0, %v1619
        %v1621 = vpop.f32.mrb[0].mxu0
        %1622 = vdwg.mxu0
        %v1623 = vadd.f32 %v1413, %v1593
        %v1624 = vadd.f32 %v1414, %v1596
        %v1625 = vadd.f32 %v1415, %v1601
        %v1626 = vadd.f32 %v1416, %v1604
        %v1627 = vadd.f32 %v1417, %v1609
        %v1628 = vadd.f32 %v1418, %v1612
        %v1629 = vadd.f32 %v1419, %v1617
        %v1630 = vadd.f32 %v1420, %v1620
        %s1631 = scalar_lea.vmem %s318, 16
        %v1632 = vld [vmem:[%s1631] sm:$0xf]
        %v1633 = vld [vmem:[%s1631 + $0x8] sm:$0xf]
        %v1634 = vld [vmem:[%s1631 + $0x10] sm:$0xf]
        %v1635 = vld [vmem:[%s1631 + $0x18] sm:$0xf]
        %v1636 = vld [vmem:[%s1631 + $0x20] sm:$0xf]
        %v1637 = vld [vmem:[%s1631 + $0x28] sm:$0xf]
        %v1638 = vld [vmem:[%s1631 + $0x30] sm:$0xf]
        %v1639 = vld [vmem:[%s1631 + $0x38] sm:$0xf]
        %s1640 = scalar_lea.vmem %s2, 384
        %v1641 = vld [vmem:[%s1640] sm:$0xf]
        %v1642 = vld [vmem:[%s1640 + $0x4] sm:$0xf]
        %v1643 = vld [vmem:[%s1640 + $0x8] sm:$0xf]
        %v1644 = vld [vmem:[%s1640 + $0xc] sm:$0xf]
        %v1645 = vld [vmem:[%s1640 + $0x10] sm:$0xf]
        %v1646 = vld [vmem:[%s1640 + $0x14] sm:$0xf]
        %v1647 = vld [vmem:[%s1640 + $0x18] sm:$0xf]
        %v1648 = vld [vmem:[%s1640 + $0x1c] sm:$0xf]
        %v1649 = vld [vmem:[%s1640 + $0x20] sm:$0xf]
        %v1650 = vld [vmem:[%s1640 + $0x24] sm:$0xf]
        %v1651 = vld [vmem:[%s1640 + $0x28] sm:$0xf]
        %v1652 = vld [vmem:[%s1640 + $0x2c] sm:$0xf]
        %v1653 = vld [vmem:[%s1640 + $0x30] sm:$0xf]
        %v1654 = vld [vmem:[%s1640 + $0x34] sm:$0xf]
        %v1655 = vld [vmem:[%s1640 + $0x38] sm:$0xf]
        %v1656 = vld [vmem:[%s1640 + $0x3c] sm:$0xf]
        %v1665 = vunpack.c.l.b16 %v1632
        %v1666 = vunpack.c.l.b16 %v1633
        %v1667 = vunpack.c.l.b16 %v1634
        %v1668 = vunpack.c.l.b16 %v1635
        %v1669 = vunpack.c.l.b16 %v1636
        %v1670 = vunpack.c.l.b16 %v1637
        %v1671 = vunpack.c.l.b16 %v1638
        %v1672 = vunpack.c.l.b16 %v1639
        %v1673 = vpack.c.b16 %v1666, %v1665
        %v1674 = vpack.c.b16 %v1668, %v1667
        %v1675 = vpack.c.b16 %v1670, %v1669
        %v1676 = vpack.c.b16 %v1672, %v1671
        %v1697 = vunpack.c.l.b16 %v1641
        %v1698 = vunpack.c.l.b16 %v1642
        %v1699 = vunpack.c.l.b16 %v1643
        %v1700 = vunpack.c.l.b16 %v1644
        %v1701 = vunpack.c.l.b16 %v1645
        %v1702 = vunpack.c.l.b16 %v1646
        %v1703 = vunpack.c.l.b16 %v1647
        %v1704 = vunpack.c.l.b16 %v1648
        %v1705 = vunpack.c.l.b16 %v1649
        %v1706 = vunpack.c.l.b16 %v1650
        %v1707 = vunpack.c.l.b16 %v1651
        %v1708 = vunpack.c.l.b16 %v1652
        %v1709 = vunpack.c.l.b16 %v1653
        %v1710 = vunpack.c.l.b16 %v1654
        %v1711 = vunpack.c.l.b16 %v1655
        %v1712 = vunpack.c.l.b16 %v1656
        %v1713 = vpack.c.b16 %v1698, %v1697
        %v1714 = vpack.c.b16 %v1700, %v1699
        %v1715 = vpack.c.b16 %v1702, %v1701
        %v1716 = vpack.c.b16 %v1704, %v1703
        %v1717 = vpack.c.b16 %v1706, %v1705
        %v1718 = vpack.c.b16 %v1708, %v1707
        %v1719 = vpack.c.b16 %v1710, %v1709
        %v1720 = vpack.c.b16 %v1712, %v1711
        %1729 = vmatprep.subr.bf16.mxu0 0
        %1730 = vmatpush1.bf16.msra.mxu0 %v1713
        %1731 = vmatprep.subr.bf16.mxu0 0
        %1732 = vmatpush1.bf16.msra.mxu0 %v1714
        %1733 = vmatprep.subr.bf16.mxu0 0
        %1734 = vmatpush1.bf16.msra.mxu0 %v1715
        %1735 = vmatprep.subr.bf16.mxu0 0
        %1736 = vmatpush1.bf16.msra.mxu0 %v1716
        %1737 = vmatprep.subr.bf16.mxu0 0
        %1738 = vmatpush1.bf16.msra.mxu0 %v1717
        %1739 = vmatprep.subr.bf16.mxu0 0
        %1740 = vmatpush1.bf16.msra.mxu0 %v1718
        %1741 = vmatprep.subr.bf16.mxu0 0
        %1742 = vmatpush1.bf16.msra.mxu0 %v1719
        %1743 = vmatprep.subr.bf16.mxu0 0
        %1744 = vmatpush1.bf16.msra.mxu0 %v1720
        %1745 = vmatprep.subr.bf16.mxu0 0
        %1746 = vmatpush1.bf16.msra.mxu0 0
        %1747 = vmatprep.subr.bf16.mxu0 0
        %1748 = vmatpush1.bf16.msra.mxu0 0
        %1749 = vmatprep.subr.bf16.mxu0 0
        %1750 = vmatpush1.bf16.msra.mxu0 0
        %1751 = vmatprep.subr.bf16.mxu0 0
        %1752 = vmatpush1.bf16.msra.mxu0 0
        %1753 = vmatprep.subr.bf16.mxu0 0
        %1754 = vmatpush1.bf16.msra.mxu0 0
        %1755 = vmatprep.subr.bf16.mxu0 0
        %1756 = vmatpush1.bf16.msra.mxu0 0
        %1757 = vmatprep.subr.bf16.mxu0 0
        %1758 = vmatpush1.bf16.msra.mxu0 0
        %1759 = vmatprep.subr.bf16.mxu0 0
        %1760 = vmatpush1.bf16.msra.mxu0 0
        %1761 = vmatprep.mubr.bf16.mxu0 0
        %1762 = vmatmul.mubr.bf16.gmra.mrb[0].mxu0 %v1673
        %v1763 = vpop.f32.mrb[0].mxu0
        %v1764 = vadd.f32 0.0, %v1763
        %v1765 = vpop.f32.mrb[0].mxu0
        %v1766 = vpop.f32.mrb[0].mxu0
        %v1767 = vadd.f32 0.0, %v1766
        %v1768 = vpop.f32.mrb[0].mxu0
        %1769 = vmatprep.mubr.bf16.mxu0 0
        %1770 = vmatmul.mubr.bf16.gmra.mrb[0].mxu0 %v1674
        %v1771 = vpop.f32.mrb[0].mxu0
        %v1772 = vadd.f32 0.0, %v1771
        %v1773 = vpop.f32.mrb[0].mxu0
        %v1774 = vpop.f32.mrb[0].mxu0
        %v1775 = vadd.f32 0.0, %v1774
        %v1776 = vpop.f32.mrb[0].mxu0
        %1777 = vmatprep.mubr.bf16.mxu0 0
        %1778 = vmatmul.mubr.bf16.gmra.mrb[0].mxu0 %v1675
        %v1779 = vpop.f32.mrb[0].mxu0
        %v1780 = vadd.f32 0.0, %v1779
        %v1781 = vpop.f32.mrb[0].mxu0
        %v1782 = vpop.f32.mrb[0].mxu0
        %v1783 = vadd.f32 0.0, %v1782
        %v1784 = vpop.f32.mrb[0].mxu0
        %1785 = vmatprep.mubr.bf16.mxu0 0
        %1786 = vmatmul.mubr.bf16.gmra.mrb[0].mxu0 %v1676
        %v1787 = vpop.f32.mrb[0].mxu0
        %v1788 = vadd.f32 0.0, %v1787
        %v1789 = vpop.f32.mrb[0].mxu0
        %v1790 = vpop.f32.mrb[0].mxu0
        %v1791 = vadd.f32 0.0, %v1790
        %v1792 = vpop.f32.mrb[0].mxu0
        %1793 = vdwg.mxu0
        %v1794 = vadd.f32 %v1623, %v1764
        %v1795 = vadd.f32 %v1624, %v1767
        %v1796 = vadd.f32 %v1625, %v1772
        %v1797 = vadd.f32 %v1626, %v1775
        %v1798 = vadd.f32 %v1627, %v1780
        %v1799 = vadd.f32 %v1628, %v1783
        %v1800 = vadd.f32 %v1629, %v1788
        %v1801 = vadd.f32 %v1630, %v1791
        %v1802 = vld [vmem:[%s1631] sm:$0xf]
        %v1803 = vld [vmem:[%s1631 + $0x4] sm:$0x1]
        %v1804 = vld [vmem:[%s1631 + $0x8] sm:$0xf]
        %v1805 = vld [vmem:[%s1631 + $0xc] sm:$0x1]
        %v1806 = vld [vmem:[%s1631 + $0x10] sm:$0xf]
        %v1807 = vld [vmem:[%s1631 + $0x14] sm:$0x1]
        %v1808 = vld [vmem:[%s1631 + $0x18] sm:$0xf]
        %v1809 = vld [vmem:[%s1631 + $0x1c] sm:$0x1]
        %v1810 = vld [vmem:[%s1631 + $0x20] sm:$0xf]
        %v1811 = vld [vmem:[%s1631 + $0x24] sm:$0x1]
        %v1812 = vld [vmem:[%s1631 + $0x28] sm:$0xf]
        %v1813 = vld [vmem:[%s1631 + $0x2c] sm:$0x1]
        %v1814 = vld [vmem:[%s1631 + $0x30] sm:$0xf]
        %v1815 = vld [vmem:[%s1631 + $0x34] sm:$0x1]
        %v1816 = vld [vmem:[%s1631 + $0x38] sm:$0xf]
        %v1817 = vld [vmem:[%s1631 + $0x3c] sm:$0x1]
        %v1819 = vshrl.u32 %v1802, 16
        %v1821 = vrot.slane %v1819, 4
        %v1822 = vshll.u32 %v1802, 16
        %v1824 = vrot.slane %v1822, 5
        %v1825 = vor.u32 %v1821, %v1824
        %v1826 = vrot.slane %v1825, 4
        %v1828 = vshll.u32 %v1803, 16
        %v1830 = vrot.slane %v1828, 5
        %v1831 = vsel %vm359, %v1826, %v1830
        %v1833 = vshrl.u32 %v1804, 16
        %v1835 = vrot.slane %v1833, 4
        %v1836 = vshll.u32 %v1804, 16
        %v1838 = vrot.slane %v1836, 5
        %v1839 = vor.u32 %v1835, %v1838
        %v1840 = vrot.slane %v1839, 4
        %v1842 = vshll.u32 %v1805, 16
        %v1844 = vrot.slane %v1842, 5
        %v1845 = vsel %vm359, %v1840, %v1844
        %v1847 = vshrl.u32 %v1806, 16
        %v1849 = vrot.slane %v1847, 4
        %v1850 = vshll.u32 %v1806, 16
        %v1852 = vrot.slane %v1850, 5
        %v1853 = vor.u32 %v1849, %v1852
        %v1854 = vrot.slane %v1853, 4
        %v1856 = vshll.u32 %v1807, 16
        %v1858 = vrot.slane %v1856, 5
        %v1859 = vsel %vm359, %v1854, %v1858
        %v1861 = vshrl.u32 %v1808, 16
        %v1863 = vrot.slane %v1861, 4
        %v1864 = vshll.u32 %v1808, 16
        %v1866 = vrot.slane %v1864, 5
        %v1867 = vor.u32 %v1863, %v1866
        %v1868 = vrot.slane %v1867, 4
        %v1870 = vshll.u32 %v1809, 16
        %v1872 = vrot.slane %v1870, 5
        %v1873 = vsel %vm359, %v1868, %v1872
        %v1875 = vshrl.u32 %v1810, 16
        %v1877 = vrot.slane %v1875, 4
        %v1878 = vshll.u32 %v1810, 16
        %v1880 = vrot.slane %v1878, 5
        %v1881 = vor.u32 %v1877, %v1880
        %v1882 = vrot.slane %v1881, 4
        %v1884 = vshll.u32 %v1811, 16
        %v1886 = vrot.slane %v1884, 5
        %v1887 = vsel %vm359, %v1882, %v1886
        %v1889 = vshrl.u32 %v1812, 16
        %v1891 = vrot.slane %v1889, 4
        %v1892 = vshll.u32 %v1812, 16
        %v1894 = vrot.slane %v1892, 5
        %v1895 = vor.u32 %v1891, %v1894
        %v1896 = vrot.slane %v1895, 4
        %v1898 = vshll.u32 %v1813, 16
        %v1900 = vrot.slane %v1898, 5
        %v1901 = vsel %vm359, %v1896, %v1900
        %v1903 = vshrl.u32 %v1814, 16
        %v1905 = vrot.slane %v1903, 4
        %v1906 = vshll.u32 %v1814, 16
        %v1908 = vrot.slane %v1906, 5
        %v1909 = vor.u32 %v1905, %v1908
        %v1910 = vrot.slane %v1909, 4
        %v1912 = vshll.u32 %v1815, 16
        %v1914 = vrot.slane %v1912, 5
        %v1915 = vsel %vm359, %v1910, %v1914
        %v1917 = vshrl.u32 %v1816, 16
        %v1919 = vrot.slane %v1917, 4
        %v1920 = vshll.u32 %v1816, 16
        %v1922 = vrot.slane %v1920, 5
        %v1923 = vor.u32 %v1919, %v1922
        %v1924 = vrot.slane %v1923, 4
        %v1926 = vshll.u32 %v1817, 16
        %v1928 = vrot.slane %v1926, 5
        %v1929 = vsel %vm359, %v1924, %v1928
        %s1930 = scalar_lea.vmem %s2, 448
        %v1931 = vld [vmem:[%s1930] sm:$0xf]
        %v1932 = vld [vmem:[%s1930 + $0x4] sm:$0xf]
        %v1933 = vld [vmem:[%s1930 + $0x8] sm:$0xf]
        %v1934 = vld [vmem:[%s1930 + $0xc] sm:$0xf]
        %v1935 = vld [vmem:[%s1930 + $0x10] sm:$0xf]
        %v1936 = vld [vmem:[%s1930 + $0x14] sm:$0xf]
        %v1937 = vld [vmem:[%s1930 + $0x18] sm:$0xf]
        %v1938 = vld [vmem:[%s1930 + $0x1c] sm:$0xf]
        %v1939 = vld [vmem:[%s1930 + $0x20] sm:$0xf]
        %v1940 = vld [vmem:[%s1930 + $0x24] sm:$0xf]
        %v1941 = vld [vmem:[%s1930 + $0x28] sm:$0xf]
        %v1942 = vld [vmem:[%s1930 + $0x2c] sm:$0xf]
        %v1943 = vld [vmem:[%s1930 + $0x30] sm:$0xf]
        %v1944 = vld [vmem:[%s1930 + $0x34] sm:$0xf]
        %v1945 = vld [vmem:[%s1930 + $0x38] sm:$0xf]
        %v1946 = vld [vmem:[%s1930 + $0x3c] sm:$0xf]
        %v1947 = vunpack.c.l.b16 %v1831
        %v1948 = vunpack.c.l.b16 %v1845
        %v1949 = vunpack.c.l.b16 %v1859
        %v1950 = vunpack.c.l.b16 %v1873
        %v1951 = vunpack.c.l.b16 %v1887
        %v1952 = vunpack.c.l.b16 %v1901
        %v1953 = vunpack.c.l.b16 %v1915
        %v1954 = vunpack.c.l.b16 %v1929
        %v1955 = vpack.c.b16 %v1948, %v1947
        %v1956 = vpack.c.b16 %v1950, %v1949
        %v1957 = vpack.c.b16 %v1952, %v1951
        %v1958 = vpack.c.b16 %v1954, %v1953
        %v1979 = vunpack.c.l.b16 %v1931
        %v1980 = vunpack.c.l.b16 %v1932
        %v1981 = vunpack.c.l.b16 %v1933
        %v1982 = vunpack.c.l.b16 %v1934
        %v1983 = vunpack.c.l.b16 %v1935
        %v1984 = vunpack.c.l.b16 %v1936
        %v1985 = vunpack.c.l.b16 %v1937
        %v1986 = vunpack.c.l.b16 %v1938
        %v1987 = vunpack.c.l.b16 %v1939
        %v1988 = vunpack.c.l.b16 %v1940
        %v1989 = vunpack.c.l.b16 %v1941
        %v1990 = vunpack.c.l.b16 %v1942
        %v1991 = vunpack.c.l.b16 %v1943
        %v1992 = vunpack.c.l.b16 %v1944
        %v1993 = vunpack.c.l.b16 %v1945
        %v1994 = vunpack.c.l.b16 %v1946
        %v1995 = vpack.c.b16 %v1980, %v1979
        %v1996 = vpack.c.b16 %v1982, %v1981
        %v1997 = vpack.c.b16 %v1984, %v1983
        %v1998 = vpack.c.b16 %v1986, %v1985
        %v1999 = vpack.c.b16 %v1988, %v1987
        %v2000 = vpack.c.b16 %v1990, %v1989
        %v2001 = vpack.c.b16 %v1992, %v1991
        %v2002 = vpack.c.b16 %v1994, %v1993
        %2011 = vmatprep.subr.bf16.mxu0 0
        %2012 = vmatpush1.bf16.msra.mxu0 %v1995
        %2013 = vmatprep.subr.bf16.mxu0 0
        %2014 = vmatpush1.bf16.msra.mxu0 %v1996
        %2015 = vmatprep.subr.bf16.mxu0 0
        %2016 = vmatpush1.bf16.msra.mxu0 %v1997
        %2017 = vmatprep.subr.bf16.mxu0 0
        %2018 = vmatpush1.bf16.msra.mxu0 %v1998
        %2019 = vmatprep.subr.bf16.mxu0 0
        %2020 = vmatpush1.bf16.msra.mxu0 %v1999
        %2021 = vmatprep.subr.bf16.mxu0 0
        %2022 = vmatpush1.bf16.msra.mxu0 %v2000
        %2023 = vmatprep.subr.bf16.mxu0 0
        %2024 = vmatpush1.bf16.msra.mxu0 %v2001
        %2025 = vmatprep.subr.bf16.mxu0 0
        %2026 = vmatpush1.bf16.msra.mxu0 %v2002
        %2027 = vmatprep.subr.bf16.mxu0 0
        %2028 = vmatpush1.bf16.msra.mxu0 0
        %2029 = vmatprep.subr.bf16.mxu0 0
        %2030 = vmatpush1.bf16.msra.mxu0 0
        %2031 = vmatprep.subr.bf16.mxu0 0
        %2032 = vmatpush1.bf16.msra.mxu0 0
        %2033 = vmatprep.subr.bf16.mxu0 0
        %2034 = vmatpush1.bf16.msra.mxu0 0
        %2035 = vmatprep.subr.bf16.mxu0 0
        %2036 = vmatpush1.bf16.msra.mxu0 0
        %2037 = vmatprep.subr.bf16.mxu0 0
        %2038 = vmatpush1.bf16.msra.mxu0 0
        %2039 = vmatprep.subr.bf16.mxu0 0
        %2040 = vmatpush1.bf16.msra.mxu0 0
        %2041 = vmatprep.subr.bf16.mxu0 0
        %2042 = vmatpush1.bf16.msra.mxu0 0
        %2043 = vmatprep.mubr.bf16.mxu0 0
        %2044 = vmatmul.mubr.bf16.gmra.mrb[0].mxu0 %v1955
        %v2045 = vpop.f32.mrb[0].mxu0
        %v2046 = vadd.f32 0.0, %v2045
        %v2047 = vpop.f32.mrb[0].mxu0
        %v2048 = vpop.f32.mrb[0].mxu0
        %v2049 = vadd.f32 0.0, %v2048
        %v2050 = vpop.f32.mrb[0].mxu0
        %2051 = vmatprep.mubr.bf16.mxu0 0
        %2052 = vmatmul.mubr.bf16.gmra.mrb[0].mxu0 %v1956
        %v2053 = vpop.f32.mrb[0].mxu0
        %v2054 = vadd.f32 0.0, %v2053
        %v2055 = vpop.f32.mrb[0].mxu0
        %v2056 = vpop.f32.mrb[0].mxu0
        %v2057 = vadd.f32 0.0, %v2056
        %v2058 = vpop.f32.mrb[0].mxu0
        %2059 = vmatprep.mubr.bf16.mxu0 0
        %2060 = vmatmul.mubr.bf16.gmra.mrb[0].mxu0 %v1957
        %v2061 = vpop.f32.mrb[0].mxu0
        %v2062 = vadd.f32 0.0, %v2061
        %v2063 = vpop.f32.mrb[0].mxu0
        %v2064 = vpop.f32.mrb[0].mxu0
        %v2065 = vadd.f32 0.0, %v2064
        %v2066 = vpop.f32.mrb[0].mxu0
        %2067 = vmatprep.mubr.bf16.mxu0 0
        %2068 = vmatmul.mubr.bf16.gmra.mrb[0].mxu0 %v1958
        %v2069 = vpop.f32.mrb[0].mxu0
        %v2070 = vadd.f32 0.0, %v2069
        %v2071 = vpop.f32.mrb[0].mxu0
        %v2072 = vpop.f32.mrb[0].mxu0
        %v2073 = vadd.f32 0.0, %v2072
        %v2074 = vpop.f32.mrb[0].mxu0
        %2075 = vdwg.mxu0
        %v2076 = vadd.f32 %v1794, %v2046
        %v2077 = vadd.f32 %v1795, %v2049
        %v2078 = vadd.f32 %v1796, %v2054
        %v2079 = vadd.f32 %v1797, %v2057
        %v2080 = vadd.f32 %v1798, %v2062
        %v2081 = vadd.f32 %v1799, %v2065
        %v2082 = vadd.f32 %v1800, %v2070
        %v2083 = vadd.f32 %v1801, %v2073
        %v2084 = vld [vmem:[%s1631] sm:$0xe]
        %v2085 = vld [vmem:[%s1631 + $0x8] sm:$0xe]
        %v2086 = vld [vmem:[%s1631 + $0x10] sm:$0xe]
        %v2087 = vld [vmem:[%s1631 + $0x18] sm:$0xe]
        %v2088 = vld [vmem:[%s1631 + $0x20] sm:$0xe]
        %v2089 = vld [vmem:[%s1631 + $0x28] sm:$0xe]
        %v2090 = vld [vmem:[%s1631 + $0x30] sm:$0xe]
        %v2091 = vld [vmem:[%s1631 + $0x38] sm:$0xe]
        %v2108 = vrot.slane %v2084, 5
        %v2109 = vrot.slane %v2108, 4
        %v2110 = vrot.slane %v1803, 5
        %v2111 = vsel %vm781, %v2109, %v2110
        %v2112 = vrot.slane %v2085, 5
        %v2113 = vrot.slane %v2112, 4
        %v2114 = vrot.slane %v1805, 5
        %v2115 = vsel %vm781, %v2113, %v2114
        %v2116 = vrot.slane %v2086, 5
        %v2117 = vrot.slane %v2116, 4
        %v2118 = vrot.slane %v1807, 5
        %v2119 = vsel %vm781, %v2117, %v2118
        %v2120 = vrot.slane %v2087, 5
        %v2121 = vrot.slane %v2120, 4
        %v2122 = vrot.slane %v1809, 5
        %v2123 = vsel %vm781, %v2121, %v2122
        %v2124 = vrot.slane %v2088, 5
        %v2125 = vrot.slane %v2124, 4
        %v2126 = vrot.slane %v1811, 5
        %v2127 = vsel %vm781, %v2125, %v2126
        %v2128 = vrot.slane %v2089, 5
        %v2129 = vrot.slane %v2128, 4
        %v2130 = vrot.slane %v1813, 5
        %v2131 = vsel %vm781, %v2129, %v2130
        %v2132 = vrot.slane %v2090, 5
        %v2133 = vrot.slane %v2132, 4
        %v2134 = vrot.slane %v1815, 5
        %v2135 = vsel %vm781, %v2133, %v2134
        %v2136 = vrot.slane %v2091, 5
        %v2137 = vrot.slane %v2136, 4
        %v2138 = vrot.slane %v1817, 5
        %v2139 = vsel %vm781, %v2137, %v2138
        %s2140 = scalar_lea.vmem %s2, 512
        %v2141 = vld [vmem:[%s2140] sm:$0xf]
        %v2142 = vld [vmem:[%s2140 + $0x4] sm:$0xf]
        %v2143 = vld [vmem:[%s2140 + $0x8] sm:$0xf]
        %v2144 = vld [vmem:[%s2140 + $0xc] sm:$0xf]
        %v2145 = vld [vmem:[%s2140 + $0x10] sm:$0xf]
        %v2146 = vld [vmem:[%s2140 + $0x14] sm:$0xf]
        %v2147 = vld [vmem:[%s2140 + $0x18] sm:$0xf]
        %v2148 = vld [vmem:[%s2140 + $0x1c] sm:$0xf]
        %v2149 = vld [vmem:[%s2140 + $0x20] sm:$0xf]
        %v2150 = vld [vmem:[%s2140 + $0x24] sm:$0xf]
        %v2151 = vld [vmem:[%s2140 + $0x28] sm:$0xf]
        %v2152 = vld [vmem:[%s2140 + $0x2c] sm:$0xf]
        %v2153 = vld [vmem:[%s2140 + $0x30] sm:$0xf]
        %v2154 = vld [vmem:[%s2140 + $0x34] sm:$0xf]
        %v2155 = vld [vmem:[%s2140 + $0x38] sm:$0xf]
        %v2156 = vld [vmem:[%s2140 + $0x3c] sm:$0xf]
        %v2157 = vunpack.c.l.b16 %v2111
        %v2158 = vunpack.c.l.b16 %v2115
        %v2159 = vunpack.c.l.b16 %v2119
        %v2160 = vunpack.c.l.b16 %v2123
        %v2161 = vunpack.c.l.b16 %v2127
        %v2162 = vunpack.c.l.b16 %v2131
        %v2163 = vunpack.c.l.b16 %v2135
        %v2164 = vunpack.c.l.b16 %v2139
        %v2165 = vpack.c.b16 %v2158, %v2157
        %v2166 = vpack.c.b16 %v2160, %v2159
        %v2167 = vpack.c.b16 %v2162, %v2161
        %v2168 = vpack.c.b16 %v2164, %v2163
        %v2189 = vunpack.c.l.b16 %v2141
        %v2190 = vunpack.c.l.b16 %v2142
        %v2191 = vunpack.c.l.b16 %v2143
        %v2192 = vunpack.c.l.b16 %v2144
        %v2193 = vunpack.c.l.b16 %v2145
        %v2194 = vunpack.c.l.b16 %v2146
        %v2195 = vunpack.c.l.b16 %v2147
        %v2196 = vunpack.c.l.b16 %v2148
        %v2197 = vunpack.c.l.b16 %v2149
        %v2198 = vunpack.c.l.b16 %v2150
        %v2199 = vunpack.c.l.b16 %v2151
        %v2200 = vunpack.c.l.b16 %v2152
        %v2201 = vunpack.c.l.b16 %v2153
        %v2202 = vunpack.c.l.b16 %v2154
        %v2203 = vunpack.c.l.b16 %v2155
        %v2204 = vunpack.c.l.b16 %v2156
        %v2205 = vpack.c.b16 %v2190, %v2189
        %v2206 = vpack.c.b16 %v2192, %v2191
        %v2207 = vpack.c.b16 %v2194, %v2193
        %v2208 = vpack.c.b16 %v2196, %v2195
        %v2209 = vpack.c.b16 %v2198, %v2197
        %v2210 = vpack.c.b16 %v2200, %v2199
        %v2211 = vpack.c.b16 %v2202, %v2201
        %v2212 = vpack.c.b16 %v2204, %v2203
        %2221 = vmatprep.subr.bf16.mxu0 0
        %2222 = vmatpush1.bf16.msra.mxu0 %v2205
        %2223 = vmatprep.subr.bf16.mxu0 0
        %2224 = vmatpush1.bf16.msra.mxu0 %v2206
        %2225 = vmatprep.subr.bf16.mxu0 0
        %2226 = vmatpush1.bf16.msra.mxu0 %v2207
        %2227 = vmatprep.subr.bf16.mxu0 0
        %2228 = vmatpush1.bf16.msra.mxu0 %v2208
        %2229 = vmatprep.subr.bf16.mxu0 0
        %2230 = vmatpush1.bf16.msra.mxu0 %v2209
        %2231 = vmatprep.subr.bf16.mxu0 0
        %2232 = vmatpush1.bf16.msra.mxu0 %v2210
        %2233 = vmatprep.subr.bf16.mxu0 0
        %2234 = vmatpush1.bf16.msra.mxu0 %v2211
        %2235 = vmatprep.subr.bf16.mxu0 0
        %2236 = vmatpush1.bf16.msra.mxu0 %v2212
        %2237 = vmatprep.subr.bf16.mxu0 0
        %2238 = vmatpush1.bf16.msra.mxu0 0
        %2239 = vmatprep.subr.bf16.mxu0 0
        %2240 = vmatpush1.bf16.msra.mxu0 0
        %2241 = vmatprep.subr.bf16.mxu0 0
        %2242 = vmatpush1.bf16.msra.mxu0 0
        %2243 = vmatprep.subr.bf16.mxu0 0
        %2244 = vmatpush1.bf16.msra.mxu0 0
        %2245 = vmatprep.subr.bf16.mxu0 0
        %2246 = vmatpush1.bf16.msra.mxu0 0
        %2247 = vmatprep.subr.bf16.mxu0 0
        %2248 = vmatpush1.bf16.msra.mxu0 0
        %2249 = vmatprep.subr.bf16.mxu0 0
        %2250 = vmatpush1.bf16.msra.mxu0 0
        %2251 = vmatprep.subr.bf16.mxu0 0
        %2252 = vmatpush1.bf16.msra.mxu0 0
        %2253 = vmatprep.mubr.bf16.mxu0 0
        %2254 = vmatmul.mubr.bf16.gmra.mrb[0].mxu0 %v2165
        %v2255 = vpop.f32.mrb[0].mxu0
        %v2256 = vadd.f32 0.0, %v2255
        %v2257 = vpop.f32.mrb[0].mxu0
        %v2258 = vpop.f32.mrb[0].mxu0
        %v2259 = vadd.f32 0.0, %v2258
        %v2260 = vpop.f32.mrb[0].mxu0
        %2261 = vmatprep.mubr.bf16.mxu0 0
        %2262 = vmatmul.mubr.bf16.gmra.mrb[0].mxu0 %v2166
        %v2263 = vpop.f32.mrb[0].mxu0
        %v2264 = vadd.f32 0.0, %v2263
        %v2265 = vpop.f32.mrb[0].mxu0
        %v2266 = vpop.f32.mrb[0].mxu0
        %v2267 = vadd.f32 0.0, %v2266
        %v2268 = vpop.f32.mrb[0].mxu0
        %2269 = vmatprep.mubr.bf16.mxu0 0
        %2270 = vmatmul.mubr.bf16.gmra.mrb[0].mxu0 %v2167
        %v2271 = vpop.f32.mrb[0].mxu0
        %v2272 = vadd.f32 0.0, %v2271
        %v2273 = vpop.f32.mrb[0].mxu0
        %v2274 = vpop.f32.mrb[0].mxu0
        %v2275 = vadd.f32 0.0, %v2274
        %v2276 = vpop.f32.mrb[0].mxu0
        %2277 = vmatprep.mubr.bf16.mxu0 0
        %2278 = vmatmul.mubr.bf16.gmra.mrb[0].mxu0 %v2168
        %v2279 = vpop.f32.mrb[0].mxu0
        %v2280 = vadd.f32 0.0, %v2279
        %v2281 = vpop.f32.mrb[0].mxu0
        %v2282 = vpop.f32.mrb[0].mxu0
        %v2283 = vadd.f32 0.0, %v2282
        %v2284 = vpop.f32.mrb[0].mxu0
        %2285 = vdwg.mxu0
        %v2286 = vadd.f32 %v2076, %v2256
        %v2287 = vadd.f32 %v2077, %v2259
        %v2288 = vadd.f32 %v2078, %v2264
        %v2289 = vadd.f32 %v2079, %v2267
        %v2290 = vadd.f32 %v2080, %v2272
        %v2291 = vadd.f32 %v2081, %v2275
        %v2292 = vadd.f32 %v2082, %v2280
        %v2293 = vadd.f32 %v2083, %v2283
        %v2294 = vadd.f32 %v2286, %v2287
        %v2295 = vadd.f32 %v2294, %v2288
        %v2296 = vadd.f32 %v2295, %v2289
        %v2297 = vadd.f32 %v2296, %v2290
        %v2298 = vadd.f32 %v2297, %v2291
        %v2299 = vadd.f32 %v2298, %v2292
        %v2300 = vadd.f32 %v2299, %v2293
        %v2301 = vrot.slane %v2300, 4
        %v2302 = vadd.f32 %v2300, %v2301
        %v2303 = vrot.slane %v2302, 2
        %v2304 = vadd.f32 %v2302, %v2303
        %v2305 = vrot.slane %v2304, 1
        %v2306 = vadd.f32 %v2304, %v2305
        %v2307 = vmul.f32 %v2306, 0.015625
        %v2308 = vmul.f32 %v2286, %v2286
        %v2309 = vmul.f32 %v2287, %v2287
        %v2310 = vmul.f32 %v2288, %v2288
        %v2311 = vmul.f32 %v2289, %v2289
        %v2312 = vmul.f32 %v2290, %v2290
        %v2313 = vmul.f32 %v2291, %v2291
        %v2314 = vmul.f32 %v2292, %v2292
        %v2315 = vmul.f32 %v2293, %v2293
        %v2316 = vadd.f32 %v2308, %v2309
        %v2317 = vadd.f32 %v2316, %v2310
        %v2318 = vadd.f32 %v2317, %v2311
        %v2319 = vadd.f32 %v2318, %v2312
        %v2320 = vadd.f32 %v2319, %v2313
        %v2321 = vadd.f32 %v2320, %v2314
        %v2322 = vadd.f32 %v2321, %v2315
        %v2323 = vrot.slane %v2322, 4
        %v2324 = vadd.f32 %v2322, %v2323
        %v2325 = vrot.slane %v2324, 2
        %v2326 = vadd.f32 %v2324, %v2325
        %v2327 = vrot.slane %v2326, 1
        %v2328 = vadd.f32 %v2326, %v2327
        %v2329 = vmul.f32 %v2328, 0.015625
        %v2330 = vmul.f32 %v2307, %v2307
        %v2331 = vsub.f32 %v2329, %v2330
        %v2332 = vld [vmem:[%s4] sm:$0x1]
        %v2333 = vadd.f32 %v2331, 1e-05
        %v2334 = vrsqrt.pop %v2333
        %v2335 = vmul.f32 %v2332, %v2334
        %v2336 = vld [vmem:[%s5] sm:$0x1]
        %v2337 = vmul.f32 %v2307, %v2335
        %v2338 = vsub.f32 %v2336, %v2337
        %v2340 = vlaneseq
        %v2341 = vshrl.u32 %v2340, 7
        %v2342 = vsub.s32 0, %v2341
        %v2343 = vrot.slane %v2335, %v2342
        %v2345 = vmul.f32 %v2286, %v2343
        %v2346 = vmul.f32 %v2287, %v2343
        %v2347 = vmul.f32 %v2288, %v2343
        %v2348 = vmul.f32 %v2289, %v2343
        %v2349 = vmul.f32 %v2290, %v2343
        %v2350 = vmul.f32 %v2291, %v2343
        %v2351 = vmul.f32 %v2292, %v2343
        %v2352 = vmul.f32 %v2293, %v2343
        %v2354 = vlaneseq
        %v2355 = vshrl.u32 %v2354, 7
        %v2356 = vsub.s32 0, %v2355
        %v2357 = vrot.slane %v2338, %v2356
        %v2359 = vadd.f32 %v2345, %v2357
        %v2360 = vadd.f32 %v2346, %v2357
        %v2361 = vadd.f32 %v2347, %v2357
        %v2362 = vadd.f32 %v2348, %v2357
        %v2363 = vadd.f32 %v2349, %v2357
        %v2364 = vadd.f32 %v2350, %v2357
        %v2365 = vadd.f32 %v2351, %v2357
        %v2366 = vadd.f32 %v2352, %v2357
        %v2367 = vmax.f32 %v2359, 0.0
        %v2368 = vmax.f32 %v2360, 0.0
        %v2369 = vmax.f32 %v2361, 0.0
        %v2370 = vmax.f32 %v2362, 0.0
        %v2371 = vmax.f32 %v2363, 0.0
        %v2372 = vmax.f32 %v2364, 0.0
        %v2373 = vmax.f32 %v2365, 0.0
        %v2374 = vmax.f32 %v2366, 0.0
        %s2375 = scalar_lea.vmem [#allocation2], 16
        %2376 = vst [vmem:[%s2375 + $0x1] sm:$0xff] %v2367
        %2377 = vst [vmem:[%s2375 + $0x11] sm:$0xff] %v2368
        %2378 = vst [vmem:[%s2375 + $0x21] sm:$0xff] %v2369
        %2379 = vst [vmem:[%s2375 + $0x31] sm:$0xff] %v2370
        %2380 = vst [vmem:[%s2375 + $0x41] sm:$0xff] %v2371
        %2381 = vst [vmem:[%s2375 + $0x51] sm:$0xff] %v2372
        %2382 = vst [vmem:[%s2375 + $0x61] sm:$0xff] %v2373
        %2383 = vst [vmem:[%s2375 + $0x71] sm:$0xff] %v2374
        %2384 = vst [vmem:[#allocation2 + $0x1] sm:$0xff] %v2368
        %s2385 = scalar_lea.vmem [#allocation2], 144
        %2386 = vst [vmem:[%s2385 + $0x1] sm:$0xff] %v2373
        %v2387 = vld [vmem:[#allocation2 + $0x2] sm:$0x1]
        %v2388 = vld [vmem:[#allocation2 + $0x12] sm:$0x1]
        %v2389 = vld [vmem:[#allocation2 + $0x22] sm:$0x1]
        %v2390 = vld [vmem:[#allocation2 + $0x32] sm:$0x1]
        %v2391 = vld [vmem:[#allocation2 + $0x42] sm:$0x1]
        %v2392 = vld [vmem:[#allocation2 + $0x52] sm:$0x1]
        %v2393 = vld [vmem:[#allocation2 + $0x62] sm:$0x1]
        %v2394 = vld [vmem:[#allocation2 + $0x72] sm:$0x1]
        %v2395 = vld [vmem:[#allocation2 + $0x82] sm:$0x1]
        %v2396 = vld [vmem:[#allocation2 + $0x92] sm:$0x1]
        %2397 = vst [vmem:[#allocation2] sm:$0x1] %v2387
        %2398 = vst [vmem:[#allocation2 + $0x10] sm:$0x1] %v2388
        %2399 = vst [vmem:[#allocation2 + $0x20] sm:$0x1] %v2389
        %2400 = vst [vmem:[#allocation2 + $0x30] sm:$0x1] %v2390
        %2401 = vst [vmem:[#allocation2 + $0x40] sm:$0x1] %v2391
        %2402 = vst [vmem:[#allocation2 + $0x50] sm:$0x1] %v2392
        %2403 = vst [vmem:[#allocation2 + $0x60] sm:$0x1] %v2393
        %2404 = vst [vmem:[#allocation2 + $0x70] sm:$0x1] %v2394
        %2405 = vst [vmem:[#allocation2 + $0x80] sm:$0x1] %v2395
        %2406 = vst [vmem:[#allocation2 + $0x90] sm:$0x1] %v2396
        %v2407 = vld [vmem:[#allocation2 + $0x7] sm:$0x1]
        %v2408 = vld [vmem:[#allocation2 + $0x17] sm:$0x1]
        %v2409 = vld [vmem:[#allocation2 + $0x27] sm:$0x1]
        %v2410 = vld [vmem:[#allocation2 + $0x37] sm:$0x1]
        %v2411 = vld [vmem:[#allocation2 + $0x47] sm:$0x1]
        %v2412 = vld [vmem:[#allocation2 + $0x57] sm:$0x1]
        %v2413 = vld [vmem:[#allocation2 + $0x67] sm:$0x1]
        %v2414 = vld [vmem:[#allocation2 + $0x77] sm:$0x1]
        %v2415 = vld [vmem:[#allocation2 + $0x87] sm:$0x1]
        %v2416 = vld [vmem:[#allocation2 + $0x97] sm:$0x1]
        %2417 = vst [vmem:[#allocation2 + $0x9] sm:$0x1] %v2407
        %2418 = vst [vmem:[#allocation2 + $0x19] sm:$0x1] %v2408
        %2419 = vst [vmem:[#allocation2 + $0x29] sm:$0x1] %v2409
        %2420 = vst [vmem:[#allocation2 + $0x39] sm:$0x1] %v2410
        %2421 = vst [vmem:[#allocation2 + $0x49] sm:$0x1] %v2411
        %2422 = vst [vmem:[#allocation2 + $0x59] sm:$0x1] %v2412
        %2423 = vst [vmem:[#allocation2 + $0x69] sm:$0x1] %v2413
        %2424 = vst [vmem:[#allocation2 + $0x79] sm:$0x1] %v2414
        %2425 = vst [vmem:[#allocation2 + $0x89] sm:$0x1] %v2415
        %2426 = vst [vmem:[#allocation2 + $0x99] sm:$0x1] %v2416
        %v2427 = vld [vmem:[#allocation2] sm:$0xff]
        %v2428 = vld [vmem:[#allocation2 + $0x10] sm:$0xff]
        %v2429 = vld [vmem:[#allocation2 + $0x20] sm:$0xff]
        %v2430 = vld [vmem:[#allocation2 + $0x30] sm:$0xff]
        %v2431 = vld [vmem:[#allocation2 + $0x40] sm:$0xff]
        %v2432 = vld [vmem:[#allocation2 + $0x50] sm:$0xff]
        %v2433 = vld [vmem:[#allocation2 + $0x60] sm:$0xff]
        %v2434 = vld [vmem:[#allocation2 + $0x70] sm:$0xff]
        %v2435 = vpack.c.bf16 %v2427, %v2427
        %v2436 = vpack.c.bf16 %v2428, %v2428
        %v2437 = vpack.c.bf16 %v2429, %v2429
        %v2438 = vpack.c.bf16 %v2430, %v2430
        %v2439 = vpack.c.bf16 %v2431, %v2431
        %v2440 = vpack.c.bf16 %v2432, %v2432
        %v2441 = vpack.c.bf16 %v2433, %v2433
        %v2442 = vpack.c.bf16 %v2434, %v2434
        %v2443 = vld [vmem:[%s3] sm:$0xf]
        %v2444 = vld [vmem:[%s3 + $0x4] sm:$0xf]
        %v2445 = vld [vmem:[%s3 + $0x8] sm:$0xf]
        %v2446 = vld [vmem:[%s3 + $0xc] sm:$0xf]
        %v2447 = vld [vmem:[%s3 + $0x10] sm:$0xf]
        %v2448 = vld [vmem:[%s3 + $0x14] sm:$0xf]
        %v2449 = vld [vmem:[%s3 + $0x18] sm:$0xf]
        %v2450 = vld [vmem:[%s3 + $0x1c] sm:$0xf]
        %v2451 = vld [vmem:[%s3 + $0x20] sm:$0xf]
        %v2452 = vld [vmem:[%s3 + $0x24] sm:$0xf]
        %v2453 = vld [vmem:[%s3 + $0x28] sm:$0xf]
        %v2454 = vld [vmem:[%s3 + $0x2c] sm:$0xf]
        %v2455 = vld [vmem:[%s3 + $0x30] sm:$0xf]
        %v2456 = vld [vmem:[%s3 + $0x34] sm:$0xf]
        %v2457 = vld [vmem:[%s3 + $0x38] sm:$0xf]
        %v2458 = vld [vmem:[%s3 + $0x3c] sm:$0xf]
        %v2459 = vld [vmem:[#allocation2 + $0x1] sm:$0xff]
        %v2460 = vld [vmem:[#allocation2 + $0x11] sm:$0xff]
        %v2461 = vld [vmem:[#allocation2 + $0x21] sm:$0xff]
        %v2462 = vld [vmem:[#allocation2 + $0x31] sm:$0xff]
        %v2463 = vld [vmem:[#allocation2 + $0x41] sm:$0xff]
        %v2464 = vld [vmem:[#allocation2 + $0x51] sm:$0xff]
        %v2465 = vld [vmem:[#allocation2 + $0x61] sm:$0xff]
        %v2466 = vld [vmem:[#allocation2 + $0x71] sm:$0xff]
        %v2467 = vpack.c.bf16 %v2459, %v2459
        %v2468 = vpack.c.bf16 %v2460, %v2460
        %v2469 = vpack.c.bf16 %v2461, %v2461
        %v2470 = vpack.c.bf16 %v2462, %v2462
        %v2471 = vpack.c.bf16 %v2463, %v2463
        %v2472 = vpack.c.bf16 %v2464, %v2464
        %v2473 = vpack.c.bf16 %v2465, %v2465
        %v2474 = vpack.c.bf16 %v2466, %v2466
        %s2475 = scalar_lea.vmem %s3, 64
        %v2476 = vld [vmem:[%s2475] sm:$0xf]
        %v2477 = vld [vmem:[%s2475 + $0x4] sm:$0xf]
        %v2478 = vld [vmem:[%s2475 + $0x8] sm:$0xf]
        %v2479 = vld [vmem:[%s2475 + $0xc] sm:$0xf]
        %v2480 = vld [vmem:[%s2475 + $0x10] sm:$0xf]
        %v2481 = vld [vmem:[%s2475 + $0x14] sm:$0xf]
        %v2482 = vld [vmem:[%s2475 + $0x18] sm:$0xf]
        %v2483 = vld [vmem:[%s2475 + $0x1c] sm:$0xf]
        %v2484 = vld [vmem:[%s2475 + $0x20] sm:$0xf]
        %v2485 = vld [vmem:[%s2475 + $0x24] sm:$0xf]
        %v2486 = vld [vmem:[%s2475 + $0x28] sm:$0xf]
        %v2487 = vld [vmem:[%s2475 + $0x2c] sm:$0xf]
        %v2488 = vld [vmem:[%s2475 + $0x30] sm:$0xf]
        %v2489 = vld [vmem:[%s2475 + $0x34] sm:$0xf]
        %v2490 = vld [vmem:[%s2475 + $0x38] sm:$0xf]
        %v2491 = vld [vmem:[%s2475 + $0x3c] sm:$0xf]
        %v2500 = vunpack.c.l.b16 %v2467
        %v2501 = vunpack.c.l.b16 %v2468
        %v2502 = vunpack.c.l.b16 %v2469
        %v2503 = vunpack.c.l.b16 %v2470
        %v2504 = vunpack.c.l.b16 %v2471
        %v2505 = vunpack.c.l.b16 %v2472
        %v2506 = vunpack.c.l.b16 %v2473
        %v2507 = vunpack.c.l.b16 %v2474
        %v2508 = vpack.c.b16 %v2501, %v2500
        %v2509 = vpack.c.b16 %v2503, %v2502
        %v2510 = vpack.c.b16 %v2505, %v2504
        %v2511 = vpack.c.b16 %v2507, %v2506
        %v2532 = vunpack.c.l.b16 %v2476
        %v2533 = vunpack.c.l.b16 %v2477
        %v2534 = vunpack.c.l.b16 %v2478
        %v2535 = vunpack.c.l.b16 %v2479
        %v2536 = vunpack.c.l.b16 %v2480
        %v2537 = vunpack.c.l.b16 %v2481
        %v2538 = vunpack.c.l.b16 %v2482
        %v2539 = vunpack.c.l.b16 %v2483
        %v2540 = vunpack.c.l.b16 %v2484
        %v2541 = vunpack.c.l.b16 %v2485
        %v2542 = vunpack.c.l.b16 %v2486
        %v2543 = vunpack.c.l.b16 %v2487
        %v2544 = vunpack.c.l.b16 %v2488
        %v2545 = vunpack.c.l.b16 %v2489
        %v2546 = vunpack.c.l.b16 %v2490
        %v2547 = vunpack.c.l.b16 %v2491
        %v2548 = vpack.c.b16 %v2533, %v2532
        %v2549 = vpack.c.b16 %v2535, %v2534
        %v2550 = vpack.c.b16 %v2537, %v2536
        %v2551 = vpack.c.b16 %v2539, %v2538
        %v2552 = vpack.c.b16 %v2541, %v2540
        %v2553 = vpack.c.b16 %v2543, %v2542
        %v2554 = vpack.c.b16 %v2545, %v2544
        %v2555 = vpack.c.b16 %v2547, %v2546
        %2564 = vmatprep.subr.bf16.mxu0 0
        %2565 = vmatpush1.bf16.msra.mxu0 %v2548
        %2566 = vmatprep.subr.bf16.mxu0 0
        %2567 = vmatpush1.bf16.msra.mxu0 %v2549
        %2568 = vmatprep.subr.bf16.mxu0 0
        %2569 = vmatpush1.bf16.msra.mxu0 %v2550
        %2570 = vmatprep.subr.bf16.mxu0 0
        %2571 = vmatpush1.bf16.msra.mxu0 %v2551
        %2572 = vmatprep.subr.bf16.mxu0 0
        %2573 = vmatpush1.bf16.msra.mxu0 %v2552
        %2574 = vmatprep.subr.bf16.mxu0 0
        %2575 = vmatpush1.bf16.msra.mxu0 %v2553
        %2576 = vmatprep.subr.bf16.mxu0 0
        %2577 = vmatpush1.bf16.msra.mxu0 %v2554
        %2578 = vmatprep.subr.bf16.mxu0 0
        %2579 = vmatpush1.bf16.msra.mxu0 %v2555
        %2580 = vmatprep.subr.bf16.mxu0 0
        %2581 = vmatpush1.bf16.msra.mxu0 0
        %2582 = vmatprep.subr.bf16.mxu0 0
        %2583 = vmatpush1.bf16.msra.mxu0 0
        %2584 = vmatprep.subr.bf16.mxu0 0
        %2585 = vmatpush1.bf16.msra.mxu0 0
        %2586 = vmatprep.subr.bf16.mxu0 0
        %2587 = vmatpush1.bf16.msra.mxu0 0
        %2588 = vmatprep.subr.bf16.mxu0 0
        %2589 = vmatpush1.bf16.msra.mxu0 0
        %2590 = vmatprep.subr.bf16.mxu0 0
        %2591 = vmatpush1.bf16.msra.mxu0 0
        %2592 = vmatprep.subr.bf16.mxu0 0
        %2593 = vmatpush1.bf16.msra.mxu0 0
        %2594 = vmatprep.subr.bf16.mxu0 0
        %2595 = vmatpush1.bf16.msra.mxu0 0
        %2596 = vmatprep.mubr.bf16.mxu0 0
        %2597 = vmatmul.mubr.bf16.gmra.mrb[0].mxu0 %v2508
        %v2598 = vpop.f32.mrb[0].mxu0
        %v2599 = vadd.f32 0.0, %v2598
        %v2600 = vpop.f32.mrb[0].mxu0
        %v2601 = vpop.f32.mrb[0].mxu0
        %v2602 = vadd.f32 0.0, %v2601
        %v2603 = vpop.f32.mrb[0].mxu0
        %2604 = vmatprep.mubr.bf16.mxu0 0
        %2605 = vmatmul.mubr.bf16.gmra.mrb[0].mxu0 %v2509
        %v2606 = vpop.f32.mrb[0].mxu0
        %v2607 = vadd.f32 0.0, %v2606
        %v2608 = vpop.f32.mrb[0].mxu0
        %v2609 = vpop.f32.mrb[0].mxu0
        %v2610 = vadd.f32 0.0, %v2609
        %v2611 = vpop.f32.mrb[0].mxu0
        %2612 = vmatprep.mubr.bf16.mxu0 0
        %2613 = vmatmul.mubr.bf16.gmra.mrb[0].mxu0 %v2510
        %v2614 = vpop.f32.mrb[0].mxu0
        %v2615 = vadd.f32 0.0, %v2614
        %v2616 = vpop.f32.mrb[0].mxu0
        %v2617 = vpop.f32.mrb[0].mxu0
        %v2618 = vadd.f32 0.0, %v2617
        %v2619 = vpop.f32.mrb[0].mxu0
        %2620 = vmatprep.mubr.bf16.mxu0 0
        %2621 = vmatmul.mubr.bf16.gmra.mrb[0].mxu0 %v2511
        %v2622 = vpop.f32.mrb[0].mxu0
        %v2623 = vadd.f32 0.0, %v2622
        %v2624 = vpop.f32.mrb[0].mxu0
        %v2625 = vpop.f32.mrb[0].mxu0
        %v2626 = vadd.f32 0.0, %v2625
        %v2627 = vpop.f32.mrb[0].mxu0
        %2628 = vdwg.mxu0
        %v2637 = vunpack.c.l.b16 %v2435
        %v2638 = vunpack.c.l.b16 %v2436
        %v2639 = vunpack.c.l.b16 %v2437
        %v2640 = vunpack.c.l.b16 %v2438
        %v2641 = vunpack.c.l.b16 %v2439
        %v2642 = vunpack.c.l.b16 %v2440
        %v2643 = vunpack.c.l.b16 %v2441
        %v2644 = vunpack.c.l.b16 %v2442
        %v2645 = vpack.c.b16 %v2638, %v2637
        %v2646 = vpack.c.b16 %v2640, %v2639
        %v2647 = vpack.c.b16 %v2642, %v2641
        %v2648 = vpack.c.b16 %v2644, %v2643
        %v2669 = vunpack.c.l.b16 %v2443
        %v2670 = vunpack.c.l.b16 %v2444
        %v2671 = vunpack.c.l.b16 %v2445
        %v2672 = vunpack.c.l.b16 %v2446
        %v2673 = vunpack.c.l.b16 %v2447
        %v2674 = vunpack.c.l.b16 %v2448
        %v2675 = vunpack.c.l.b16 %v2449
        %v2676 = vunpack.c.l.b16 %v2450
        %v2677 = vunpack.c.l.b16 %v2451
        %v2678 = vunpack.c.l.b16 %v2452
        %v2679 = vunpack.c.l.b16 %v2453
        %v2680 = vunpack.c.l.b16 %v2454
        %v2681 = vunpack.c.l.b16 %v2455
        %v2682 = vunpack.c.l.b16 %v2456
        %v2683 = vunpack.c.l.b16 %v2457
        %v2684 = vunpack.c.l.b16 %v2458
        %v2685 = vpack.c.b16 %v2670, %v2669
        %v2686 = vpack.c.b16 %v2672, %v2671
        %v2687 = vpack.c.b16 %v2674, %v2673
        %v2688 = vpack.c.b16 %v2676, %v2675
        %v2689 = vpack.c.b16 %v2678, %v2677
        %v2690 = vpack.c.b16 %v2680, %v2679
        %v2691 = vpack.c.b16 %v2682, %v2681
        %v2692 = vpack.c.b16 %v2684, %v2683
        %2701 = vmatprep.subr.bf16.mxu0 0
        %2702 = vmatpush1.bf16.msra.mxu0 %v2685
        %2703 = vmatprep.subr.bf16.mxu0 0
        %2704 = vmatpush1.bf16.msra.mxu0 %v2686
        %2705 = vmatprep.subr.bf16.mxu0 0
        %2706 = vmatpush1.bf16.msra.mxu0 %v2687
        %2707 = vmatprep.subr.bf16.mxu0 0
        %2708 = vmatpush1.bf16.msra.mxu0 %v2688
        %2709 = vmatprep.subr.bf16.mxu0 0
        %2710 = vmatpush1.bf16.msra.mxu0 %v2689
        %2711 = vmatprep.subr.bf16.mxu0 0
        %2712 = vmatpush1.bf16.msra.mxu0 %v2690
        %2713 = vmatprep.subr.bf16.mxu0 0
        %2714 = vmatpush1.bf16.msra.mxu0 %v2691
        %2715 = vmatprep.subr.bf16.mxu0 0
        %2716 = vmatpush1.bf16.msra.mxu0 %v2692
        %2717 = vmatprep.subr.bf16.mxu0 0
        %2718 = vmatpush1.bf16.msra.mxu0 0
        %2719 = vmatprep.subr.bf16.mxu0 0
        %2720 = vmatpush1.bf16.msra.mxu0 0
        %2721 = vmatprep.subr.bf16.mxu0 0
        %2722 = vmatpush1.bf16.msra.mxu0 0
        %2723 = vmatprep.subr.bf16.mxu0 0
        %2724 = vmatpush1.bf16.msra.mxu0 0
        %2725 = vmatprep.subr.bf16.mxu0 0
        %2726 = vmatpush1.bf16.msra.mxu0 0
        %2727 = vmatprep.subr.bf16.mxu0 0
        %2728 = vmatpush1.bf16.msra.mxu0 0
        %2729 = vmatprep.subr.bf16.mxu0 0
        %2730 = vmatpush1.bf16.msra.mxu0 0
        %2731 = vmatprep.subr.bf16.mxu0 0
        %2732 = vmatpush1.bf16.msra.mxu0 0
        %2733 = vmatprep.mubr.bf16.mxu0 0
        %2734 = vmatmul.mubr.bf16.gmra.mrb[0].mxu0 %v2645
        %v2735 = vpop.f32.mrb[0].mxu0
        %v2736 = vadd.f32 %v2599, %v2735
        %v2737 = vpop.f32.mrb[0].mxu0
        %v2738 = vpop.f32.mrb[0].mxu0
        %v2739 = vadd.f32 %v2602, %v2738
        %v2740 = vpop.f32.mrb[0].mxu0
        %2741 = vmatprep.mubr.bf16.mxu0 0
        %2742 = vmatmul.mubr.bf16.gmra.mrb[0].mxu0 %v2646
        %v2743 = vpop.f32.mrb[0].mxu0
        %v2744 = vadd.f32 %v2607, %v2743
        %v2745 = vpop.f32.mrb[0].mxu0
        %v2746 = vpop.f32.mrb[0].mxu0
        %v2747 = vadd.f32 %v2610, %v2746
        %v2748 = vpop.f32.mrb[0].mxu0
        %2749 = vmatprep.mubr.bf16.mxu0 0
        %2750 = vmatmul.mubr.bf16.gmra.mrb[0].mxu0 %v2647
        %v2751 = vpop.f32.mrb[0].mxu0
        %v2752 = vadd.f32 %v2615, %v2751
        %v2753 = vpop.f32.mrb[0].mxu0
        %v2754 = vpop.f32.mrb[0].mxu0
        %v2755 = vadd.f32 %v2618, %v2754
        %v2756 = vpop.f32.mrb[0].mxu0
        %2757 = vmatprep.mubr.bf16.mxu0 0
        %2758 = vmatmul.mubr.bf16.gmra.mrb[0].mxu0 %v2648
        %v2759 = vpop.f32.mrb[0].mxu0
        %v2760 = vadd.f32 %v2623, %v2759
        %v2761 = vpop.f32.mrb[0].mxu0
        %v2762 = vpop.f32.mrb[0].mxu0
        %v2763 = vadd.f32 %v2626, %v2762
        %v2764 = vpop.f32.mrb[0].mxu0
        %2765 = vdwg.mxu0
        %v2766 = vld [vmem:[#allocation2 + $0x2] sm:$0xff]
        %v2767 = vld [vmem:[#allocation2 + $0x12] sm:$0xff]
        %v2768 = vld [vmem:[#allocation2 + $0x22] sm:$0xff]
        %v2769 = vld [vmem:[#allocation2 + $0x32] sm:$0xff]
        %v2770 = vld [vmem:[#allocation2 + $0x42] sm:$0xff]
        %v2771 = vld [vmem:[#allocation2 + $0x52] sm:$0xff]
        %v2772 = vld [vmem:[#allocation2 + $0x62] sm:$0xff]
        %v2773 = vld [vmem:[#allocation2 + $0x72] sm:$0xff]
        %v2774 = vpack.c.bf16 %v2766, %v2766
        %v2775 = vpack.c.bf16 %v2767, %v2767
        %v2776 = vpack.c.bf16 %v2768, %v2768
        %v2777 = vpack.c.bf16 %v2769, %v2769
        %v2778 = vpack.c.bf16 %v2770, %v2770
        %v2779 = vpack.c.bf16 %v2771, %v2771
        %v2780 = vpack.c.bf16 %v2772, %v2772
        %v2781 = vpack.c.bf16 %v2773, %v2773
        %s2782 = scalar_lea.vmem %s3, 128
        %v2783 = vld [vmem:[%s2782] sm:$0xf]
        %v2784 = vld [vmem:[%s2782 + $0x4] sm:$0xf]
        %v2785 = vld [vmem:[%s2782 + $0x8] sm:$0xf]
        %v2786 = vld [vmem:[%s2782 + $0xc] sm:$0xf]
        %v2787 = vld [vmem:[%s2782 + $0x10] sm:$0xf]
        %v2788 = vld [vmem:[%s2782 + $0x14] sm:$0xf]
        %v2789 = vld [vmem:[%s2782 + $0x18] sm:$0xf]
        %v2790 = vld [vmem:[%s2782 + $0x1c] sm:$0xf]
        %v2791 = vld [vmem:[%s2782 + $0x20] sm:$0xf]
        %v2792 = vld [vmem:[%s2782 + $0x24] sm:$0xf]
        %v2793 = vld [vmem:[%s2782 + $0x28] sm:$0xf]
        %v2794 = vld [vmem:[%s2782 + $0x2c] sm:$0xf]
        %v2795 = vld [vmem:[%s2782 + $0x30] sm:$0xf]
        %v2796 = vld [vmem:[%s2782 + $0x34] sm:$0xf]
        %v2797 = vld [vmem:[%s2782 + $0x38] sm:$0xf]
        %v2798 = vld [vmem:[%s2782 + $0x3c] sm:$0xf]
        %v2807 = vunpack.c.l.b16 %v2774
        %v2808 = vunpack.c.l.b16 %v2775
        %v2809 = vunpack.c.l.b16 %v2776
        %v2810 = vunpack.c.l.b16 %v2777
        %v2811 = vunpack.c.l.b16 %v2778
        %v2812 = vunpack.c.l.b16 %v2779
        %v2813 = vunpack.c.l.b16 %v2780
        %v2814 = vunpack.c.l.b16 %v2781
        %v2815 = vpack.c.b16 %v2808, %v2807
        %v2816 = vpack.c.b16 %v2810, %v2809
        %v2817 = vpack.c.b16 %v2812, %v2811
        %v2818 = vpack.c.b16 %v2814, %v2813
        %v2839 = vunpack.c.l.b16 %v2783
        %v2840 = vunpack.c.l.b16 %v2784
        %v2841 = vunpack.c.l.b16 %v2785
        %v2842 = vunpack.c.l.b16 %v2786
        %v2843 = vunpack.c.l.b16 %v2787
        %v2844 = vunpack.c.l.b16 %v2788
        %v2845 = vunpack.c.l.b16 %v2789
        %v2846 = vunpack.c.l.b16 %v2790
        %v2847 = vunpack.c.l.b16 %v2791
        %v2848 = vunpack.c.l.b16 %v2792
        %v2849 = vunpack.c.l.b16 %v2793
        %v2850 = vunpack.c.l.b16 %v2794
        %v2851 = vunpack.c.l.b16 %v2795
        %v2852 = vunpack.c.l.b16 %v2796
        %v2853 = vunpack.c.l.b16 %v2797
        %v2854 = vunpack.c.l.b16 %v2798
        %v2855 = vpack.c.b16 %v2840, %v2839
        %v2856 = vpack.c.b16 %v2842, %v2841
        %v2857 = vpack.c.b16 %v2844, %v2843
        %v2858 = vpack.c.b16 %v2846, %v2845
        %v2859 = vpack.c.b16 %v2848, %v2847
        %v2860 = vpack.c.b16 %v2850, %v2849
        %v2861 = vpack.c.b16 %v2852, %v2851
        %v2862 = vpack.c.b16 %v2854, %v2853
        %2871 = vmatprep.subr.bf16.mxu0 0
        %2872 = vmatpush1.bf16.msra.mxu0 %v2855
        %2873 = vmatprep.subr.bf16.mxu0 0
        %2874 = vmatpush1.bf16.msra.mxu0 %v2856
        %2875 = vmatprep.subr.bf16.mxu0 0
        %2876 = vmatpush1.bf16.msra.mxu0 %v2857
        %2877 = vmatprep.subr.bf16.mxu0 0
        %2878 = vmatpush1.bf16.msra.mxu0 %v2858
        %2879 = vmatprep.subr.bf16.mxu0 0
        %2880 = vmatpush1.bf16.msra.mxu0 %v2859
        %2881 = vmatprep.subr.bf16.mxu0 0
        %2882 = vmatpush1.bf16.msra.mxu0 %v2860
        %2883 = vmatprep.subr.bf16.mxu0 0
        %2884 = vmatpush1.bf16.msra.mxu0 %v2861
        %2885 = vmatprep.subr.bf16.mxu0 0
        %2886 = vmatpush1.bf16.msra.mxu0 %v2862
        %2887 = vmatprep.subr.bf16.mxu0 0
        %2888 = vmatpush1.bf16.msra.mxu0 0
        %2889 = vmatprep.subr.bf16.mxu0 0
        %2890 = vmatpush1.bf16.msra.mxu0 0
        %2891 = vmatprep.subr.bf16.mxu0 0
        %2892 = vmatpush1.bf16.msra.mxu0 0
        %2893 = vmatprep.subr.bf16.mxu0 0
        %2894 = vmatpush1.bf16.msra.mxu0 0
        %2895 = vmatprep.subr.bf16.mxu0 0
        %2896 = vmatpush1.bf16.msra.mxu0 0
        %2897 = vmatprep.subr.bf16.mxu0 0
        %2898 = vmatpush1.bf16.msra.mxu0 0
        %2899 = vmatprep.subr.bf16.mxu0 0
        %2900 = vmatpush1.bf16.msra.mxu0 0
        %2901 = vmatprep.subr.bf16.mxu0 0
        %2902 = vmatpush1.bf16.msra.mxu0 0
        %2903 = vmatprep.mubr.bf16.mxu0 0
        %2904 = vmatmul.mubr.bf16.gmra.mrb[0].mxu0 %v2815
        %v2905 = vpop.f32.mrb[0].mxu0
        %v2906 = vadd.f32 0.0, %v2905
        %v2907 = vpop.f32.mrb[0].mxu0
        %v2908 = vpop.f32.mrb[0].mxu0
        %v2909 = vadd.f32 0.0, %v2908
        %v2910 = vpop.f32.mrb[0].mxu0
        %2911 = vmatprep.mubr.bf16.mxu0 0
        %2912 = vmatmul.mubr.bf16.gmra.mrb[0].mxu0 %v2816
        %v2913 = vpop.f32.mrb[0].mxu0
        %v2914 = vadd.f32 0.0, %v2913
        %v2915 = vpop.f32.mrb[0].mxu0
        %v2916 = vpop.f32.mrb[0].mxu0
        %v2917 = vadd.f32 0.0, %v2916
        %v2918 = vpop.f32.mrb[0].mxu0
        %2919 = vmatprep.mubr.bf16.mxu0 0
        %2920 = vmatmul.mubr.bf16.gmra.mrb[0].mxu0 %v2817
        %v2921 = vpop.f32.mrb[0].mxu0
        %v2922 = vadd.f32 0.0, %v2921
        %v2923 = vpop.f32.mrb[0].mxu0
        %v2924 = vpop.f32.mrb[0].mxu0
        %v2925 = vadd.f32 0.0, %v2924
        %v2926 = vpop.f32.mrb[0].mxu0
        %2927 = vmatprep.mubr.bf16.mxu0 0
        %2928 = vmatmul.mubr.bf16.gmra.mrb[0].mxu0 %v2818
        %v2929 = vpop.f32.mrb[0].mxu0
        %v2930 = vadd.f32 0.0, %v2929
        %v2931 = vpop.f32.mrb[0].mxu0
        %v2932 = vpop.f32.mrb[0].mxu0
        %v2933 = vadd.f32 0.0, %v2932
        %v2934 = vpop.f32.mrb[0].mxu0
        %2935 = vdwg.mxu0
        %v2936 = vadd.f32 %v2736, %v2906
        %v2937 = vadd.f32 %v2739, %v2909
        %v2938 = vadd.f32 %v2744, %v2914
        %v2939 = vadd.f32 %v2747, %v2917
        %v2940 = vadd.f32 %v2752, %v2922
        %v2941 = vadd.f32 %v2755, %v2925
        %v2942 = vadd.f32 %v2760, %v2930
        %v2943 = vadd.f32 %v2763, %v2933
        %v2944 = vld [vmem:[%s2375] sm:$0xff]
        %v2945 = vld [vmem:[%s2375 + $0x10] sm:$0xff]
        %v2946 = vld [vmem:[%s2375 + $0x20] sm:$0xff]
        %v2947 = vld [vmem:[%s2375 + $0x30] sm:$0xff]
        %v2948 = vld [vmem:[%s2375 + $0x40] sm:$0xff]
        %v2949 = vld [vmem:[%s2375 + $0x50] sm:$0xff]
        %v2950 = vld [vmem:[%s2375 + $0x60] sm:$0xff]
        %v2951 = vld [vmem:[%s2375 + $0x70] sm:$0xff]
        %v2952 = vpack.c.bf16 %v2944, %v2944
        %v2953 = vpack.c.bf16 %v2945, %v2945
        %v2954 = vpack.c.bf16 %v2946, %v2946
        %v2955 = vpack.c.bf16 %v2947, %v2947
        %v2956 = vpack.c.bf16 %v2948, %v2948
        %v2957 = vpack.c.bf16 %v2949, %v2949
        %v2958 = vpack.c.bf16 %v2950, %v2950
        %v2959 = vpack.c.bf16 %v2951, %v2951
        %s2960 = scalar_lea.vmem %s3, 192
        %v2961 = vld [vmem:[%s2960] sm:$0xf]
        %v2962 = vld [vmem:[%s2960 + $0x4] sm:$0xf]
        %v2963 = vld [vmem:[%s2960 + $0x8] sm:$0xf]
        %v2964 = vld [vmem:[%s2960 + $0xc] sm:$0xf]
        %v2965 = vld [vmem:[%s2960 + $0x10] sm:$0xf]
        %v2966 = vld [vmem:[%s2960 + $0x14] sm:$0xf]
        %v2967 = vld [vmem:[%s2960 + $0x18] sm:$0xf]
        %v2968 = vld [vmem:[%s2960 + $0x1c] sm:$0xf]
        %v2969 = vld [vmem:[%s2960 + $0x20] sm:$0xf]
        %v2970 = vld [vmem:[%s2960 + $0x24] sm:$0xf]
        %v2971 = vld [vmem:[%s2960 + $0x28] sm:$0xf]
        %v2972 = vld [vmem:[%s2960 + $0x2c] sm:$0xf]
        %v2973 = vld [vmem:[%s2960 + $0x30] sm:$0xf]
        %v2974 = vld [vmem:[%s2960 + $0x34] sm:$0xf]
        %v2975 = vld [vmem:[%s2960 + $0x38] sm:$0xf]
        %v2976 = vld [vmem:[%s2960 + $0x3c] sm:$0xf]
        %v2985 = vunpack.c.l.b16 %v2952
        %v2986 = vunpack.c.l.b16 %v2953
        %v2987 = vunpack.c.l.b16 %v2954
        %v2988 = vunpack.c.l.b16 %v2955
        %v2989 = vunpack.c.l.b16 %v2956
        %v2990 = vunpack.c.l.b16 %v2957
        %v2991 = vunpack.c.l.b16 %v2958
        %v2992 = vunpack.c.l.b16 %v2959
        %v2993 = vpack.c.b16 %v2986, %v2985
        %v2994 = vpack.c.b16 %v2988, %v2987
        %v2995 = vpack.c.b16 %v2990, %v2989
        %v2996 = vpack.c.b16 %v2992, %v2991
        %v3017 = vunpack.c.l.b16 %v2961
        %v3018 = vunpack.c.l.b16 %v2962
        %v3019 = vunpack.c.l.b16 %v2963
        %v3020 = vunpack.c.l.b16 %v2964
        %v3021 = vunpack.c.l.b16 %v2965
        %v3022 = vunpack.c.l.b16 %v2966
        %v3023 = vunpack.c.l.b16 %v2967
        %v3024 = vunpack.c.l.b16 %v2968
        %v3025 = vunpack.c.l.b16 %v2969
        %v3026 = vunpack.c.l.b16 %v2970
        %v3027 = vunpack.c.l.b16 %v2971
        %v3028 = vunpack.c.l.b16 %v2972
        %v3029 = vunpack.c.l.b16 %v2973
        %v3030 = vunpack.c.l.b16 %v2974
        %v3031 = vunpack.c.l.b16 %v2975
        %v3032 = vunpack.c.l.b16 %v2976
        %v3033 = vpack.c.b16 %v3018, %v3017
        %v3034 = vpack.c.b16 %v3020, %v3019
        %v3035 = vpack.c.b16 %v3022, %v3021
        %v3036 = vpack.c.b16 %v3024, %v3023
        %v3037 = vpack.c.b16 %v3026, %v3025
        %v3038 = vpack.c.b16 %v3028, %v3027
        %v3039 = vpack.c.b16 %v3030, %v3029
        %v3040 = vpack.c.b16 %v3032, %v3031
        %3049 = vmatprep.subr.bf16.mxu0 0
        %3050 = vmatpush1.bf16.msra.mxu0 %v3033
        %3051 = vmatprep.subr.bf16.mxu0 0
        %3052 = vmatpush1.bf16.msra.mxu0 %v3034
        %3053 = vmatprep.subr.bf16.mxu0 0
        %3054 = vmatpush1.bf16.msra.mxu0 %v3035
        %3055 = vmatprep.subr.bf16.mxu0 0
        %3056 = vmatpush1.bf16.msra.mxu0 %v3036
        %3057 = vmatprep.subr.bf16.mxu0 0
        %3058 = vmatpush1.bf16.msra.mxu0 %v3037
        %3059 = vmatprep.subr.bf16.mxu0 0
        %3060 = vmatpush1.bf16.msra.mxu0 %v3038
        %3061 = vmatprep.subr.bf16.mxu0 0
        %3062 = vmatpush1.bf16.msra.mxu0 %v3039
        %3063 = vmatprep.subr.bf16.mxu0 0
        %3064 = vmatpush1.bf16.msra.mxu0 %v3040
        %3065 = vmatprep.subr.bf16.mxu0 0
        %3066 = vmatpush1.bf16.msra.mxu0 0
        %3067 = vmatprep.subr.bf16.mxu0 0
        %3068 = vmatpush1.bf16.msra.mxu0 0
        %3069 = vmatprep.subr.bf16.mxu0 0
        %3070 = vmatpush1.bf16.msra.mxu0 0
        %3071 = vmatprep.subr.bf16.mxu0 0
        %3072 = vmatpush1.bf16.msra.mxu0 0
        %3073 = vmatprep.subr.bf16.mxu0 0
        %3074 = vmatpush1.bf16.msra.mxu0 0
        %3075 = vmatprep.subr.bf16.mxu0 0
        %3076 = vmatpush1.bf16.msra.mxu0 0
        %3077 = vmatprep.subr.bf16.mxu0 0
        %3078 = vmatpush1.bf16.msra.mxu0 0
        %3079 = vmatprep.subr.bf16.mxu0 0
        %3080 = vmatpush1.bf16.msra.mxu0 0
        %3081 = vmatprep.mubr.bf16.mxu0 0
        %3082 = vmatmul.mubr.bf16.gmra.mrb[0].mxu0 %v2993
        %v3083 = vpop.f32.mrb[0].mxu0
        %v3084 = vadd.f32 0.0, %v3083
        %v3085 = vpop.f32.mrb[0].mxu0
        %v3086 = vpop.f32.mrb[0].mxu0
        %v3087 = vadd.f32 0.0, %v3086
        %v3088 = vpop.f32.mrb[0].mxu0
        %3089 = vmatprep.mubr.bf16.mxu0 0
        %3090 = vmatmul.mubr.bf16.gmra.mrb[0].mxu0 %v2994
        %v3091 = vpop.f32.mrb[0].mxu0
        %v3092 = vadd.f32 0.0, %v3091
        %v3093 = vpop.f32.mrb[0].mxu0
        %v3094 = vpop.f32.mrb[0].mxu0
        %v3095 = vadd.f32 0.0, %v3094
        %v3096 = vpop.f32.mrb[0].mxu0
        %3097 = vmatprep.mubr.bf16.mxu0 0
        %3098 = vmatmul.mubr.bf16.gmra.mrb[0].mxu0 %v2995
        %v3099 = vpop.f32.mrb[0].mxu0
        %v3100 = vadd.f32 0.0, %v3099
        %v3101 = vpop.f32.mrb[0].mxu0
        %v3102 = vpop.f32.mrb[0].mxu0
        %v3103 = vadd.f32 0.0, %v3102
        %v3104 = vpop.f32.mrb[0].mxu0
        %3105 = vmatprep.mubr.bf16.mxu0 0
        %3106 = vmatmul.mubr.bf16.gmra.mrb[0].mxu0 %v2996
        %v3107 = vpop.f32.mrb[0].mxu0
        %v3108 = vadd.f32 0.0, %v3107
        %v3109 = vpop.f32.mrb[0].mxu0
        %v3110 = vpop.f32.mrb[0].mxu0
        %v3111 = vadd.f32 0.0, %v3110
        %v3112 = vpop.f32.mrb[0].mxu0
        %3113 = vdwg.mxu0
        %v3114 = vadd.f32 %v2936, %v3084
        %v3115 = vadd.f32 %v2937, %v3087
        %v3116 = vadd.f32 %v2938, %v3092
        %v3117 = vadd.f32 %v2939, %v3095
        %v3118 = vadd.f32 %v2940, %v3100
        %v3119 = vadd.f32 %v2941, %v3103
        %v3120 = vadd.f32 %v2942, %v3108
        %v3121 = vadd.f32 %v2943, %v3111
        %v3122 = vld [vmem:[%s2375 + $0x1] sm:$0xff]
        %v3123 = vld [vmem:[%s2375 + $0x11] sm:$0xff]
        %v3124 = vld [vmem:[%s2375 + $0x21] sm:$0xff]
        %v3125 = vld [vmem:[%s2375 + $0x31] sm:$0xff]
        %v3126 = vld [vmem:[%s2375 + $0x41] sm:$0xff]
        %v3127 = vld [vmem:[%s2375 + $0x51] sm:$0xff]
        %v3128 = vld [vmem:[%s2375 + $0x61] sm:$0xff]
        %v3129 = vld [vmem:[%s2375 + $0x71] sm:$0xff]
        %v3130 = vpack.c.bf16 %v3122, %v3122
        %v3131 = vpack.c.bf16 %v3123, %v3123
        %v3132 = vpack.c.bf16 %v3124, %v3124
        %v3133 = vpack.c.bf16 %v3125, %v3125
        %v3134 = vpack.c.bf16 %v3126, %v3126
        %v3135 = vpack.c.bf16 %v3127, %v3127
        %v3136 = vpack.c.bf16 %v3128, %v3128
        %v3137 = vpack.c.bf16 %v3129, %v3129
        %s3138 = scalar_lea.vmem %s3, 256
        %v3139 = vld [vmem:[%s3138] sm:$0xf]
        %v3140 = vld [vmem:[%s3138 + $0x4] sm:$0xf]
        %v3141 = vld [vmem:[%s3138 + $0x8] sm:$0xf]
        %v3142 = vld [vmem:[%s3138 + $0xc] sm:$0xf]
        %v3143 = vld [vmem:[%s3138 + $0x10] sm:$0xf]
        %v3144 = vld [vmem:[%s3138 + $0x14] sm:$0xf]
        %v3145 = vld [vmem:[%s3138 + $0x18] sm:$0xf]
        %v3146 = vld [vmem:[%s3138 + $0x1c] sm:$0xf]
        %v3147 = vld [vmem:[%s3138 + $0x20] sm:$0xf]
        %v3148 = vld [vmem:[%s3138 + $0x24] sm:$0xf]
        %v3149 = vld [vmem:[%s3138 + $0x28] sm:$0xf]
        %v3150 = vld [vmem:[%s3138 + $0x2c] sm:$0xf]
        %v3151 = vld [vmem:[%s3138 + $0x30] sm:$0xf]
        %v3152 = vld [vmem:[%s3138 + $0x34] sm:$0xf]
        %v3153 = vld [vmem:[%s3138 + $0x38] sm:$0xf]
        %v3154 = vld [vmem:[%s3138 + $0x3c] sm:$0xf]
        %v3163 = vunpack.c.l.b16 %v3130
        %v3164 = vunpack.c.l.b16 %v3131
        %v3165 = vunpack.c.l.b16 %v3132
        %v3166 = vunpack.c.l.b16 %v3133
        %v3167 = vunpack.c.l.b16 %v3134
        %v3168 = vunpack.c.l.b16 %v3135
        %v3169 = vunpack.c.l.b16 %v3136
        %v3170 = vunpack.c.l.b16 %v3137
        %v3171 = vpack.c.b16 %v3164, %v3163
        %v3172 = vpack.c.b16 %v3166, %v3165
        %v3173 = vpack.c.b16 %v3168, %v3167
        %v3174 = vpack.c.b16 %v3170, %v3169
        %v3195 = vunpack.c.l.b16 %v3139
        %v3196 = vunpack.c.l.b16 %v3140
        %v3197 = vunpack.c.l.b16 %v3141
        %v3198 = vunpack.c.l.b16 %v3142
        %v3199 = vunpack.c.l.b16 %v3143
        %v3200 = vunpack.c.l.b16 %v3144
        %v3201 = vunpack.c.l.b16 %v3145
        %v3202 = vunpack.c.l.b16 %v3146
        %v3203 = vunpack.c.l.b16 %v3147
        %v3204 = vunpack.c.l.b16 %v3148
        %v3205 = vunpack.c.l.b16 %v3149
        %v3206 = vunpack.c.l.b16 %v3150
        %v3207 = vunpack.c.l.b16 %v3151
        %v3208 = vunpack.c.l.b16 %v3152
        %v3209 = vunpack.c.l.b16 %v3153
        %v3210 = vunpack.c.l.b16 %v3154
        %v3211 = vpack.c.b16 %v3196, %v3195
        %v3212 = vpack.c.b16 %v3198, %v3197
        %v3213 = vpack.c.b16 %v3200, %v3199
        %v3214 = vpack.c.b16 %v3202, %v3201
        %v3215 = vpack.c.b16 %v3204, %v3203
        %v3216 = vpack.c.b16 %v3206, %v3205
        %v3217 = vpack.c.b16 %v3208, %v3207
        %v3218 = vpack.c.b16 %v3210, %v3209
        %3227 = vmatprep.subr.bf16.mxu0 0
        %3228 = vmatpush1.bf16.msra.mxu0 %v3211
        %3229 = vmatprep.subr.bf16.mxu0 0
        %3230 = vmatpush1.bf16.msra.mxu0 %v3212
        %3231 = vmatprep.subr.bf16.mxu0 0
        %3232 = vmatpush1.bf16.msra.mxu0 %v3213
        %3233 = vmatprep.subr.bf16.mxu0 0
        %3234 = vmatpush1.bf16.msra.mxu0 %v3214
        %3235 = vmatprep.subr.bf16.mxu0 0
        %3236 = vmatpush1.bf16.msra.mxu0 %v3215
        %3237 = vmatprep.subr.bf16.mxu0 0
        %3238 = vmatpush1.bf16.msra.mxu0 %v3216
        %3239 = vmatprep.subr.bf16.mxu0 0
        %3240 = vmatpush1.bf16.msra.mxu0 %v3217
        %3241 = vmatprep.subr.bf16.mxu0 0
        %3242 = vmatpush1.bf16.msra.mxu0 %v3218
        %3243 = vmatprep.subr.bf16.mxu0 0
        %3244 = vmatpush1.bf16.msra.mxu0 0
        %3245 = vmatprep.subr.bf16.mxu0 0
        %3246 = vmatpush1.bf16.msra.mxu0 0
        %3247 = vmatprep.subr.bf16.mxu0 0
        %3248 = vmatpush1.bf16.msra.mxu0 0
        %3249 = vmatprep.subr.bf16.mxu0 0
        %3250 = vmatpush1.bf16.msra.mxu0 0
        %3251 = vmatprep.subr.bf16.mxu0 0
        %3252 = vmatpush1.bf16.msra.mxu0 0
        %3253 = vmatprep.subr.bf16.mxu0 0
        %3254 = vmatpush1.bf16.msra.mxu0 0
        %3255 = vmatprep.subr.bf16.mxu0 0
        %3256 = vmatpush1.bf16.msra.mxu0 0
        %3257 = vmatprep.subr.bf16.mxu0 0
        %3258 = vmatpush1.bf16.msra.mxu0 0
        %3259 = vmatprep.mubr.bf16.mxu0 0
        %3260 = vmatmul.mubr.bf16.gmra.mrb[0].mxu0 %v3171
        %v3261 = vpop.f32.mrb[0].mxu0
        %v3262 = vadd.f32 0.0, %v3261
        %v3263 = vpop.f32.mrb[0].mxu0
        %v3264 = vpop.f32.mrb[0].mxu0
        %v3265 = vadd.f32 0.0, %v3264
        %v3266 = vpop.f32.mrb[0].mxu0
        %3267 = vmatprep.mubr.bf16.mxu0 0
        %3268 = vmatmul.mubr.bf16.gmra.mrb[0].mxu0 %v3172
        %v3269 = vpop.f32.mrb[0].mxu0
        %v3270 = vadd.f32 0.0, %v3269
        %v3271 = vpop.f32.mrb[0].mxu0
        %v3272 = vpop.f32.mrb[0].mxu0
        %v3273 = vadd.f32 0.0, %v3272
        %v3274 = vpop.f32.mrb[0].mxu0
        %3275 = vmatprep.mubr.bf16.mxu0 0
        %3276 = vmatmul.mubr.bf16.gmra.mrb[0].mxu0 %v3173
        %v3277 = vpop.f32.mrb[0].mxu0
        %v3278 = vadd.f32 0.0, %v3277
        %v3279 = vpop.f32.mrb[0].mxu0
        %v3280 = vpop.f32.mrb[0].mxu0
        %v3281 = vadd.f32 0.0, %v3280
        %v3282 = vpop.f32.mrb[0].mxu0
        %3283 = vmatprep.mubr.bf16.mxu0 0
        %3284 = vmatmul.mubr.bf16.gmra.mrb[0].mxu0 %v3174
        %v3285 = vpop.f32.mrb[0].mxu0
        %v3286 = vadd.f32 0.0, %v3285
        %v3287 = vpop.f32.mrb[0].mxu0
        %v3288 = vpop.f32.mrb[0].mxu0
        %v3289 = vadd.f32 0.0, %v3288
        %v3290 = vpop.f32.mrb[0].mxu0
        %3291 = vdwg.mxu0
        %v3292 = vadd.f32 %v3114, %v3262
        %v3293 = vadd.f32 %v3115, %v3265
        %v3294 = vadd.f32 %v3116, %v3270
        %v3295 = vadd.f32 %v3117, %v3273
        %v3296 = vadd.f32 %v3118, %v3278
        %v3297 = vadd.f32 %v3119, %v3281
        %v3298 = vadd.f32 %v3120, %v3286
        %v3299 = vadd.f32 %v3121, %v3289
        %v3300 = vld [vmem:[%s2375 + $0x2] sm:$0xff]
        %v3301 = vld [vmem:[%s2375 + $0x12] sm:$0xff]
        %v3302 = vld [vmem:[%s2375 + $0x22] sm:$0xff]
        %v3303 = vld [vmem:[%s2375 + $0x32] sm:$0xff]
        %v3304 = vld [vmem:[%s2375 + $0x42] sm:$0xff]
        %v3305 = vld [vmem:[%s2375 + $0x52] sm:$0xff]
        %v3306 = vld [vmem:[%s2375 + $0x62] sm:$0xff]
        %v3307 = vld [vmem:[%s2375 + $0x72] sm:$0xff]
        %v3308 = vpack.c.bf16 %v3300, %v3300
        %v3309 = vpack.c.bf16 %v3301, %v3301
        %v3310 = vpack.c.bf16 %v3302, %v3302
        %v3311 = vpack.c.bf16 %v3303, %v3303
        %v3312 = vpack.c.bf16 %v3304, %v3304
        %v3313 = vpack.c.bf16 %v3305, %v3305
        %v3314 = vpack.c.bf16 %v3306, %v3306
        %v3315 = vpack.c.bf16 %v3307, %v3307
        %s3316 = scalar_lea.vmem %s3, 320
        %v3317 = vld [vmem:[%s3316] sm:$0xf]
        %v3318 = vld [vmem:[%s3316 + $0x4] sm:$0xf]
        %v3319 = vld [vmem:[%s3316 + $0x8] sm:$0xf]
        %v3320 = vld [vmem:[%s3316 + $0xc] sm:$0xf]
        %v3321 = vld [vmem:[%s3316 + $0x10] sm:$0xf]
        %v3322 = vld [vmem:[%s3316 + $0x14] sm:$0xf]
        %v3323 = vld [vmem:[%s3316 + $0x18] sm:$0xf]
        %v3324 = vld [vmem:[%s3316 + $0x1c] sm:$0xf]
        %v3325 = vld [vmem:[%s3316 + $0x20] sm:$0xf]
        %v3326 = vld [vmem:[%s3316 + $0x24] sm:$0xf]
        %v3327 = vld [vmem:[%s3316 + $0x28] sm:$0xf]
        %v3328 = vld [vmem:[%s3316 + $0x2c] sm:$0xf]
        %v3329 = vld [vmem:[%s3316 + $0x30] sm:$0xf]
        %v3330 = vld [vmem:[%s3316 + $0x34] sm:$0xf]
        %v3331 = vld [vmem:[%s3316 + $0x38] sm:$0xf]
        %v3332 = vld [vmem:[%s3316 + $0x3c] sm:$0xf]
        %v3341 = vunpack.c.l.b16 %v3308
        %v3342 = vunpack.c.l.b16 %v3309
        %v3343 = vunpack.c.l.b16 %v3310
        %v3344 = vunpack.c.l.b16 %v3311
        %v3345 = vunpack.c.l.b16 %v3312
        %v3346 = vunpack.c.l.b16 %v3313
        %v3347 = vunpack.c.l.b16 %v3314
        %v3348 = vunpack.c.l.b16 %v3315
        %v3349 = vpack.c.b16 %v3342, %v3341
        %v3350 = vpack.c.b16 %v3344, %v3343
        %v3351 = vpack.c.b16 %v3346, %v3345
        %v3352 = vpack.c.b16 %v3348, %v3347
        %v3373 = vunpack.c.l.b16 %v3317
        %v3374 = vunpack.c.l.b16 %v3318
        %v3375 = vunpack.c.l.b16 %v3319
        %v3376 = vunpack.c.l.b16 %v3320
        %v3377 = vunpack.c.l.b16 %v3321
        %v3378 = vunpack.c.l.b16 %v3322
        %v3379 = vunpack.c.l.b16 %v3323
        %v3380 = vunpack.c.l.b16 %v3324
        %v3381 = vunpack.c.l.b16 %v3325
        %v3382 = vunpack.c.l.b16 %v3326
        %v3383 = vunpack.c.l.b16 %v3327
        %v3384 = vunpack.c.l.b16 %v3328
        %v3385 = vunpack.c.l.b16 %v3329
        %v3386 = vunpack.c.l.b16 %v3330
        %v3387 = vunpack.c.l.b16 %v3331
        %v3388 = vunpack.c.l.b16 %v3332
        %v3389 = vpack.c.b16 %v3374, %v3373
        %v3390 = vpack.c.b16 %v3376, %v3375
        %v3391 = vpack.c.b16 %v3378, %v3377
        %v3392 = vpack.c.b16 %v3380, %v3379
        %v3393 = vpack.c.b16 %v3382, %v3381
        %v3394 = vpack.c.b16 %v3384, %v3383
        %v3395 = vpack.c.b16 %v3386, %v3385
        %v3396 = vpack.c.b16 %v3388, %v3387
        %3405 = vmatprep.subr.bf16.mxu0 0
        %3406 = vmatpush1.bf16.msra.mxu0 %v3389
        %3407 = vmatprep.subr.bf16.mxu0 0
        %3408 = vmatpush1.bf16.msra.mxu0 %v3390
        %3409 = vmatprep.subr.bf16.mxu0 0
        %3410 = vmatpush1.bf16.msra.mxu0 %v3391
        %3411 = vmatprep.subr.bf16.mxu0 0
        %3412 = vmatpush1.bf16.msra.mxu0 %v3392
        %3413 = vmatprep.subr.bf16.mxu0 0
        %3414 = vmatpush1.bf16.msra.mxu0 %v3393
        %3415 = vmatprep.subr.bf16.mxu0 0
        %3416 = vmatpush1.bf16.msra.mxu0 %v3394
        %3417 = vmatprep.subr.bf16.mxu0 0
        %3418 = vmatpush1.bf16.msra.mxu0 %v3395
        %3419 = vmatprep.subr.bf16.mxu0 0
        %3420 = vmatpush1.bf16.msra.mxu0 %v3396
        %3421 = vmatprep.subr.bf16.mxu0 0
        %3422 = vmatpush1.bf16.msra.mxu0 0
        %3423 = vmatprep.subr.bf16.mxu0 0
        %3424 = vmatpush1.bf16.msra.mxu0 0
        %3425 = vmatprep.subr.bf16.mxu0 0
        %3426 = vmatpush1.bf16.msra.mxu0 0
        %3427 = vmatprep.subr.bf16.mxu0 0
        %3428 = vmatpush1.bf16.msra.mxu0 0
        %3429 = vmatprep.subr.bf16.mxu0 0
        %3430 = vmatpush1.bf16.msra.mxu0 0
        %3431 = vmatprep.subr.bf16.mxu0 0
        %3432 = vmatpush1.bf16.msra.mxu0 0
        %3433 = vmatprep.subr.bf16.mxu0 0
        %3434 = vmatpush1.bf16.msra.mxu0 0
        %3435 = vmatprep.subr.bf16.mxu0 0
        %3436 = vmatpush1.bf16.msra.mxu0 0
        %3437 = vmatprep.mubr.bf16.mxu0 0
        %3438 = vmatmul.mubr.bf16.gmra.mrb[0].mxu0 %v3349
        %v3439 = vpop.f32.mrb[0].mxu0
        %v3440 = vadd.f32 0.0, %v3439
        %v3441 = vpop.f32.mrb[0].mxu0
        %v3442 = vpop.f32.mrb[0].mxu0
        %v3443 = vadd.f32 0.0, %v3442
        %v3444 = vpop.f32.mrb[0].mxu0
        %3445 = vmatprep.mubr.bf16.mxu0 0
        %3446 = vmatmul.mubr.bf16.gmra.mrb[0].mxu0 %v3350
        %v3447 = vpop.f32.mrb[0].mxu0
        %v3448 = vadd.f32 0.0, %v3447
        %v3449 = vpop.f32.mrb[0].mxu0
        %v3450 = vpop.f32.mrb[0].mxu0
        %v3451 = vadd.f32 0.0, %v3450
        %v3452 = vpop.f32.mrb[0].mxu0
        %3453 = vmatprep.mubr.bf16.mxu0 0
        %3454 = vmatmul.mubr.bf16.gmra.mrb[0].mxu0 %v3351
        %v3455 = vpop.f32.mrb[0].mxu0
        %v3456 = vadd.f32 0.0, %v3455
        %v3457 = vpop.f32.mrb[0].mxu0
        %v3458 = vpop.f32.mrb[0].mxu0
        %v3459 = vadd.f32 0.0, %v3458
        %v3460 = vpop.f32.mrb[0].mxu0
        %3461 = vmatprep.mubr.bf16.mxu0 0
        %3462 = vmatmul.mubr.bf16.gmra.mrb[0].mxu0 %v3352
        %v3463 = vpop.f32.mrb[0].mxu0
        %v3464 = vadd.f32 0.0, %v3463
        %v3465 = vpop.f32.mrb[0].mxu0
        %v3466 = vpop.f32.mrb[0].mxu0
        %v3467 = vadd.f32 0.0, %v3466
        %v3468 = vpop.f32.mrb[0].mxu0
        %3469 = vdwg.mxu0
        %v3470 = vadd.f32 %v3292, %v3440
        %v3471 = vadd.f32 %v3293, %v3443
        %v3472 = vadd.f32 %v3294, %v3448
        %v3473 = vadd.f32 %v3295, %v3451
        %v3474 = vadd.f32 %v3296, %v3456
        %v3475 = vadd.f32 %v3297, %v3459
        %v3476 = vadd.f32 %v3298, %v3464
        %v3477 = vadd.f32 %v3299, %v3467
        %s3478 = scalar_lea.vmem [#allocation2], 32
        %v3479 = vld [vmem:[%s3478] sm:$0xff]
        %v3480 = vld [vmem:[%s3478 + $0x10] sm:$0xff]
        %v3481 = vld [vmem:[%s3478 + $0x20] sm:$0xff]
        %v3482 = vld [vmem:[%s3478 + $0x30] sm:$0xff]
        %v3483 = vld [vmem:[%s3478 + $0x40] sm:$0xff]
        %v3484 = vld [vmem:[%s3478 + $0x50] sm:$0xff]
        %v3485 = vld [vmem:[%s3478 + $0x60] sm:$0xff]
        %v3486 = vld [vmem:[%s3478 + $0x70] sm:$0xff]
        %v3487 = vpack.c.bf16 %v3479, %v3479
        %v3488 = vpack.c.bf16 %v3480, %v3480
        %v3489 = vpack.c.bf16 %v3481, %v3481
        %v3490 = vpack.c.bf16 %v3482, %v3482
        %v3491 = vpack.c.bf16 %v3483, %v3483
        %v3492 = vpack.c.bf16 %v3484, %v3484
        %v3493 = vpack.c.bf16 %v3485, %v3485
        %v3494 = vpack.c.bf16 %v3486, %v3486
        %s3495 = scalar_lea.vmem %s3, 384
        %v3496 = vld [vmem:[%s3495] sm:$0xf]
        %v3497 = vld [vmem:[%s3495 + $0x4] sm:$0xf]
        %v3498 = vld [vmem:[%s3495 + $0x8] sm:$0xf]
        %v3499 = vld [vmem:[%s3495 + $0xc] sm:$0xf]
        %v3500 = vld [vmem:[%s3495 + $0x10] sm:$0xf]
        %v3501 = vld [vmem:[%s3495 + $0x14] sm:$0xf]
        %v3502 = vld [vmem:[%s3495 + $0x18] sm:$0xf]
        %v3503 = vld [vmem:[%s3495 + $0x1c] sm:$0xf]
        %v3504 = vld [vmem:[%s3495 + $0x20] sm:$0xf]
        %v3505 = vld [vmem:[%s3495 + $0x24] sm:$0xf]
        %v3506 = vld [vmem:[%s3495 + $0x28] sm:$0xf]
        %v3507 = vld [vmem:[%s3495 + $0x2c] sm:$0xf]
        %v3508 = vld [vmem:[%s3495 + $0x30] sm:$0xf]
        %v3509 = vld [vmem:[%s3495 + $0x34] sm:$0xf]
        %v3510 = vld [vmem:[%s3495 + $0x38] sm:$0xf]
        %v3511 = vld [vmem:[%s3495 + $0x3c] sm:$0xf]
        %v3520 = vunpack.c.l.b16 %v3487
        %v3521 = vunpack.c.l.b16 %v3488
        %v3522 = vunpack.c.l.b16 %v3489
        %v3523 = vunpack.c.l.b16 %v3490
        %v3524 = vunpack.c.l.b16 %v3491
        %v3525 = vunpack.c.l.b16 %v3492
        %v3526 = vunpack.c.l.b16 %v3493
        %v3527 = vunpack.c.l.b16 %v3494
        %v3528 = vpack.c.b16 %v3521, %v3520
        %v3529 = vpack.c.b16 %v3523, %v3522
        %v3530 = vpack.c.b16 %v3525, %v3524
        %v3531 = vpack.c.b16 %v3527, %v3526
        %v3552 = vunpack.c.l.b16 %v3496
        %v3553 = vunpack.c.l.b16 %v3497
        %v3554 = vunpack.c.l.b16 %v3498
        %v3555 = vunpack.c.l.b16 %v3499
        %v3556 = vunpack.c.l.b16 %v3500
        %v3557 = vunpack.c.l.b16 %v3501
        %v3558 = vunpack.c.l.b16 %v3502
        %v3559 = vunpack.c.l.b16 %v3503
        %v3560 = vunpack.c.l.b16 %v3504
        %v3561 = vunpack.c.l.b16 %v3505
        %v3562 = vunpack.c.l.b16 %v3506
        %v3563 = vunpack.c.l.b16 %v3507
        %v3564 = vunpack.c.l.b16 %v3508
        %v3565 = vunpack.c.l.b16 %v3509
        %v3566 = vunpack.c.l.b16 %v3510
        %v3567 = vunpack.c.l.b16 %v3511
        %v3568 = vpack.c.b16 %v3553, %v3552
        %v3569 = vpack.c.b16 %v3555, %v3554
        %v3570 = vpack.c.b16 %v3557, %v3556
        %v3571 = vpack.c.b16 %v3559, %v3558
        %v3572 = vpack.c.b16 %v3561, %v3560
        %v3573 = vpack.c.b16 %v3563, %v3562
        %v3574 = vpack.c.b16 %v3565, %v3564
        %v3575 = vpack.c.b16 %v3567, %v3566
        %3584 = vmatprep.subr.bf16.mxu0 0
        %3585 = vmatpush1.bf16.msra.mxu0 %v3568
        %3586 = vmatprep.subr.bf16.mxu0 0
        %3587 = vmatpush1.bf16.msra.mxu0 %v3569
        %3588 = vmatprep.subr.bf16.mxu0 0
        %3589 = vmatpush1.bf16.msra.mxu0 %v3570
        %3590 = vmatprep.subr.bf16.mxu0 0
        %3591 = vmatpush1.bf16.msra.mxu0 %v3571
        %3592 = vmatprep.subr.bf16.mxu0 0
        %3593 = vmatpush1.bf16.msra.mxu0 %v3572
        %3594 = vmatprep.subr.bf16.mxu0 0
        %3595 = vmatpush1.bf16.msra.mxu0 %v3573
        %3596 = vmatprep.subr.bf16.mxu0 0
        %3597 = vmatpush1.bf16.msra.mxu0 %v3574
        %3598 = vmatprep.subr.bf16.mxu0 0
        %3599 = vmatpush1.bf16.msra.mxu0 %v3575
        %3600 = vmatprep.subr.bf16.mxu0 0
        %3601 = vmatpush1.bf16.msra.mxu0 0
        %3602 = vmatprep.subr.bf16.mxu0 0
        %3603 = vmatpush1.bf16.msra.mxu0 0
        %3604 = vmatprep.subr.bf16.mxu0 0
        %3605 = vmatpush1.bf16.msra.mxu0 0
        %3606 = vmatprep.subr.bf16.mxu0 0
        %3607 = vmatpush1.bf16.msra.mxu0 0
        %3608 = vmatprep.subr.bf16.mxu0 0
        %3609 = vmatpush1.bf16.msra.mxu0 0
        %3610 = vmatprep.subr.bf16.mxu0 0
        %3611 = vmatpush1.bf16.msra.mxu0 0
        %3612 = vmatprep.subr.bf16.mxu0 0
        %3613 = vmatpush1.bf16.msra.mxu0 0
        %3614 = vmatprep.subr.bf16.mxu0 0
        %3615 = vmatpush1.bf16.msra.mxu0 0
        %3616 = vmatprep.mubr.bf16.mxu0 0
        %3617 = vmatmul.mubr.bf16.gmra.mrb[0].mxu0 %v3528
        %v3618 = vpop.f32.mrb[0].mxu0
        %v3619 = vadd.f32 0.0, %v3618
        %v3620 = vpop.f32.mrb[0].mxu0
        %v3621 = vpop.f32.mrb[0].mxu0
        %v3622 = vadd.f32 0.0, %v3621
        %v3623 = vpop.f32.mrb[0].mxu0
        %3624 = vmatprep.mubr.bf16.mxu0 0
        %3625 = vmatmul.mubr.bf16.gmra.mrb[0].mxu0 %v3529
        %v3626 = vpop.f32.mrb[0].mxu0
        %v3627 = vadd.f32 0.0, %v3626
        %v3628 = vpop.f32.mrb[0].mxu0
        %v3629 = vpop.f32.mrb[0].mxu0
        %v3630 = vadd.f32 0.0, %v3629
        %v3631 = vpop.f32.mrb[0].mxu0
        %3632 = vmatprep.mubr.bf16.mxu0 0
        %3633 = vmatmul.mubr.bf16.gmra.mrb[0].mxu0 %v3530
        %v3634 = vpop.f32.mrb[0].mxu0
        %v3635 = vadd.f32 0.0, %v3634
        %v3636 = vpop.f32.mrb[0].mxu0
        %v3637 = vpop.f32.mrb[0].mxu0
        %v3638 = vadd.f32 0.0, %v3637
        %v3639 = vpop.f32.mrb[0].mxu0
        %3640 = vmatprep.mubr.bf16.mxu0 0
        %3641 = vmatmul.mubr.bf16.gmra.mrb[0].mxu0 %v3531
        %v3642 = vpop.f32.mrb[0].mxu0
        %v3643 = vadd.f32 0.0, %v3642
        %v3644 = vpop.f32.mrb[0].mxu0
        %v3645 = vpop.f32.mrb[0].mxu0
        %v3646 = vadd.f32 0.0, %v3645
        %v3647 = vpop.f32.mrb[0].mxu0
        %3648 = vdwg.mxu0
        %v3649 = vadd.f32 %v3470, %v3619
        %v3650 = vadd.f32 %v3471, %v3622
        %v3651 = vadd.f32 %v3472, %v3627
        %v3652 = vadd.f32 %v3473, %v3630
        %v3653 = vadd.f32 %v3474, %v3635
        %v3654 = vadd.f32 %v3475, %v3638
        %v3655 = vadd.f32 %v3476, %v3643
        %v3656 = vadd.f32 %v3477, %v3646
        %v3657 = vld [vmem:[%s3478 + $0x1] sm:$0xff]
        %v3658 = vld [vmem:[%s3478 + $0x11] sm:$0xff]
        %v3659 = vld [vmem:[%s3478 + $0x21] sm:$0xff]
        %v3660 = vld [vmem:[%s3478 + $0x31] sm:$0xff]
        %v3661 = vld [vmem:[%s3478 + $0x41] sm:$0xff]
        %v3662 = vld [vmem:[%s3478 + $0x51] sm:$0xff]
        %v3663 = vld [vmem:[%s3478 + $0x61] sm:$0xff]
        %v3664 = vld [vmem:[%s3478 + $0x71] sm:$0xff]
        %v3665 = vpack.c.bf16 %v3657, %v3657
        %v3666 = vpack.c.bf16 %v3658, %v3658
        %v3667 = vpack.c.bf16 %v3659, %v3659
        %v3668 = vpack.c.bf16 %v3660, %v3660
        %v3669 = vpack.c.bf16 %v3661, %v3661
        %v3670 = vpack.c.bf16 %v3662, %v3662
        %v3671 = vpack.c.bf16 %v3663, %v3663
        %v3672 = vpack.c.bf16 %v3664, %v3664
        %s3673 = scalar_lea.vmem %s3, 448
        %v3674 = vld [vmem:[%s3673] sm:$0xf]
        %v3675 = vld [vmem:[%s3673 + $0x4] sm:$0xf]
        %v3676 = vld [vmem:[%s3673 + $0x8] sm:$0xf]
        %v3677 = vld [vmem:[%s3673 + $0xc] sm:$0xf]
        %v3678 = vld [vmem:[%s3673 + $0x10] sm:$0xf]
        %v3679 = vld [vmem:[%s3673 + $0x14] sm:$0xf]
        %v3680 = vld [vmem:[%s3673 + $0x18] sm:$0xf]
        %v3681 = vld [vmem:[%s3673 + $0x1c] sm:$0xf]
        %v3682 = vld [vmem:[%s3673 + $0x20] sm:$0xf]
        %v3683 = vld [vmem:[%s3673 + $0x24] sm:$0xf]
        %v3684 = vld [vmem:[%s3673 + $0x28] sm:$0xf]
        %v3685 = vld [vmem:[%s3673 + $0x2c] sm:$0xf]
        %v3686 = vld [vmem:[%s3673 + $0x30] sm:$0xf]
        %v3687 = vld [vmem:[%s3673 + $0x34] sm:$0xf]
        %v3688 = vld [vmem:[%s3673 + $0x38] sm:$0xf]
        %v3689 = vld [vmem:[%s3673 + $0x3c] sm:$0xf]
        %v3698 = vunpack.c.l.b16 %v3665
        %v3699 = vunpack.c.l.b16 %v3666
        %v3700 = vunpack.c.l.b16 %v3667
        %v3701 = vunpack.c.l.b16 %v3668
        %v3702 = vunpack.c.l.b16 %v3669
        %v3703 = vunpack.c.l.b16 %v3670
        %v3704 = vunpack.c.l.b16 %v3671
        %v3705 = vunpack.c.l.b16 %v3672
        %v3706 = vpack.c.b16 %v3699, %v3698
        %v3707 = vpack.c.b16 %v3701, %v3700
        %v3708 = vpack.c.b16 %v3703, %v3702
        %v3709 = vpack.c.b16 %v3705, %v3704
        %v3730 = vunpack.c.l.b16 %v3674
        %v3731 = vunpack.c.l.b16 %v3675
        %v3732 = vunpack.c.l.b16 %v3676
        %v3733 = vunpack.c.l.b16 %v3677
        %v3734 = vunpack.c.l.b16 %v3678
        %v3735 = vunpack.c.l.b16 %v3679
        %v3736 = vunpack.c.l.b16 %v3680
        %v3737 = vunpack.c.l.b16 %v3681
        %v3738 = vunpack.c.l.b16 %v3682
        %v3739 = vunpack.c.l.b16 %v3683
        %v3740 = vunpack.c.l.b16 %v3684
        %v3741 = vunpack.c.l.b16 %v3685
        %v3742 = vunpack.c.l.b16 %v3686
        %v3743 = vunpack.c.l.b16 %v3687
        %v3744 = vunpack.c.l.b16 %v3688
        %v3745 = vunpack.c.l.b16 %v3689
        %v3746 = vpack.c.b16 %v3731, %v3730
        %v3747 = vpack.c.b16 %v3733, %v3732
        %v3748 = vpack.c.b16 %v3735, %v3734
        %v3749 = vpack.c.b16 %v3737, %v3736
        %v3750 = vpack.c.b16 %v3739, %v3738
        %v3751 = vpack.c.b16 %v3741, %v3740
        %v3752 = vpack.c.b16 %v3743, %v3742
        %v3753 = vpack.c.b16 %v3745, %v3744
        %3762 = vmatprep.subr.bf16.mxu0 0
        %3763 = vmatpush1.bf16.msra.mxu0 %v3746
        %3764 = vmatprep.subr.bf16.mxu0 0
        %3765 = vmatpush1.bf16.msra.mxu0 %v3747
        %3766 = vmatprep.subr.bf16.mxu0 0
        %3767 = vmatpush1.bf16.msra.mxu0 %v3748
        %3768 = vmatprep.subr.bf16.mxu0 0
        %3769 = vmatpush1.bf16.msra.mxu0 %v3749
        %3770 = vmatprep.subr.bf16.mxu0 0
        %3771 = vmatpush1.bf16.msra.mxu0 %v3750
        %3772 = vmatprep.subr.bf16.mxu0 0
        %3773 = vmatpush1.bf16.msra.mxu0 %v3751
        %3774 = vmatprep.subr.bf16.mxu0 0
        %3775 = vmatpush1.bf16.msra.mxu0 %v3752
        %3776 = vmatprep.subr.bf16.mxu0 0
        %3777 = vmatpush1.bf16.msra.mxu0 %v3753
        %3778 = vmatprep.subr.bf16.mxu0 0
        %3779 = vmatpush1.bf16.msra.mxu0 0
        %3780 = vmatprep.subr.bf16.mxu0 0
        %3781 = vmatpush1.bf16.msra.mxu0 0
        %3782 = vmatprep.subr.bf16.mxu0 0
        %3783 = vmatpush1.bf16.msra.mxu0 0
        %3784 = vmatprep.subr.bf16.mxu0 0
        %3785 = vmatpush1.bf16.msra.mxu0 0
        %3786 = vmatprep.subr.bf16.mxu0 0
        %3787 = vmatpush1.bf16.msra.mxu0 0
        %3788 = vmatprep.subr.bf16.mxu0 0
        %3789 = vmatpush1.bf16.msra.mxu0 0
        %3790 = vmatprep.subr.bf16.mxu0 0
        %3791 = vmatpush1.bf16.msra.mxu0 0
        %3792 = vmatprep.subr.bf16.mxu0 0
        %3793 = vmatpush1.bf16.msra.mxu0 0
        %3794 = vmatprep.mubr.bf16.mxu0 0
        %3795 = vmatmul.mubr.bf16.gmra.mrb[0].mxu0 %v3706
        %v3796 = vpop.f32.mrb[0].mxu0
        %v3797 = vadd.f32 0.0, %v3796
        %v3798 = vpop.f32.mrb[0].mxu0
        %v3799 = vpop.f32.mrb[0].mxu0
        %v3800 = vadd.f32 0.0, %v3799
        %v3801 = vpop.f32.mrb[0].mxu0
        %3802 = vmatprep.mubr.bf16.mxu0 0
        %3803 = vmatmul.mubr.bf16.gmra.mrb[0].mxu0 %v3707
        %v3804 = vpop.f32.mrb[0].mxu0
        %v3805 = vadd.f32 0.0, %v3804
        %v3806 = vpop.f32.mrb[0].mxu0
        %v3807 = vpop.f32.mrb[0].mxu0
        %v3808 = vadd.f32 0.0, %v3807
        %v3809 = vpop.f32.mrb[0].mxu0
        %3810 = vmatprep.mubr.bf16.mxu0 0
        %3811 = vmatmul.mubr.bf16.gmra.mrb[0].mxu0 %v3708
        %v3812 = vpop.f32.mrb[0].mxu0
        %v3813 = vadd.f32 0.0, %v3812
        %v3814 = vpop.f32.mrb[0].mxu0
        %v3815 = vpop.f32.mrb[0].mxu0
        %v3816 = vadd.f32 0.0, %v3815
        %v3817 = vpop.f32.mrb[0].mxu0
        %3818 = vmatprep.mubr.bf16.mxu0 0
        %3819 = vmatmul.mubr.bf16.gmra.mrb[0].mxu0 %v3709
        %v3820 = vpop.f32.mrb[0].mxu0
        %v3821 = vadd.f32 0.0, %v3820
        %v3822 = vpop.f32.mrb[0].mxu0
        %v3823 = vpop.f32.mrb[0].mxu0
        %v3824 = vadd.f32 0.0, %v3823
        %v3825 = vpop.f32.mrb[0].mxu0
        %3826 = vdwg.mxu0
        %v3827 = vadd.f32 %v3649, %v3797
        %v3828 = vadd.f32 %v3650, %v3800
        %v3829 = vadd.f32 %v3651, %v3805
        %v3830 = vadd.f32 %v3652, %v3808
        %v3831 = vadd.f32 %v3653, %v3813
        %v3832 = vadd.f32 %v3654, %v3816
        %v3833 = vadd.f32 %v3655, %v3821
        %v3834 = vadd.f32 %v3656, %v3824
        %v3835 = vld [vmem:[%s3478 + $0x2] sm:$0xff]
        %v3836 = vld [vmem:[%s3478 + $0x12] sm:$0xff]
        %v3837 = vld [vmem:[%s3478 + $0x22] sm:$0xff]
        %v3838 = vld [vmem:[%s3478 + $0x32] sm:$0xff]
        %v3839 = vld [vmem:[%s3478 + $0x42] sm:$0xff]
        %v3840 = vld [vmem:[%s3478 + $0x52] sm:$0xff]
        %v3841 = vld [vmem:[%s3478 + $0x62] sm:$0xff]
        %v3842 = vld [vmem:[%s3478 + $0x72] sm:$0xff]
        %v3843 = vpack.c.bf16 %v3835, %v3835
        %v3844 = vpack.c.bf16 %v3836, %v3836
        %v3845 = vpack.c.bf16 %v3837, %v3837
        %v3846 = vpack.c.bf16 %v3838, %v3838
        %v3847 = vpack.c.bf16 %v3839, %v3839
        %v3848 = vpack.c.bf16 %v3840, %v3840
        %v3849 = vpack.c.bf16 %v3841, %v3841
        %v3850 = vpack.c.bf16 %v3842, %v3842
        %s3851 = scalar_lea.vmem %s3, 512
        %v3852 = vld [vmem:[%s3851] sm:$0xf]
        %v3853 = vld [vmem:[%s3851 + $0x4] sm:$0xf]
        %v3854 = vld [vmem:[%s3851 + $0x8] sm:$0xf]
        %v3855 = vld [vmem:[%s3851 + $0xc] sm:$0xf]
        %v3856 = vld [vmem:[%s3851 + $0x10] sm:$0xf]
        %v3857 = vld [vmem:[%s3851 + $0x14] sm:$0xf]
        %v3858 = vld [vmem:[%s3851 + $0x18] sm:$0xf]
        %v3859 = vld [vmem:[%s3851 + $0x1c] sm:$0xf]
        %v3860 = vld [vmem:[%s3851 + $0x20] sm:$0xf]
        %v3861 = vld [vmem:[%s3851 + $0x24] sm:$0xf]
        %v3862 = vld [vmem:[%s3851 + $0x28] sm:$0xf]
        %v3863 = vld [vmem:[%s3851 + $0x2c] sm:$0xf]
        %v3864 = vld [vmem:[%s3851 + $0x30] sm:$0xf]
        %v3865 = vld [vmem:[%s3851 + $0x34] sm:$0xf]
        %v3866 = vld [vmem:[%s3851 + $0x38] sm:$0xf]
        %v3867 = vld [vmem:[%s3851 + $0x3c] sm:$0xf]
        %v3876 = vunpack.c.l.b16 %v3843
        %v3877 = vunpack.c.l.b16 %v3844
        %v3878 = vunpack.c.l.b16 %v3845
        %v3879 = vunpack.c.l.b16 %v3846
        %v3880 = vunpack.c.l.b16 %v3847
        %v3881 = vunpack.c.l.b16 %v3848
        %v3882 = vunpack.c.l.b16 %v3849
        %v3883 = vunpack.c.l.b16 %v3850
        %v3884 = vpack.c.b16 %v3877, %v3876
        %v3885 = vpack.c.b16 %v3879, %v3878
        %v3886 = vpack.c.b16 %v3881, %v3880
        %v3887 = vpack.c.b16 %v3883, %v3882
        %v3908 = vunpack.c.l.b16 %v3852
        %v3909 = vunpack.c.l.b16 %v3853
        %v3910 = vunpack.c.l.b16 %v3854
        %v3911 = vunpack.c.l.b16 %v3855
        %v3912 = vunpack.c.l.b16 %v3856
        %v3913 = vunpack.c.l.b16 %v3857
        %v3914 = vunpack.c.l.b16 %v3858
        %v3915 = vunpack.c.l.b16 %v3859
        %v3916 = vunpack.c.l.b16 %v3860
        %v3917 = vunpack.c.l.b16 %v3861
        %v3918 = vunpack.c.l.b16 %v3862
        %v3919 = vunpack.c.l.b16 %v3863
        %v3920 = vunpack.c.l.b16 %v3864
        %v3921 = vunpack.c.l.b16 %v3865
        %v3922 = vunpack.c.l.b16 %v3866
        %v3923 = vunpack.c.l.b16 %v3867
        %v3924 = vpack.c.b16 %v3909, %v3908
        %v3925 = vpack.c.b16 %v3911, %v3910
        %v3926 = vpack.c.b16 %v3913, %v3912
        %v3927 = vpack.c.b16 %v3915, %v3914
        %v3928 = vpack.c.b16 %v3917, %v3916
        %v3929 = vpack.c.b16 %v3919, %v3918
        %v3930 = vpack.c.b16 %v3921, %v3920
        %v3931 = vpack.c.b16 %v3923, %v3922
        %3940 = vmatprep.subr.bf16.mxu0 0
        %3941 = vmatpush1.bf16.msra.mxu0 %v3924
        %3942 = vmatprep.subr.bf16.mxu0 0
        %3943 = vmatpush1.bf16.msra.mxu0 %v3925
        %3944 = vmatprep.subr.bf16.mxu0 0
        %3945 = vmatpush1.bf16.msra.mxu0 %v3926
        %3946 = vmatprep.subr.bf16.mxu0 0
        %3947 = vmatpush1.bf16.msra.mxu0 %v3927
        %3948 = vmatprep.subr.bf16.mxu0 0
        %3949 = vmatpush1.bf16.msra.mxu0 %v3928
        %3950 = vmatprep.subr.bf16.mxu0 0
        %3951 = vmatpush1.bf16.msra.mxu0 %v3929
        %3952 = vmatprep.subr.bf16.mxu0 0
        %3953 = vmatpush1.bf16.msra.mxu0 %v3930
        %3954 = vmatprep.subr.bf16.mxu0 0
        %3955 = vmatpush1.bf16.msra.mxu0 %v3931
        %3956 = vmatprep.subr.bf16.mxu0 0
        %3957 = vmatpush1.bf16.msra.mxu0 0
        %3958 = vmatprep.subr.bf16.mxu0 0
        %3959 = vmatpush1.bf16.msra.mxu0 0
        %3960 = vmatprep.subr.bf16.mxu0 0
        %3961 = vmatpush1.bf16.msra.mxu0 0
        %3962 = vmatprep.subr.bf16.mxu0 0
        %3963 = vmatpush1.bf16.msra.mxu0 0
        %3964 = vmatprep.subr.bf16.mxu0 0
        %3965 = vmatpush1.bf16.msra.mxu0 0
        %3966 = vmatprep.subr.bf16.mxu0 0
        %3967 = vmatpush1.bf16.msra.mxu0 0
        %3968 = vmatprep.subr.bf16.mxu0 0
        %3969 = vmatpush1.bf16.msra.mxu0 0
        %3970 = vmatprep.subr.bf16.mxu0 0
        %3971 = vmatpush1.bf16.msra.mxu0 0
        %3972 = vmatprep.mubr.bf16.mxu0 0
        %3973 = vmatmul.mubr.bf16.gmra.mrb[0].mxu0 %v3884
        %v3974 = vpop.f32.mrb[0].mxu0
        %v3975 = vadd.f32 0.0, %v3974
        %v3976 = vpop.f32.mrb[0].mxu0
        %v3977 = vpop.f32.mrb[0].mxu0
        %v3978 = vadd.f32 0.0, %v3977
        %v3979 = vpop.f32.mrb[0].mxu0
        %3980 = vmatprep.mubr.bf16.mxu0 0
        %3981 = vmatmul.mubr.bf16.gmra.mrb[0].mxu0 %v3885
        %v3982 = vpop.f32.mrb[0].mxu0
        %v3983 = vadd.f32 0.0, %v3982
        %v3984 = vpop.f32.mrb[0].mxu0
        %v3985 = vpop.f32.mrb[0].mxu0
        %v3986 = vadd.f32 0.0, %v3985
        %v3987 = vpop.f32.mrb[0].mxu0
        %3988 = vmatprep.mubr.bf16.mxu0 0
        %3989 = vmatmul.mubr.bf16.gmra.mrb[0].mxu0 %v3886
        %v3990 = vpop.f32.mrb[0].mxu0
        %v3991 = vadd.f32 0.0, %v3990
        %v3992 = vpop.f32.mrb[0].mxu0
        %v3993 = vpop.f32.mrb[0].mxu0
        %v3994 = vadd.f32 0.0, %v3993
        %v3995 = vpop.f32.mrb[0].mxu0
        %3996 = vmatprep.mubr.bf16.mxu0 0
        %3997 = vmatmul.mubr.bf16.gmra.mrb[0].mxu0 %v3887
        %v3998 = vpop.f32.mrb[0].mxu0
        %v3999 = vadd.f32 0.0, %v3998
        %v4000 = vpop.f32.mrb[0].mxu0
        %v4001 = vpop.f32.mrb[0].mxu0
        %v4002 = vadd.f32 0.0, %v4001
        %v4003 = vpop.f32.mrb[0].mxu0
        %4004 = vdwg.mxu0
        %v4005 = vadd.f32 %v3827, %v3975
        %v4006 = vadd.f32 %v3828, %v3978
        %v4007 = vadd.f32 %v3829, %v3983
        %v4008 = vadd.f32 %v3830, %v3986
        %v4009 = vadd.f32 %v3831, %v3991
        %v4010 = vadd.f32 %v3832, %v3994
        %v4011 = vadd.f32 %v3833, %v3999
        %v4012 = vadd.f32 %v3834, %v4002
        %v4013 = vadd.f32 %v4005, %v4006
        %v4014 = vadd.f32 %v4013, %v4007
        %v4015 = vadd.f32 %v4014, %v4008
        %v4016 = vadd.f32 %v4015, %v4009
        %v4017 = vadd.f32 %v4016, %v4010
        %v4018 = vadd.f32 %v4017, %v4011
        %v4019 = vadd.f32 %v4018, %v4012
        %v4020 = vrot.slane %v4019, 4
        %v4021 = vadd.f32 %v4019, %v4020
        %v4022 = vrot.slane %v4021, 2
        %v4023 = vadd.f32 %v4021, %v4022
        %v4024 = vrot.slane %v4023, 1
        %v4025 = vadd.f32 %v4023, %v4024
        %v4026 = vmul.f32 %v4025, 0.015625
        %v4027 = vmul.f32 %v4005, %v4005
        %v4028 = vmul.f32 %v4006, %v4006
        %v4029 = vmul.f32 %v4007, %v4007
        %v4030 = vmul.f32 %v4008, %v4008
        %v4031 = vmul.f32 %v4009, %v4009
        %v4032 = vmul.f32 %v4010, %v4010
        %v4033 = vmul.f32 %v4011, %v4011
        %v4034 = vmul.f32 %v4012, %v4012
        %v4035 = vadd.f32 %v4027, %v4028
        %v4036 = vadd.f32 %v4035, %v4029
        %v4037 = vadd.f32 %v4036, %v4030
        %v4038 = vadd.f32 %v4037, %v4031
        %v4039 = vadd.f32 %v4038, %v4032
        %v4040 = vadd.f32 %v4039, %v4033
        %v4041 = vadd.f32 %v4040, %v4034
        %v4042 = vrot.slane %v4041, 4
        %v4043 = vadd.f32 %v4041, %v4042
        %v4044 = vrot.slane %v4043, 2
        %v4045 = vadd.f32 %v4043, %v4044
        %v4046 = vrot.slane %v4045, 1
        %v4047 = vadd.f32 %v4045, %v4046
        %v4048 = vmul.f32 %v4047, 0.015625
        %v4049 = vmul.f32 %v4026, %v4026
        %v4050 = vsub.f32 %v4048, %v4049
        %v4051 = vld [vmem:[%s6] sm:$0x1]
        %v4052 = vadd.f32 %v4050, 1e-05
        %v4053 = vrsqrt.pop %v4052
        %v4054 = vmul.f32 %v4051, %v4053
        %v4055 = vld [vmem:[%s7] sm:$0x1]
        %v4056 = vmul.f32 %v4026, %v4054
        %v4057 = vsub.f32 %v4055, %v4056
        %v4059 = vlaneseq
        %v4060 = vshrl.u32 %v4059, 7
        %v4061 = vsub.s32 0, %v4060
        %v4062 = vrot.slane %v4054, %v4061
        %v4064 = vmul.f32 %v4005, %v4062
        %v4065 = vmul.f32 %v4006, %v4062
        %v4066 = vmul.f32 %v4007, %v4062
        %v4067 = vmul.f32 %v4008, %v4062
        %v4068 = vmul.f32 %v4009, %v4062
        %v4069 = vmul.f32 %v4010, %v4062
        %v4070 = vmul.f32 %v4011, %v4062
        %v4071 = vmul.f32 %v4012, %v4062
        %v4073 = vlaneseq
        %v4074 = vshrl.u32 %v4073, 7
        %v4075 = vsub.s32 0, %v4074
        %v4076 = vrot.slane %v4057, %v4075
        %v4078 = vadd.f32 %v4064, %v4076
        %v4079 = vadd.f32 %v4065, %v4076
        %v4080 = vadd.f32 %v4066, %v4076
        %v4081 = vadd.f32 %v4067, %v4076
        %v4082 = vadd.f32 %v4068, %v4076
        %v4083 = vadd.f32 %v4069, %v4076
        %v4084 = vadd.f32 %v4070, %v4076
        %v4085 = vadd.f32 %v4071, %v4076
        %v4086 = vld [vmem:[%s323] sm:$0xff]
        %v4087 = vld [vmem:[%s323 + $0x8] sm:$0xff]
        %v4088 = vld [vmem:[%s323 + $0x10] sm:$0xff]
        %v4089 = vld [vmem:[%s323 + $0x18] sm:$0xff]
        %v4090 = vld [vmem:[%s323 + $0x20] sm:$0xff]
        %v4091 = vld [vmem:[%s323 + $0x28] sm:$0xff]
        %v4092 = vld [vmem:[%s323 + $0x30] sm:$0xff]
        %v4093 = vld [vmem:[%s323 + $0x38] sm:$0xff]
        %v4094 = vadd.f32 %v4078, %v4086
        %v4095 = vadd.f32 %v4079, %v4087
        %v4096 = vadd.f32 %v4080, %v4088
        %v4097 = vadd.f32 %v4081, %v4089
        %v4098 = vadd.f32 %v4082, %v4090
        %v4099 = vadd.f32 %v4083, %v4091
        %v4100 = vadd.f32 %v4084, %v4092
        %v4101 = vadd.f32 %v4085, %v4093
        %4102 = vst [vmem:[%s313] sm:$0xff] %v4094
        %4103 = vst [vmem:[%s313 + $0x8] sm:$0xff] %v4095
        %4104 = vst [vmem:[%s313 + $0x10] sm:$0xff] %v4096
        %4105 = vst [vmem:[%s313 + $0x18] sm:$0xff] %v4097
        %4106 = vst [vmem:[%s313 + $0x20] sm:$0xff] %v4098
        %4107 = vst [vmem:[%s313 + $0x28] sm:$0xff] %v4099
        %4108 = vst [vmem:[%s313 + $0x30] sm:$0xff] %v4100
        %4109 = vst [vmem:[%s313 + $0x38] sm:$0xff] %v4101
        %s4110 = sand.u32 %s208, 1
        %s4111 = scalar_lea.sflag [#allocation4], %s4110
        %s4112 = sand.u32 %s208, 1
        %s4113 = smul.addr %s4112, 64
        %s4114 = scalar_lea.vmem [#allocation3], %s4113
        // Predicated region
        $region53: #{res_layer_forward.1} parent=51 // pred_check
          %p4115 = pneg %p218
        $region54: #{res_layer_forward.1} parent=51 // pred_check_branch
          %4117 = sbr.rel (%p4115) target = $region56
        $region55: #{res_layer_forward.1} parent=51 // pred_region
          %s4119 = ssub.s32 1024, 1024
          %4120 = vsyncadd %s4111, %s4119
          %s4121 = smul.addr %s22, 8
          %s4122 = smul.addr %s4121, 128
          %s4123 = scalar_lea.hbm %s8, %s4122
          %s4124 = sshll.u32 %s4114, 4
          %s4125 = int_to_ptr.vmem [resolvable:$true] %s4124
          %4130 = dma.vmem_to_hbm [thread:$0]  %s4125, 1024, %s4123, %s4111, 128, 128, 8
        $region56: #{res_layer_forward.1} parent=51 // pred_fallthru
          _
      $region52: #{res_layer_forward.1} parent=5 // pred_fallthru
        _
      %p4131 = scmp.le.s32.totalorder 2, %s17
      // Predicated region
      $region57: #{res_layer_forward.1} parent=5 // pred_check
        %p4132 = pneg %p4131
      $region58: #{res_layer_forward.1} parent=5 // pred_check_branch
        %4134 = sbr.rel (%p4132) target = $region60
      $region59: #{res_layer_forward.1} parent=5 // pred_region
        %s4135 = ssub.s32 %s17, 2
        // Predicated region
        $region61: #{res_layer_forward.1} parent=59 // pred_check
          %p4136 = pneg %p224
        $region62: #{res_layer_forward.1} parent=59 // pred_check_branch
          %4138 = sbr.rel (%p4136) target = $region64
        $region63: #{res_layer_forward.1} parent=59 // pred_region
          %s4139 = sand.u32 %s209, 1
          %s4140 = scalar_lea.sflag [#allocation4], %s4139
          %s4141 = sand.u32 %s209, 1
          %s4142 = smul.addr %s4141, 64
          %s4143 = scalar_lea.vmem [#allocation3], %s4142
          %4144 = dma.done %s4140, 1024
        $region64: #{res_layer_forward.1} parent=59 // pred_fallthru
          _
      $region60: #{res_layer_forward.1} parent=5 // pred_fallthru
        _
    $region6: #{res_layer_forward.1} parent=1 // loop_footer
      %s21 = sadd.s32 1, %s17
    $region7: #{res_layer_forward.1} parent=1 // loop_footer_branch
      %16 = sbr.rel target = $region3
    $region8: #{res_layer_forward.1} parent=1 // loop_exit
      _
    %4145 = vsyncpa [#allocation4], 1
    %s4146 = scalar_lea.sflag [#allocation4], 1
    %4147 = vsyncpa %s4146, 1

</llo_original>
